<compile_context>
chip_gen: v6e
topology: v6e:2x2x1
jax: 0.10.0
libtpu: 0.0.40
codegen_flags: <defaults>
</compile_context>

<pallas_src>
import functools

import numpy as np
import jax
import jax.numpy as jnp
from jax import lax
from jax.experimental import pallas as pl
from jax.experimental.pallas import tpu as pltpu


LANE = 128                       # pad conv Cout / linear N to this (dense stores)
_VMEM_LIMIT = 48 * 1024 * 1024   # explicit scoped-VMEM limit (v7x-safe headroom)


def _round_up(x, m):
    return ((x + m - 1) // m) * m


def _fold_bn(p):
    """Fold conv/linear bias + BatchNorm running stats into scale/shift."""
    scale = p['gamma'] / jnp.sqrt(p['var'] + p['eps'])
    shift = (p['b'] - p['mean']) * scale + p['beta']
    return scale[None, :], shift[None, :]


def _leaky(y, slope):
    # slope in (0,1): max(y, slope*y) == LeakyReLU(y)
    return jnp.maximum(y, slope * y)


# ----------------------------------------------------------------------------
# Pallas kernels
# ----------------------------------------------------------------------------
def conv_tap_accum_kernel(xp_ref, w_ref, scale_ref, shift_ref, o_ref, acc_ref,
                          *, neg_slope):
    """One depth tap (kd) of a Conv3d as an MXU matmul, accumulated over the
    kd grid axis; folded BN affine + LeakyReLU fused on the last tap.

      xp_ref      : (1, 1, Qp, K2)  bf16   per-plane (kh,kw,cin) patch rows
      w_ref       : (KD, K2, Np)    bf16   per-tap weight slabs (VMEM-resident)
      scale/shift : (1, Np)         f32
      o_ref       : (1, 1, Qp, Np)  bf16
      acc_ref     : (Qp, Np)        f32    VMEM accumulator
    """
    kd = pl.program_id(2)

    @pl.when(kd == 0)
    def _init():
        acc_ref[...] = jnp.zeros_like(acc_ref)

    acc_ref[...] += jnp.dot(xp_ref[0, 0], w_ref[kd],
                            preferred_element_type=jnp.float32)

    @pl.when(kd == pl.num_programs(2) - 1)
    def _finalize():
        y = acc_ref[...] * scale_ref[...] + shift_ref[...]
        o_ref[0, 0] = _leaky(y, neg_slope).astype(o_ref.dtype)


def matmul_affine_lrelu_kernel(x_ref, w_ref, scale_ref, shift_ref, o_ref,
                               acc_ref, *, neg_slope):
    """K-tiled fused:  leaky_relu((x @ w) * scale + shift)   (Linear + BN1d)."""
    k = pl.program_id(2)

    @pl.when(k == 0)
    def _init():
        acc_ref[...] = jnp.zeros_like(acc_ref)

    acc_ref[...] += jnp.dot(x_ref[...], w_ref[...],
                            preferred_element_type=jnp.float32)

    @pl.when(k == pl.num_programs(2) - 1)
    def _finalize():
        y = acc_ref[...] * scale_ref[...] + shift_ref[...]
        o_ref[...] = _leaky(y, neg_slope).astype(o_ref.dtype)


def maxpool_window_kernel(x_ref, o_ref):
    """x: (T, tm, L) window taps -> elementwise max over taps -> (tm, L).

    Taps are read one at a time so the live vreg set stays at ~2 tiles."""
    m = jnp.maximum(x_ref[0], x_ref[1])
    for i in range(2, x_ref.shape[0]):
        m = jnp.maximum(m, x_ref[i])
    o_ref[...] = m


# ----------------------------------------------------------------------------
# Conv3d + BatchNorm3d + LeakyReLU  (depth-tap grid reduction)
# ----------------------------------------------------------------------------
def conv_bn_lrelu_pallas(x, p, stride, slope):
    """Conv3d(valid, stride) + BN(eval) + LeakyReLU on channels-last NDHWC."""
    w = p['w']                                   # (KD, KH, KW, Cin, Cout)
    KD, KH, KW, Cin, Cout = w.shape
    sd, sh, sw = stride
    N, D, H, W, _ = x.shape
    OD = (D - KD) // sd + 1
    OH = (H - KH) // sh + 1
    OW = (W - KW) // sw + 1
    K2 = KH * KW * Cin                           # per-tap contraction size
    Np = _round_up(Cout, LANE)                   # lane-dense output channels
    Q = OH * OW                                  # output rows per (n, od)
    Qp = _round_up(Q, 16)                        # bf16-friendly sublane pad

    # ---- plain-JAX glue: cheap per-plane 2D patch over (kh, kw) only --------
    cols = []
    for kh in range(KH):
        for kw in range(KW):
            cols.append(x[:, :, kh:kh + (OH - 1) * sh + 1:sh,
                          kw:kw + (OW - 1) * sw + 1:sw, :])
    xp = jnp.concatenate(cols, axis=-1)          # (N, D, OH, OW, KH*KW*Cin)
    xp = xp.reshape(N, D, Q, K2).astype(jnp.bfloat16)
    if Qp != Q:
        xp = jnp.pad(xp, ((0, 0), (0, 0), (0, Qp - Q), (0, 0)))

    # Weights per depth tap, Cout zero-padded to 128 lanes; BN folded affine.
    wm = w.reshape(KD, K2, Cout)
    wm = jnp.pad(wm, ((0, 0), (0, 0), (0, Np - Cout))).astype(jnp.bfloat16)
    scale, shift = _fold_bn(p)                   # (1, Cout) f32
    scale = jnp.pad(scale, ((0, 0), (0, Np - Cout)))
    shift = jnp.pad(shift, ((0, 0), (0, Np - Cout)))

    grid = (N, OD, KD)                           # kd = reduction axis (last)
    out = pl.pallas_call(
        functools.partial(conv_tap_accum_kernel, neg_slope=slope),
        out_shape=jax.ShapeDtypeStruct((N, OD, Qp, Np), jnp.bfloat16),
        grid=grid,
        in_specs=[
            # depth plane od*sd + kd of the per-plane patch matrix
            pl.BlockSpec((1, 1, Qp, K2),
                         lambda n, od, kd: (n, od * sd + kd, 0, 0)),
            # full weight stack resident in VMEM (indexed by kd in-kernel)
            pl.BlockSpec((KD, K2, Np), lambda n, od, kd: (0, 0, 0)),
            pl.BlockSpec((1, Np), lambda n, od, kd: (0, 0)),
            pl.BlockSpec((1, Np), lambda n, od, kd: (0, 0)),
        ],
        out_specs=pl.BlockSpec((1, 1, Qp, Np),
                               lambda n, od, kd: (n, od, 0, 0)),
        scratch_shapes=[pltpu.VMEM((Qp, Np), jnp.float32)],
        compiler_params=pltpu.CompilerParams(
            dimension_semantics=("parallel", "parallel", "arbitrary"),
            vmem_limit_bytes=_VMEM_LIMIT),
    )(xp, wm, scale, shift)

    out = out[:, :, :Q, :Cout].reshape(N, OD, OH, OW, Cout)
    return out


# ----------------------------------------------------------------------------
# MaxPool3d(2)  (tiled / pipelined over M, lane-folded to 128-wide tiles)
# ----------------------------------------------------------------------------
def pallas_maxpool2(x, tm=512):
    N, D, H, W, C = x.shape
    OD, OH, OW = D // 2, H // 2, W // 2
    # PyTorch MaxPool3d(2) floors odd spatial dims: crop to even extents.
    x = x[:, :2 * OD, :2 * OH, :2 * OW, :]
    # Layout glue: gather the 8 taps of every 2x2x2 window (tap-major).
    xr = x.reshape(N, OD, 2, OH, 2, OW, 2, C)
    xr = jnp.transpose(xr, (2, 4, 6, 0, 1, 3, 5, 7))
    M = N * OD * OH * OW
    taps = xr.reshape(8, M, C)

    # Fold `f` consecutive output positions into the lane dim so loads and
    # stores are 128-lane dense (C=32 -> f=4 -> 128 lanes).
    f = LANE // C if (C < LANE and LANE % C == 0) else 1
    Mf = _round_up(M, f)
    if Mf != M:
        taps = jnp.pad(taps, ((0, 0), (0, Mf - M), (0, 0)))
    Lf = f * C
    Mr = Mf // f
    taps = taps.reshape(8, Mr, Lf)

    tm = min(tm, _round_up(Mr, 16))
    Mp = _round_up(Mr, tm)
    if Mp != Mr:
        taps = jnp.pad(taps, ((0, 0), (0, Mp - Mr), (0, 0)))

    out = pl.pallas_call(
        maxpool_window_kernel,
        out_shape=jax.ShapeDtypeStruct((Mp, Lf), x.dtype),
        grid=(Mp // tm,),
        in_specs=[pl.BlockSpec((8, tm, Lf), lambda i: (0, i, 0))],
        out_specs=pl.BlockSpec((tm, Lf), lambda i: (i, 0)),
        compiler_params=pltpu.CompilerParams(
            dimension_semantics=("parallel",),
            vmem_limit_bytes=_VMEM_LIMIT),
    )(taps)
    out = out[:Mr].reshape(Mr * f, C)[:M]
    return out.reshape(N, OD, OH, OW, C)


# ----------------------------------------------------------------------------
# Linear + BatchNorm1d + LeakyReLU  (M/N/K tiled matmul)
# ----------------------------------------------------------------------------
def pallas_linear_bn_lrelu(x, w, scale, shift, slope, tm=256, tn=512, tk=512):
    M, K = x.shape
    _, Nn = w.shape
    tm = min(tm, _round_up(M, 8))
    tn = min(tn, _round_up(Nn, LANE))
    tk = min(tk, _round_up(K, LANE))
    Mp, Kp, Np = _round_up(M, tm), _round_up(K, tk), _round_up(Nn, tn)

    x = jnp.pad(x, ((0, Mp - M), (0, Kp - K))).astype(jnp.bfloat16)
    w = jnp.pad(w, ((0, Kp - K), (0, Np - Nn))).astype(jnp.bfloat16)
    scale = jnp.pad(scale, ((0, 0), (0, Np - Nn)))
    shift = jnp.pad(shift, ((0, 0), (0, Np - Nn)))

    grid = (Mp // tm, Np // tn, Kp // tk)
    out = pl.pallas_call(
        functools.partial(matmul_affine_lrelu_kernel, neg_slope=slope),
        out_shape=jax.ShapeDtypeStruct((Mp, Np), jnp.float32),
        grid=grid,
        in_specs=[
            pl.BlockSpec((tm, tk), lambda i, j, k: (i, k)),
            pl.BlockSpec((tk, tn), lambda i, j, k: (k, j)),
            pl.BlockSpec((1, tn), lambda i, j, k: (0, j)),
            pl.BlockSpec((1, tn), lambda i, j, k: (0, j)),
        ],
        out_specs=pl.BlockSpec((tm, tn), lambda i, j, k: (i, j)),
        scratch_shapes=[pltpu.VMEM((tm, tn), jnp.float32)],
        compiler_params=pltpu.CompilerParams(
            dimension_semantics=("parallel", "parallel", "arbitrary"),
            vmem_limit_bytes=_VMEM_LIMIT),
    )(x, w, scale, shift)
    return out[:M, :Nn]


# ----------------------------------------------------------------------------
# Full VoxNetEncoder forward (Pallas path)
# ----------------------------------------------------------------------------
def voxnet_forward_pallas(x_ncdhw, params):
    # NCDHW -> NDHWC, bf16 activations (MXU operands are bf16 anyway).
    x = jnp.transpose(x_ncdhw, (0, 2, 3, 4, 1)).astype(jnp.bfloat16)
    x = conv_bn_lrelu_pallas(x, params['conv1'], (2, 2, 2), 0.1)
    x = conv_bn_lrelu_pallas(x, params['conv2'], (1, 1, 1), 0.1)
    x = pallas_maxpool2(x)
    x = conv_bn_lrelu_pallas(x, params['conv3'], (1, 1, 1), 0.1)
    x = conv_bn_lrelu_pallas(x, params['conv4'], (1, 1, 1), 0.1)
    # nn.Flatten() on NCDHW ordering.
    x = jnp.transpose(x, (0, 4, 1, 2, 3)).reshape(x.shape[0], -1)
    # Linear + BatchNorm1d(eval) + LeakyReLU(0.01)
    p = params['linear']
    scale, shift = _fold_bn(p)
    return pallas_linear_bn_lrelu(x, p['w'], scale, shift, 0.01)


# ----------------------------------------------------------------------------
# Pure-JAX reference (float32, HIGHEST precision) for correctness check
# ----------------------------------------------------------------------------
def voxnet_forward_ref(x_ncdhw, params):
    x = jnp.transpose(x_ncdhw, (0, 2, 3, 4, 1)).astype(jnp.float32)

    def block(x, p, stride, slope):
        y = lax.conv_general_dilated(
            x, p['w'], window_strides=stride, padding='VALID',
            dimension_numbers=('NDHWC', 'DHWIO', 'NDHWC'),
            precision=lax.Precision.HIGHEST) + p['b']
        scale = p['gamma'] / jnp.sqrt(p['var'] + p['eps'])
        y = (y - p['mean']) * scale + p['beta']
        return jnp.where(y >= 0, y, slope * y)

    x = block(x, params['conv1'], (2, 2, 2), 0.1)
    x = block(x, params['conv2'], (1, 1, 1), 0.1)
    x = lax.reduce_window(x, -jnp.inf, lax.max,
                          (1, 2, 2, 2, 1), (1, 2, 2, 2, 1), 'VALID')
    x = block(x, params['conv3'], (1, 1, 1), 0.1)
    x = block(x, params['conv4'], (1, 1, 1), 0.1)
    x = jnp.transpose(x, (0, 4, 1, 2, 3)).reshape(x.shape[0], -1)
    p = params['linear']
    y = jnp.dot(x, p['w'], precision=lax.Precision.HIGHEST) + p['b']
    scale = p['gamma'] / jnp.sqrt(p['var'] + p['eps'])
    y = (y - p['mean']) * scale + p['beta']
    return jnp.where(y >= 0, y, 0.01 * y)


# ----------------------------------------------------------------------------
# Deterministic parameter init (synthetic -- no checkpoint)
# ----------------------------------------------------------------------------
def _conv_bn_params(key, ksize, cin, cout, eps):
    ks = jax.random.split(key, 6)
    return dict(
        w=jax.random.normal(ks[0], (*ksize, cin, cout), jnp.float32) * 0.05,
        b=jax.random.normal(ks[1], (cout,), jnp.float32) * 0.05,
        gamma=jax.random.uniform(ks[2], (cout,), jnp.float32, 0.5, 1.5),
        beta=jax.random.normal(ks[3], (cout,), jnp.float32) * 0.1,
        mean=jax.random.normal(ks[4], (cout,), jnp.float32) * 0.1,
        var=jax.random.uniform(ks[5], (cout,), jnp.float32, 0.5, 1.5),
        eps=eps,
    )


def get_flat_fts(input_size):
    """Analytic replacement for VoxNetEncoder.get_flat_fts (torch.ones probe)."""
    def o(d, k, s):
        return (d - k) // s + 1
    _, D, H, W = input_size
    D, H, W = o(D, 7, 2), o(H, 7, 2), o(W, 3, 2)        # conv1
    D, H, W = o(D, 5, 1), o(H, 5, 1), o(W, 3, 1)        # conv2
    D, H, W = D // 2, H // 2, W // 2                     # maxpool 2
    D, H, W = o(D, 5, 1), o(H, 5, 1), o(W, 3, 1)        # conv3
    D, H, W = o(D, 5, 1), o(H, 5, 1), o(W, 1, 1)        # conv4
    return 128 * D * H * W                               # channel_mult*8 = 128


def init_params(key, in_channels, output_size, flat_fts):
    cm = 16
    k = jax.random.split(key, 5)
    params = {
        'conv1': _conv_bn_params(k[0], (7, 7, 3), in_channels, cm * 1, 1e-4),
        'conv2': _conv_bn_params(k[1], (5, 5, 3), cm * 1, cm * 2, 1e-4),
        'conv3': _conv_bn_params(k[2], (5, 5, 3), cm * 2, cm * 4, 1e-4),
        'conv4': _conv_bn_params(k[3], (5, 5, 1), cm * 4, cm * 8, 1e-4),
    }
    kl = jax.random.split(k[4], 6)
    params['linear'] = dict(
        w=jax.random.normal(kl[0], (flat_fts, output_size), jnp.float32) * 0.05,
        b=jax.random.normal(kl[1], (output_size,), jnp.float32) * 0.05,
        gamma=jax.random.uniform(kl[2], (output_size,), jnp.float32, 0.5, 1.5),
        beta=jax.random.normal(kl[3], (output_size,), jnp.float32) * 0.1,
        mean=jax.random.normal(kl[4], (output_size,), jnp.float32) * 0.1,
        var=jax.random.uniform(kl[5], (output_size,), jnp.float32, 0.5, 1.5),
        eps=1e-5,
    )
    return params


# ----------------------------------------------------------------------------
if __name__ == "__main__":
    key = jax.random.PRNGKey(0)
    k_in, k_par = jax.random.split(key)

    # Small shapes consistent with the module: NCDHW input, in_channels=4.
    N, C = 2, 4
    D, H, W = 49, 49, 17          # smallest-ish spatial that survives the conv stack
    OUTPUT_SIZE = 256             # output_size (default 2048, shrunk for the demo)

    input_size = [C, D, H, W]
    flat_fts = get_flat_fts(input_size)   # = 128 for this input size

    x = jax.random.normal(k_in, (N, C, D, H, W), jnp.float32)
    params = init_params(k_par, in_channels=C, output_size=OUTPUT_SIZE,
                         flat_fts=flat_fts)

    fwd = jax.jit(lambda xx: voxnet_forward_pallas(xx, params))
    out = jax.block_until_ready(fwd(x))
    assert out.shape == (N, OUTPUT_SIZE), out.shape

    ref = jax.block_until_ready(voxnet_forward_ref(x, params))
    # Tolerance widened vs. a float32 HIGHEST reference because the kernels use
    # bfloat16 MXU operands / activations (f32 accumulation + epilogue) through
    # a 5-layer stack.
    np.testing.assert_allclose(np.asarray(out), np.asarray(ref),
                               rtol=5e-2, atol=5e-2)
    print("KERNEL_OK")
</pallas_src>

<mosaic_0001>
module attributes {stable_mosaic.version = 11 : i64} {
  func.func @conv_tap_accum_kernel(%arg0: i32, %arg1: i32, %arg2: i32, %arg3: memref<1x1x176x84xbf16, #tpu.memory_space<vmem>>, %arg4: memref<7x84x128xbf16, #tpu.memory_space<vmem>>, %arg5: memref<1x128xf32, #tpu.memory_space<vmem>>, %arg6: memref<1x128xf32, #tpu.memory_space<vmem>>, %arg7: memref<1x1x176x128xbf16, #tpu.memory_space<vmem>>, %arg8: memref<176x128xf32, #tpu.memory_space<vmem>>) attributes {dimension_semantics = [#tpu.dimension_semantics<parallel>, #tpu.dimension_semantics<parallel>, #tpu.dimension_semantics<arbitrary>], iteration_bounds = array<i64: 2, 22, 7>, scalar_prefetch = 0 : i64, scratch_operands = 1 : i64, tpu.core_type = #tpu.core_type<tc>, window_params = [{transform_indices = @transform_0, window_bounds = array<i64: 1, 1, 176, 84>}, {pipeline_mode = #tpu.pipeline_mode<synchronous>, transform_indices = @transform_1, window_bounds = array<i64: 7, 84, 128>}, {pipeline_mode = #tpu.pipeline_mode<synchronous>, transform_indices = @transform_2, window_bounds = array<i64: 1, 128>}, {pipeline_mode = #tpu.pipeline_mode<synchronous>, transform_indices = @transform_3, window_bounds = array<i64: 1, 128>}, {transform_indices = @transform_4, window_bounds = array<i64: 1, 1, 176, 128>}]} {
    %c0_i32 = arith.constant 0 : i32
    %0 = arith.cmpi eq, %arg2, %c0_i32 : i32
    %1 = arith.extui %0 : i1 to i32
    %c0_i32_0 = arith.constant 0 : i32
    %2 = arith.cmpi ne, %1, %c0_i32_0 : i32
    scf.if %2 {
      %cst_11 = arith.constant 0.000000e+00 : f32
      %15 = vector.broadcast %cst_11 : f32 to vector<176x128xf32>
      %c0_12 = arith.constant 0 : index
      %c0_13 = arith.constant 0 : index
      %16 = vector.load %arg8[%c0_12, %c0_13] : memref<176x128xf32, #tpu.memory_space<vmem>>, vector<176x128xf32>
      tpu.vector_store %arg8[%c0_12, %c0_13], %15 {strides = array<i32>} : memref<176x128xf32, #tpu.memory_space<vmem>>, vector<176x128xf32>,
    } else {
    }
    %c0 = arith.constant 0 : index
    %c0_1 = arith.constant 0 : index
    %3 = vector.load %arg8[%c0, %c0_1] : memref<176x128xf32, #tpu.memory_space<vmem>>, vector<176x128xf32>
    %c0_2 = arith.constant 0 : index
    %c0_3 = arith.constant 0 : index
    %c0_4 = arith.constant 0 : index
    %c0_5 = arith.constant 0 : index
    %4 = vector.load %arg3[%c0_2, %c0_3, %c0_4, %c0_5] : memref<1x1x176x84xbf16, #tpu.memory_space<vmem>>, vector<1x1x176x84xbf16>
    %5 = vector.shape_cast %4 : vector<1x1x176x84xbf16> to vector<176x84xbf16>
    %6 = arith.index_cast %arg2 : i32 to index
    %c0_6 = arith.constant 0 : index
    %c0_7 = arith.constant 0 : index
    %7 = vector.load %arg4[%6, %c0_6, %c0_7] : memref<7x84x128xbf16, #tpu.memory_space<vmem>>, vector<1x84x128xbf16>
    %8 = vector.shape_cast %7 : vector<1x84x128xbf16> to vector<84x128xbf16>
    %cst = arith.constant dense<0.000000e+00> : vector<176x128xf32>
    %9 = tpu.matmul %5, %8, %cst {dimension_numbers = #tpu.dot_dimension_numbers<[1], [0], [0], [1], [0, 0, 1, 1], [], []>} : vector<176x84xbf16>, vector<84x128xbf16>, vector<176x128xf32> -> vector<176x128xf32>
    %10 = arith.addf %3, %9 : vector<176x128xf32>
    %c0_8 = arith.constant 0 : index
    %c0_9 = arith.constant 0 : index
    %11 = vector.load %arg8[%c0_8, %c0_9] : memref<176x128xf32, #tpu.memory_space<vmem>>, vector<176x128xf32>
    tpu.vector_store %arg8[%c0_8, %c0_9], %10 {strides = array<i32>} : memref<176x128xf32, #tpu.memory_space<vmem>>, vector<176x128xf32>,
    %c6_i32 = arith.constant 6 : i32
    %12 = arith.cmpi eq, %arg2, %c6_i32 : i32
    %13 = arith.extui %12 : i1 to i32
    %c0_i32_10 = arith.constant 0 : i32
    %14 = arith.cmpi ne, %13, %c0_i32_10 : i32
    scf.if %14 {
      %c0_11 = arith.constant 0 : index
      %c0_12 = arith.constant 0 : index
      %15 = vector.load %arg8[%c0_11, %c0_12] : memref<176x128xf32, #tpu.memory_space<vmem>>, vector<176x128xf32>
      %c0_13 = arith.constant 0 : index
      %c0_14 = arith.constant 0 : index
      %16 = vector.load %arg5[%c0_13, %c0_14] : memref<1x128xf32, #tpu.memory_space<vmem>>, vector<1x128xf32>
      %17 = vector.broadcast %16 : vector<1x128xf32> to vector<176x128xf32>
      %18 = arith.mulf %15, %17 : vector<176x128xf32>
      %c0_15 = arith.constant 0 : index
      %c0_16 = arith.constant 0 : index
      %19 = vector.load %arg6[%c0_15, %c0_16] : memref<1x128xf32, #tpu.memory_space<vmem>>, vector<1x128xf32>
      %20 = vector.broadcast %19 : vector<1x128xf32> to vector<176x128xf32>
      %21 = arith.addf %18, %20 : vector<176x128xf32>
      %cst_17 = arith.constant 1.000000e-01 : f32
      %22 = vector.broadcast %cst_17 : f32 to vector<176x128xf32>
      %23 = arith.mulf %22, %21 : vector<176x128xf32>
      %24 = arith.maximumf %21, %23 : vector<176x128xf32>
      %25 = arith.truncf %24 : vector<176x128xf32> to vector<176x128xbf16>
      %c0_18 = arith.constant 0 : index
      %c0_19 = arith.constant 0 : index
      %c0_20 = arith.constant 0 : index
      %c0_21 = arith.constant 0 : index
      %26 = vector.load %arg7[%c0_18, %c0_19, %c0_20, %c0_21] : memref<1x1x176x128xbf16, #tpu.memory_space<vmem>>, vector<1x1x176x128xbf16>
      %27 = vector.shape_cast %26 : vector<1x1x176x128xbf16> to vector<176x128xbf16>
      %28 = vector.shape_cast %25 : vector<176x128xbf16> to vector<1x1x176x128xbf16>
      tpu.vector_store %arg7[%c0_18, %c0_19, %c0_20, %c0_21], %28 {strides = array<i32>} : memref<1x1x176x128xbf16, #tpu.memory_space<vmem>>, vector<1x1x176x128xbf16>,
    } else {
    }
    return
  }
  func.func @transform_0(%arg0: i32, %arg1: i32, %arg2: i32) -> (i32, i32, i32, i32) {
    %c2_i32 = arith.constant 2 : i32
    %0 = arith.muli %arg1, %c2_i32 : i32
    %1 = arith.addi %0, %arg2 : i32
    %c0_i32 = arith.constant 0 : i32
    %c0_i32_0 = arith.constant 0 : i32
    %c0_i32_1 = arith.constant 0 : i32
    return %arg0, %1, %c0_i32, %c0_i32_0 : i32, i32, i32, i32
  }
  func.func @transform_1(%arg0: i32, %arg1: i32, %arg2: i32) -> (i32, i32, i32) {
    %c0_i32 = arith.constant 0 : i32
    %c0_i32_0 = arith.constant 0 : i32
    %c0_i32_1 = arith.constant 0 : i32
    %c0_i32_2 = arith.constant 0 : i32
    return %c0_i32, %c0_i32_0, %c0_i32_1 : i32, i32, i32
  }
  func.func @transform_2(%arg0: i32, %arg1: i32, %arg2: i32) -> (i32, i32) {
    %c0_i32 = arith.constant 0 : i32
    %c0_i32_0 = arith.constant 0 : i32
    %c0_i32_1 = arith.constant 0 : i32
    return %c0_i32, %c0_i32_0 : i32, i32
  }
  func.func @transform_3(%arg0: i32, %arg1: i32, %arg2: i32) -> (i32, i32) {
    %c0_i32 = arith.constant 0 : i32
    %c0_i32_0 = arith.constant 0 : i32
    %c0_i32_1 = arith.constant 0 : i32
    return %c0_i32, %c0_i32_0 : i32, i32
  }
  func.func @transform_4(%arg0: i32, %arg1: i32, %arg2: i32) -> (i32, i32, i32, i32) {
    %c0_i32 = arith.constant 0 : i32
    %c0_i32_0 = arith.constant 0 : i32
    %c0_i32_1 = arith.constant 0 : i32
    return %arg0, %arg1, %c0_i32, %c0_i32_0 : i32, i32, i32, i32
  }
}

module attributes {stable_mosaic.version = 11 : i64} {
  func.func @conv_tap_accum_kernel(%arg0: i32, %arg1: i32, %arg2: i32, %arg3: memref<1x1x112x240xbf16, #tpu.memory_space<vmem>>, %arg4: memref<5x240x128xbf16, #tpu.memory_space<vmem>>, %arg5: memref<1x128xf32, #tpu.memory_space<vmem>>, %arg6: memref<1x128xf32, #tpu.memory_space<vmem>>, %arg7: memref<1x1x112x128xbf16, #tpu.memory_space<vmem>>, %arg8: memref<112x128xf32, #tpu.memory_space<vmem>>) attributes {dimension_semantics = [#tpu.dimension_semantics<parallel>, #tpu.dimension_semantics<parallel>, #tpu.dimension_semantics<arbitrary>], iteration_bounds = array<i64: 2, 18, 5>, scalar_prefetch = 0 : i64, scratch_operands = 1 : i64, tpu.core_type = #tpu.core_type<tc>, window_params = [{transform_indices = @transform_0, window_bounds = array<i64: 1, 1, 112, 240>}, {pipeline_mode = #tpu.pipeline_mode<synchronous>, transform_indices = @transform_1, window_bounds = array<i64: 5, 240, 128>}, {pipeline_mode = #tpu.pipeline_mode<synchronous>, transform_indices = @transform_2, window_bounds = array<i64: 1, 128>}, {pipeline_mode = #tpu.pipeline_mode<synchronous>, transform_indices = @transform_3, window_bounds = array<i64: 1, 128>}, {transform_indices = @transform_4, window_bounds = array<i64: 1, 1, 112, 128>}]} {
    %c0_i32 = arith.constant 0 : i32
    %0 = arith.cmpi eq, %arg2, %c0_i32 : i32
    %1 = arith.extui %0 : i1 to i32
    %c0_i32_0 = arith.constant 0 : i32
    %2 = arith.cmpi ne, %1, %c0_i32_0 : i32
    scf.if %2 {
      %cst_11 = arith.constant 0.000000e+00 : f32
      %15 = vector.broadcast %cst_11 : f32 to vector<112x128xf32>
      %c0_12 = arith.constant 0 : index
      %c0_13 = arith.constant 0 : index
      %16 = vector.load %arg8[%c0_12, %c0_13] : memref<112x128xf32, #tpu.memory_space<vmem>>, vector<112x128xf32>
      tpu.vector_store %arg8[%c0_12, %c0_13], %15 {strides = array<i32>} : memref<112x128xf32, #tpu.memory_space<vmem>>, vector<112x128xf32>,
    } else {
    }
    %c0 = arith.constant 0 : index
    %c0_1 = arith.constant 0 : index
    %3 = vector.load %arg8[%c0, %c0_1] : memref<112x128xf32, #tpu.memory_space<vmem>>, vector<112x128xf32>
    %c0_2 = arith.constant 0 : index
    %c0_3 = arith.constant 0 : index
    %c0_4 = arith.constant 0 : index
    %c0_5 = arith.constant 0 : index
    %4 = vector.load %arg3[%c0_2, %c0_3, %c0_4, %c0_5] : memref<1x1x112x240xbf16, #tpu.memory_space<vmem>>, vector<1x1x112x240xbf16>
    %5 = vector.shape_cast %4 : vector<1x1x112x240xbf16> to vector<112x240xbf16>
    %6 = arith.index_cast %arg2 : i32 to index
    %c0_6 = arith.constant 0 : index
    %c0_7 = arith.constant 0 : index
    %7 = vector.load %arg4[%6, %c0_6, %c0_7] : memref<5x240x128xbf16, #tpu.memory_space<vmem>>, vector<1x240x128xbf16>
    %8 = vector.shape_cast %7 : vector<1x240x128xbf16> to vector<240x128xbf16>
    %cst = arith.constant dense<0.000000e+00> : vector<112x128xf32>
    %9 = tpu.matmul %5, %8, %cst {dimension_numbers = #tpu.dot_dimension_numbers<[1], [0], [0], [1], [0, 0, 1, 1], [], []>} : vector<112x240xbf16>, vector<240x128xbf16>, vector<112x128xf32> -> vector<112x128xf32>
    %10 = arith.addf %3, %9 : vector<112x128xf32>
    %c0_8 = arith.constant 0 : index
    %c0_9 = arith.constant 0 : index
    %11 = vector.load %arg8[%c0_8, %c0_9] : memref<112x128xf32, #tpu.memory_space<vmem>>, vector<112x128xf32>
    tpu.vector_store %arg8[%c0_8, %c0_9], %10 {strides = array<i32>} : memref<112x128xf32, #tpu.memory_space<vmem>>, vector<112x128xf32>,
    %c4_i32 = arith.constant 4 : i32
    %12 = arith.cmpi eq, %arg2, %c4_i32 : i32
    %13 = arith.extui %12 : i1 to i32
    %c0_i32_10 = arith.constant 0 : i32
    %14 = arith.cmpi ne, %13, %c0_i32_10 : i32
    scf.if %14 {
      %c0_11 = arith.constant 0 : index
      %c0_12 = arith.constant 0 : index
      %15 = vector.load %arg8[%c0_11, %c0_12] : memref<112x128xf32, #tpu.memory_space<vmem>>, vector<112x128xf32>
      %c0_13 = arith.constant 0 : index
      %c0_14 = arith.constant 0 : index
      %16 = vector.load %arg5[%c0_13, %c0_14] : memref<1x128xf32, #tpu.memory_space<vmem>>, vector<1x128xf32>
      %17 = vector.broadcast %16 : vector<1x128xf32> to vector<112x128xf32>
      %18 = arith.mulf %15, %17 : vector<112x128xf32>
      %c0_15 = arith.constant 0 : index
      %c0_16 = arith.constant 0 : index
      %19 = vector.load %arg6[%c0_15, %c0_16] : memref<1x128xf32, #tpu.memory_space<vmem>>, vector<1x128xf32>
      %20 = vector.broadcast %19 : vector<1x128xf32> to vector<112x128xf32>
      %21 = arith.addf %18, %20 : vector<112x128xf32>
      %cst_17 = arith.constant 1.000000e-01 : f32
      %22 = vector.broadcast %cst_17 : f32 to vector<112x128xf32>
      %23 = arith.mulf %22, %21 : vector<112x128xf32>
      %24 = arith.maximumf %21, %23 : vector<112x128xf32>
      %25 = arith.truncf %24 : vector<112x128xf32> to vector<112x128xbf16>
      %c0_18 = arith.constant 0 : index
      %c0_19 = arith.constant 0 : index
      %c0_20 = arith.constant 0 : index
      %c0_21 = arith.constant 0 : index
      %26 = vector.load %arg7[%c0_18, %c0_19, %c0_20, %c0_21] : memref<1x1x112x128xbf16, #tpu.memory_space<vmem>>, vector<1x1x112x128xbf16>
      %27 = vector.shape_cast %26 : vector<1x1x112x128xbf16> to vector<112x128xbf16>
      %28 = vector.shape_cast %25 : vector<112x128xbf16> to vector<1x1x112x128xbf16>
      tpu.vector_store %arg7[%c0_18, %c0_19, %c0_20, %c0_21], %28 {strides = array<i32>} : memref<1x1x112x128xbf16, #tpu.memory_space<vmem>>, vector<1x1x112x128xbf16>,
    } else {
    }
    return
  }
  func.func @transform_0(%arg0: i32, %arg1: i32, %arg2: i32) -> (i32, i32, i32, i32) {
    %c1_i32 = arith.constant 1 : i32
    %0 = arith.muli %arg1, %c1_i32 : i32
    %1 = arith.addi %0, %arg2 : i32
    %c0_i32 = arith.constant 0 : i32
    %c0_i32_0 = arith.constant 0 : i32
    %c0_i32_1 = arith.constant 0 : i32
    return %arg0, %1, %c0_i32, %c0_i32_0 : i32, i32, i32, i32
  }
  func.func @transform_1(%arg0: i32, %arg1: i32, %arg2: i32) -> (i32, i32, i32) {
    %c0_i32 = arith.constant 0 : i32
    %c0_i32_0 = arith.constant 0 : i32
    %c0_i32_1 = arith.constant 0 : i32
    %c0_i32_2 = arith.constant 0 : i32
    return %c0_i32, %c0_i32_0, %c0_i32_1 : i32, i32, i32
  }
  func.func @transform_2(%arg0: i32, %arg1: i32, %arg2: i32) -> (i32, i32) {
    %c0_i32 = arith.constant 0 : i32
    %c0_i32_0 = arith.constant 0 : i32
    %c0_i32_1 = arith.constant 0 : i32
    return %c0_i32, %c0_i32_0 : i32, i32
  }
  func.func @transform_3(%arg0: i32, %arg1: i32, %arg2: i32) -> (i32, i32) {
    %c0_i32 = arith.constant 0 : i32
    %c0_i32_0 = arith.constant 0 : i32
    %c0_i32_1 = arith.constant 0 : i32
    return %c0_i32, %c0_i32_0 : i32, i32
  }
  func.func @transform_4(%arg0: i32, %arg1: i32, %arg2: i32) -> (i32, i32, i32, i32) {
    %c0_i32 = arith.constant 0 : i32
    %c0_i32_0 = arith.constant 0 : i32
    %c0_i32_1 = arith.constant 0 : i32
    return %arg0, %arg1, %c0_i32, %c0_i32_0 : i32, i32, i32, i32
  }
}

module attributes {stable_mosaic.version = 11 : i64} {
  func.func @maxpool_window_kernel(%arg0: i32, %arg1: memref<8x128x128xbf16, #tpu.memory_space<vmem>>, %arg2: memref<128x128xbf16, #tpu.memory_space<vmem>>) attributes {dimension_semantics = [#tpu.dimension_semantics<parallel>], iteration_bounds = array<i64: 1>, scalar_prefetch = 0 : i64, scratch_operands = 0 : i64, tpu.core_type = #tpu.core_type<tc>, window_params = [{transform_indices = @transform_0, window_bounds = array<i64: 8, 128, 128>}, {transform_indices = @transform_1, window_bounds = array<i64: 128, 128>}]} {
    %c0 = arith.constant 0 : index
    %c0_0 = arith.constant 0 : index
    %c0_1 = arith.constant 0 : index
    %0 = vector.load %arg1[%c0, %c0_0, %c0_1] : memref<8x128x128xbf16, #tpu.memory_space<vmem>>, vector<1x128x128xbf16>
    %1 = vector.shape_cast %0 : vector<1x128x128xbf16> to vector<128x128xbf16>
    %c1 = arith.constant 1 : index
    %c0_2 = arith.constant 0 : index
    %c0_3 = arith.constant 0 : index
    %2 = vector.load %arg1[%c1, %c0_2, %c0_3] : memref<8x128x128xbf16, #tpu.memory_space<vmem>>, vector<1x128x128xbf16>
    %3 = vector.shape_cast %2 : vector<1x128x128xbf16> to vector<128x128xbf16>
    %4 = arith.maximumf %1, %3 : vector<128x128xbf16>
    %c2 = arith.constant 2 : index
    %c0_4 = arith.constant 0 : index
    %c0_5 = arith.constant 0 : index
    %5 = vector.load %arg1[%c2, %c0_4, %c0_5] : memref<8x128x128xbf16, #tpu.memory_space<vmem>>, vector<1x128x128xbf16>
    %6 = vector.shape_cast %5 : vector<1x128x128xbf16> to vector<128x128xbf16>
    %7 = arith.maximumf %4, %6 : vector<128x128xbf16>
    %c3 = arith.constant 3 : index
    %c0_6 = arith.constant 0 : index
    %c0_7 = arith.constant 0 : index
    %8 = vector.load %arg1[%c3, %c0_6, %c0_7] : memref<8x128x128xbf16, #tpu.memory_space<vmem>>, vector<1x128x128xbf16>
    %9 = vector.shape_cast %8 : vector<1x128x128xbf16> to vector<128x128xbf16>
    %10 = arith.maximumf %7, %9 : vector<128x128xbf16>
    %c4 = arith.constant 4 : index
    %c0_8 = arith.constant 0 : index
    %c0_9 = arith.constant 0 : index
    %11 = vector.load %arg1[%c4, %c0_8, %c0_9] : memref<8x128x128xbf16, #tpu.memory_space<vmem>>, vector<1x128x128xbf16>
    %12 = vector.shape_cast %11 : vector<1x128x128xbf16> to vector<128x128xbf16>
    %13 = arith.maximumf %10, %12 : vector<128x128xbf16>
    %c5 = arith.constant 5 : index
    %c0_10 = arith.constant 0 : index
    %c0_11 = arith.constant 0 : index
    %14 = vector.load %arg1[%c5, %c0_10, %c0_11] : memref<8x128x128xbf16, #tpu.memory_space<vmem>>, vector<1x128x128xbf16>
    %15 = vector.shape_cast %14 : vector<1x128x128xbf16> to vector<128x128xbf16>
    %16 = arith.maximumf %13, %15 : vector<128x128xbf16>
    %c6 = arith.constant 6 : index
    %c0_12 = arith.constant 0 : index
    %c0_13 = arith.constant 0 : index
    %17 = vector.load %arg1[%c6, %c0_12, %c0_13] : memref<8x128x128xbf16, #tpu.memory_space<vmem>>, vector<1x128x128xbf16>
    %18 = vector.shape_cast %17 : vector<1x128x128xbf16> to vector<128x128xbf16>
    %19 = arith.maximumf %16, %18 : vector<128x128xbf16>
    %c7 = arith.constant 7 : index
    %c0_14 = arith.constant 0 : index
    %c0_15 = arith.constant 0 : index
    %20 = vector.load %arg1[%c7, %c0_14, %c0_15] : memref<8x128x128xbf16, #tpu.memory_space<vmem>>, vector<1x128x128xbf16>
    %21 = vector.shape_cast %20 : vector<1x128x128xbf16> to vector<128x128xbf16>
    %22 = arith.maximumf %19, %21 : vector<128x128xbf16>
    %c0_16 = arith.constant 0 : index
    %c0_17 = arith.constant 0 : index
    %23 = vector.load %arg2[%c0_16, %c0_17] : memref<128x128xbf16, #tpu.memory_space<vmem>>, vector<128x128xbf16>
    tpu.vector_store %arg2[%c0_16, %c0_17], %22 {strides = array<i32>} : memref<128x128xbf16, #tpu.memory_space<vmem>>, vector<128x128xbf16>,
    return
  }
  func.func @transform_0(%arg0: i32) -> (i32, i32, i32) {
    %c0_i32 = arith.constant 0 : i32
    %c0_i32_0 = arith.constant 0 : i32
    %c0_i32_1 = arith.constant 0 : i32
    return %c0_i32, %arg0, %c0_i32_0 : i32, i32, i32
  }
  func.func @transform_1(%arg0: i32) -> (i32, i32) {
    %c0_i32 = arith.constant 0 : i32
    %c0_i32_0 = arith.constant 0 : i32
    return %arg0, %c0_i32 : i32, i32
  }
}

module attributes {stable_mosaic.version = 11 : i64} {
  func.func @conv_tap_accum_kernel(%arg0: i32, %arg1: i32, %arg2: i32, %arg3: memref<1x1x16x480xbf16, #tpu.memory_space<vmem>>, %arg4: memref<5x480x128xbf16, #tpu.memory_space<vmem>>, %arg5: memref<1x128xf32, #tpu.memory_space<vmem>>, %arg6: memref<1x128xf32, #tpu.memory_space<vmem>>, %arg7: memref<1x1x16x128xbf16, #tpu.memory_space<vmem>>, %arg8: memref<16x128xf32, #tpu.memory_space<vmem>>) attributes {dimension_semantics = [#tpu.dimension_semantics<parallel>, #tpu.dimension_semantics<parallel>, #tpu.dimension_semantics<arbitrary>], iteration_bounds = array<i64: 2, 5, 5>, scalar_prefetch = 0 : i64, scratch_operands = 1 : i64, tpu.core_type = #tpu.core_type<tc>, window_params = [{transform_indices = @transform_0, window_bounds = array<i64: 1, 1, 16, 480>}, {pipeline_mode = #tpu.pipeline_mode<synchronous>, transform_indices = @transform_1, window_bounds = array<i64: 5, 480, 128>}, {pipeline_mode = #tpu.pipeline_mode<synchronous>, transform_indices = @transform_2, window_bounds = array<i64: 1, 128>}, {pipeline_mode = #tpu.pipeline_mode<synchronous>, transform_indices = @transform_3, window_bounds = array<i64: 1, 128>}, {transform_indices = @transform_4, window_bounds = array<i64: 1, 1, 16, 128>}]} {
    %c0_i32 = arith.constant 0 : i32
    %0 = arith.cmpi eq, %arg2, %c0_i32 : i32
    %1 = arith.extui %0 : i1 to i32
    %c0_i32_0 = arith.constant 0 : i32
    %2 = arith.cmpi ne, %1, %c0_i32_0 : i32
    scf.if %2 {
      %cst_11 = arith.constant 0.000000e+00 : f32
      %15 = vector.broadcast %cst_11 : f32 to vector<16x128xf32>
      %c0_12 = arith.constant 0 : index
      %c0_13 = arith.constant 0 : index
      %16 = vector.load %arg8[%c0_12, %c0_13] : memref<16x128xf32, #tpu.memory_space<vmem>>, vector<16x128xf32>
      tpu.vector_store %arg8[%c0_12, %c0_13], %15 {strides = array<i32>} : memref<16x128xf32, #tpu.memory_space<vmem>>, vector<16x128xf32>,
    } else {
    }
    %c0 = arith.constant 0 : index
    %c0_1 = arith.constant 0 : index
    %3 = vector.load %arg8[%c0, %c0_1] : memref<16x128xf32, #tpu.memory_space<vmem>>, vector<16x128xf32>
    %c0_2 = arith.constant 0 : index
    %c0_3 = arith.constant 0 : index
    %c0_4 = arith.constant 0 : index
    %c0_5 = arith.constant 0 : index
    %4 = vector.load %arg3[%c0_2, %c0_3, %c0_4, %c0_5] : memref<1x1x16x480xbf16, #tpu.memory_space<vmem>>, vector<1x1x16x480xbf16>
    %5 = vector.shape_cast %4 : vector<1x1x16x480xbf16> to vector<16x480xbf16>
    %6 = arith.index_cast %arg2 : i32 to index
    %c0_6 = arith.constant 0 : index
    %c0_7 = arith.constant 0 : index
    %7 = vector.load %arg4[%6, %c0_6, %c0_7] : memref<5x480x128xbf16, #tpu.memory_space<vmem>>, vector<1x480x128xbf16>
    %8 = vector.shape_cast %7 : vector<1x480x128xbf16> to vector<480x128xbf16>
    %cst = arith.constant dense<0.000000e+00> : vector<16x128xf32>
    %9 = tpu.matmul %5, %8, %cst {dimension_numbers = #tpu.dot_dimension_numbers<[1], [0], [0], [1], [0, 0, 1, 1], [], []>} : vector<16x480xbf16>, vector<480x128xbf16>, vector<16x128xf32> -> vector<16x128xf32>
    %10 = arith.addf %3, %9 : vector<16x128xf32>
    %c0_8 = arith.constant 0 : index
    %c0_9 = arith.constant 0 : index
    %11 = vector.load %arg8[%c0_8, %c0_9] : memref<16x128xf32, #tpu.memory_space<vmem>>, vector<16x128xf32>
    tpu.vector_store %arg8[%c0_8, %c0_9], %10 {strides = array<i32>} : memref<16x128xf32, #tpu.memory_space<vmem>>, vector<16x128xf32>,
    %c4_i32 = arith.constant 4 : i32
    %12 = arith.cmpi eq, %arg2, %c4_i32 : i32
    %13 = arith.extui %12 : i1 to i32
    %c0_i32_10 = arith.constant 0 : i32
    %14 = arith.cmpi ne, %13, %c0_i32_10 : i32
    scf.if %14 {
      %c0_11 = arith.constant 0 : index
      %c0_12 = arith.constant 0 : index
      %15 = vector.load %arg8[%c0_11, %c0_12] : memref<16x128xf32, #tpu.memory_space<vmem>>, vector<16x128xf32>
      %c0_13 = arith.constant 0 : index
      %c0_14 = arith.constant 0 : index
      %16 = vector.load %arg5[%c0_13, %c0_14] : memref<1x128xf32, #tpu.memory_space<vmem>>, vector<1x128xf32>
      %17 = vector.broadcast %16 : vector<1x128xf32> to vector<16x128xf32>
      %18 = arith.mulf %15, %17 : vector<16x128xf32>
      %c0_15 = arith.constant 0 : index
      %c0_16 = arith.constant 0 : index
      %19 = vector.load %arg6[%c0_15, %c0_16] : memref<1x128xf32, #tpu.memory_space<vmem>>, vector<1x128xf32>
      %20 = vector.broadcast %19 : vector<1x128xf32> to vector<16x128xf32>
      %21 = arith.addf %18, %20 : vector<16x128xf32>
      %cst_17 = arith.constant 1.000000e-01 : f32
      %22 = vector.broadcast %cst_17 : f32 to vector<16x128xf32>
      %23 = arith.mulf %22, %21 : vector<16x128xf32>
      %24 = arith.maximumf %21, %23 : vector<16x128xf32>
      %25 = arith.truncf %24 : vector<16x128xf32> to vector<16x128xbf16>
      %c0_18 = arith.constant 0 : index
      %c0_19 = arith.constant 0 : index
      %c0_20 = arith.constant 0 : index
      %c0_21 = arith.constant 0 : index
      %26 = vector.load %arg7[%c0_18, %c0_19, %c0_20, %c0_21] : memref<1x1x16x128xbf16, #tpu.memory_space<vmem>>, vector<1x1x16x128xbf16>
      %27 = vector.shape_cast %26 : vector<1x1x16x128xbf16> to vector<16x128xbf16>
      %28 = vector.shape_cast %25 : vector<16x128xbf16> to vector<1x1x16x128xbf16>
      tpu.vector_store %arg7[%c0_18, %c0_19, %c0_20, %c0_21], %28 {strides = array<i32>} : memref<1x1x16x128xbf16, #tpu.memory_space<vmem>>, vector<1x1x16x128xbf16>,
    } else {
    }
    return
  }
  func.func @transform_0(%arg0: i32, %arg1: i32, %arg2: i32) -> (i32, i32, i32, i32) {
    %c1_i32 = arith.constant 1 : i32
    %0 = arith.muli %arg1, %c1_i32 : i32
    %1 = arith.addi %0, %arg2 : i32
    %c0_i32 = arith.constant 0 : i32
    %c0_i32_0 = arith.constant 0 : i32
    %c0_i32_1 = arith.constant 0 : i32
    return %arg0, %1, %c0_i32, %c0_i32_0 : i32, i32, i32, i32
  }
  func.func @transform_1(%arg0: i32, %arg1: i32, %arg2: i32) -> (i32, i32, i32) {
    %c0_i32 = arith.constant 0 : i32
    %c0_i32_0 = arith.constant 0 : i32
    %c0_i32_1 = arith.constant 0 : i32
    %c0_i32_2 = arith.constant 0 : i32
    return %c0_i32, %c0_i32_0, %c0_i32_1 : i32, i32, i32
  }
  func.func @transform_2(%arg0: i32, %arg1: i32, %arg2: i32) -> (i32, i32) {
    %c0_i32 = arith.constant 0 : i32
    %c0_i32_0 = arith.constant 0 : i32
    %c0_i32_1 = arith.constant 0 : i32
    return %c0_i32, %c0_i32_0 : i32, i32
  }
  func.func @transform_3(%arg0: i32, %arg1: i32, %arg2: i32) -> (i32, i32) {
    %c0_i32 = arith.constant 0 : i32
    %c0_i32_0 = arith.constant 0 : i32
    %c0_i32_1 = arith.constant 0 : i32
    return %c0_i32, %c0_i32_0 : i32, i32
  }
  func.func @transform_4(%arg0: i32, %arg1: i32, %arg2: i32) -> (i32, i32, i32, i32) {
    %c0_i32 = arith.constant 0 : i32
    %c0_i32_0 = arith.constant 0 : i32
    %c0_i32_1 = arith.constant 0 : i32
    return %arg0, %arg1, %c0_i32, %c0_i32_0 : i32, i32, i32, i32
  }
}

module attributes {stable_mosaic.version = 11 : i64} {
  func.func @conv_tap_accum_kernel(%arg0: i32, %arg1: i32, %arg2: i32, %arg3: memref<1x1x16x320xbf16, #tpu.memory_space<vmem>>, %arg4: memref<5x320x128xbf16, #tpu.memory_space<vmem>>, %arg5: memref<1x128xf32, #tpu.memory_space<vmem>>, %arg6: memref<1x128xf32, #tpu.memory_space<vmem>>, %arg7: memref<1x1x16x128xbf16, #tpu.memory_space<vmem>>, %arg8: memref<16x128xf32, #tpu.memory_space<vmem>>) attributes {dimension_semantics = [#tpu.dimension_semantics<parallel>, #tpu.dimension_semantics<parallel>, #tpu.dimension_semantics<arbitrary>], iteration_bounds = array<i64: 2, 1, 5>, scalar_prefetch = 0 : i64, scratch_operands = 1 : i64, tpu.core_type = #tpu.core_type<tc>, window_params = [{transform_indices = @transform_0, window_bounds = array<i64: 1, 1, 16, 320>}, {pipeline_mode = #tpu.pipeline_mode<synchronous>, transform_indices = @transform_1, window_bounds = array<i64: 5, 320, 128>}, {pipeline_mode = #tpu.pipeline_mode<synchronous>, transform_indices = @transform_2, window_bounds = array<i64: 1, 128>}, {pipeline_mode = #tpu.pipeline_mode<synchronous>, transform_indices = @transform_3, window_bounds = array<i64: 1, 128>}, {transform_indices = @transform_4, window_bounds = array<i64: 1, 1, 16, 128>}]} {
    %c0_i32 = arith.constant 0 : i32
    %0 = arith.cmpi eq, %arg2, %c0_i32 : i32
    %1 = arith.extui %0 : i1 to i32
    %c0_i32_0 = arith.constant 0 : i32
    %2 = arith.cmpi ne, %1, %c0_i32_0 : i32
    scf.if %2 {
      %cst_11 = arith.constant 0.000000e+00 : f32
      %15 = vector.broadcast %cst_11 : f32 to vector<16x128xf32>
      %c0_12 = arith.constant 0 : index
      %c0_13 = arith.constant 0 : index
      %16 = vector.load %arg8[%c0_12, %c0_13] : memref<16x128xf32, #tpu.memory_space<vmem>>, vector<16x128xf32>
      tpu.vector_store %arg8[%c0_12, %c0_13], %15 {strides = array<i32>} : memref<16x128xf32, #tpu.memory_space<vmem>>, vector<16x128xf32>,
    } else {
    }
    %c0 = arith.constant 0 : index
    %c0_1 = arith.constant 0 : index
    %3 = vector.load %arg8[%c0, %c0_1] : memref<16x128xf32, #tpu.memory_space<vmem>>, vector<16x128xf32>
    %c0_2 = arith.constant 0 : index
    %c0_3 = arith.constant 0 : index
    %c0_4 = arith.constant 0 : index
    %c0_5 = arith.constant 0 : index
    %4 = vector.load %arg3[%c0_2, %c0_3, %c0_4, %c0_5] : memref<1x1x16x320xbf16, #tpu.memory_space<vmem>>, vector<1x1x16x320xbf16>
    %5 = vector.shape_cast %4 : vector<1x1x16x320xbf16> to vector<16x320xbf16>
    %6 = arith.index_cast %arg2 : i32 to index
    %c0_6 = arith.constant 0 : index
    %c0_7 = arith.constant 0 : index
    %7 = vector.load %arg4[%6, %c0_6, %c0_7] : memref<5x320x128xbf16, #tpu.memory_space<vmem>>, vector<1x320x128xbf16>
    %8 = vector.shape_cast %7 : vector<1x320x128xbf16> to vector<320x128xbf16>
    %cst = arith.constant dense<0.000000e+00> : vector<16x128xf32>
    %9 = tpu.matmul %5, %8, %cst {dimension_numbers = #tpu.dot_dimension_numbers<[1], [0], [0], [1], [0, 0, 1, 1], [], []>} : vector<16x320xbf16>, vector<320x128xbf16>, vector<16x128xf32> -> vector<16x128xf32>
    %10 = arith.addf %3, %9 : vector<16x128xf32>
    %c0_8 = arith.constant 0 : index
    %c0_9 = arith.constant 0 : index
    %11 = vector.load %arg8[%c0_8, %c0_9] : memref<16x128xf32, #tpu.memory_space<vmem>>, vector<16x128xf32>
    tpu.vector_store %arg8[%c0_8, %c0_9], %10 {strides = array<i32>} : memref<16x128xf32, #tpu.memory_space<vmem>>, vector<16x128xf32>,
    %c4_i32 = arith.constant 4 : i32
    %12 = arith.cmpi eq, %arg2, %c4_i32 : i32
    %13 = arith.extui %12 : i1 to i32
    %c0_i32_10 = arith.constant 0 : i32
    %14 = arith.cmpi ne, %13, %c0_i32_10 : i32
    scf.if %14 {
      %c0_11 = arith.constant 0 : index
      %c0_12 = arith.constant 0 : index
      %15 = vector.load %arg8[%c0_11, %c0_12] : memref<16x128xf32, #tpu.memory_space<vmem>>, vector<16x128xf32>
      %c0_13 = arith.constant 0 : index
      %c0_14 = arith.constant 0 : index
      %16 = vector.load %arg5[%c0_13, %c0_14] : memref<1x128xf32, #tpu.memory_space<vmem>>, vector<1x128xf32>
      %17 = vector.broadcast %16 : vector<1x128xf32> to vector<16x128xf32>
      %18 = arith.mulf %15, %17 : vector<16x128xf32>
      %c0_15 = arith.constant 0 : index
      %c0_16 = arith.constant 0 : index
      %19 = vector.load %arg6[%c0_15, %c0_16] : memref<1x128xf32, #tpu.memory_space<vmem>>, vector<1x128xf32>
      %20 = vector.broadcast %19 : vector<1x128xf32> to vector<16x128xf32>
      %21 = arith.addf %18, %20 : vector<16x128xf32>
      %cst_17 = arith.constant 1.000000e-01 : f32
      %22 = vector.broadcast %cst_17 : f32 to vector<16x128xf32>
      %23 = arith.mulf %22, %21 : vector<16x128xf32>
      %24 = arith.maximumf %21, %23 : vector<16x128xf32>
      %25 = arith.truncf %24 : vector<16x128xf32> to vector<16x128xbf16>
      %c0_18 = arith.constant 0 : index
      %c0_19 = arith.constant 0 : index
      %c0_20 = arith.constant 0 : index
      %c0_21 = arith.constant 0 : index
      %26 = vector.load %arg7[%c0_18, %c0_19, %c0_20, %c0_21] : memref<1x1x16x128xbf16, #tpu.memory_space<vmem>>, vector<1x1x16x128xbf16>
      %27 = vector.shape_cast %26 : vector<1x1x16x128xbf16> to vector<16x128xbf16>
      %28 = vector.shape_cast %25 : vector<16x128xbf16> to vector<1x1x16x128xbf16>
      tpu.vector_store %arg7[%c0_18, %c0_19, %c0_20, %c0_21], %28 {strides = array<i32>} : memref<1x1x16x128xbf16, #tpu.memory_space<vmem>>, vector<1x1x16x128xbf16>,
    } else {
    }
    return
  }
  func.func @transform_0(%arg0: i32, %arg1: i32, %arg2: i32) -> (i32, i32, i32, i32) {
    %c1_i32 = arith.constant 1 : i32
    %0 = arith.muli %arg1, %c1_i32 : i32
    %1 = arith.addi %0, %arg2 : i32
    %c0_i32 = arith.constant 0 : i32
    %c0_i32_0 = arith.constant 0 : i32
    %c0_i32_1 = arith.constant 0 : i32
    return %arg0, %1, %c0_i32, %c0_i32_0 : i32, i32, i32, i32
  }
  func.func @transform_1(%arg0: i32, %arg1: i32, %arg2: i32) -> (i32, i32, i32) {
    %c0_i32 = arith.constant 0 : i32
    %c0_i32_0 = arith.constant 0 : i32
    %c0_i32_1 = arith.constant 0 : i32
    %c0_i32_2 = arith.constant 0 : i32
    return %c0_i32, %c0_i32_0, %c0_i32_1 : i32, i32, i32
  }
  func.func @transform_2(%arg0: i32, %arg1: i32, %arg2: i32) -> (i32, i32) {
    %c0_i32 = arith.constant 0 : i32
    %c0_i32_0 = arith.constant 0 : i32
    %c0_i32_1 = arith.constant 0 : i32
    return %c0_i32, %c0_i32_0 : i32, i32
  }
  func.func @transform_3(%arg0: i32, %arg1: i32, %arg2: i32) -> (i32, i32) {
    %c0_i32 = arith.constant 0 : i32
    %c0_i32_0 = arith.constant 0 : i32
    %c0_i32_1 = arith.constant 0 : i32
    return %c0_i32, %c0_i32_0 : i32, i32
  }
  func.func @transform_4(%arg0: i32, %arg1: i32, %arg2: i32) -> (i32, i32, i32, i32) {
    %c0_i32 = arith.constant 0 : i32
    %c0_i32_0 = arith.constant 0 : i32
    %c0_i32_1 = arith.constant 0 : i32
    return %arg0, %arg1, %c0_i32, %c0_i32_0 : i32, i32, i32, i32
  }
}

module attributes {stable_mosaic.version = 11 : i64} {
  func.func @matmul_affine_lrelu_kernel(%arg0: i32, %arg1: i32, %arg2: i32, %arg3: memref<8x128xbf16, #tpu.memory_space<vmem>>, %arg4: memref<128x256xbf16, #tpu.memory_space<vmem>>, %arg5: memref<1x256xf32, #tpu.memory_space<vmem>>, %arg6: memref<1x256xf32, #tpu.memory_space<vmem>>, %arg7: memref<8x256xf32, #tpu.memory_space<vmem>>, %arg8: memref<8x256xf32, #tpu.memory_space<vmem>>) attributes {dimension_semantics = [#tpu.dimension_semantics<parallel>, #tpu.dimension_semantics<parallel>, #tpu.dimension_semantics<arbitrary>], iteration_bounds = array<i64: 1, 1, 1>, scalar_prefetch = 0 : i64, scratch_operands = 1 : i64, tpu.core_type = #tpu.core_type<tc>, window_params = [{transform_indices = @transform_0, window_bounds = array<i64: 8, 128>}, {transform_indices = @transform_1, window_bounds = array<i64: 128, 256>}, {transform_indices = @transform_2, window_bounds = array<i64: 1, 256>}, {transform_indices = @transform_3, window_bounds = array<i64: 1, 256>}, {transform_indices = @transform_4, window_bounds = array<i64: 8, 256>}]} {
    %c0_i32 = arith.constant 0 : i32
    %0 = arith.cmpi eq, %arg2, %c0_i32 : i32
    %1 = arith.extui %0 : i1 to i32
    %c0_i32_0 = arith.constant 0 : i32
    %2 = arith.cmpi ne, %1, %c0_i32_0 : i32
    scf.if %2 {
      %cst_10 = arith.constant 0.000000e+00 : f32
      %12 = vector.broadcast %cst_10 : f32 to vector<8x256xf32>
      %c0_11 = arith.constant 0 : index
      %c0_12 = arith.constant 0 : index
      %13 = vector.load %arg8[%c0_11, %c0_12] : memref<8x256xf32, #tpu.memory_space<vmem>>, vector<8x256xf32>
      tpu.vector_store %arg8[%c0_11, %c0_12], %12 {strides = array<i32>} : memref<8x256xf32, #tpu.memory_space<vmem>>, vector<8x256xf32>,
    } else {
    }
    %c0 = arith.constant 0 : index
    %c0_1 = arith.constant 0 : index
    %3 = vector.load %arg8[%c0, %c0_1] : memref<8x256xf32, #tpu.memory_space<vmem>>, vector<8x256xf32>
    %c0_2 = arith.constant 0 : index
    %c0_3 = arith.constant 0 : index
    %4 = vector.load %arg3[%c0_2, %c0_3] : memref<8x128xbf16, #tpu.memory_space<vmem>>, vector<8x128xbf16>
    %c0_4 = arith.constant 0 : index
    %c0_5 = arith.constant 0 : index
    %5 = vector.load %arg4[%c0_4, %c0_5] : memref<128x256xbf16, #tpu.memory_space<vmem>>, vector<128x256xbf16>
    %cst = arith.constant dense<0.000000e+00> : vector<8x256xf32>
    %6 = tpu.matmul %4, %5, %cst {dimension_numbers = #tpu.dot_dimension_numbers<[1], [0], [0], [1], [0, 0, 1, 1], [], []>} : vector<8x128xbf16>, vector<128x256xbf16>, vector<8x256xf32> -> vector<8x256xf32>
    %7 = arith.addf %3, %6 : vector<8x256xf32>
    %c0_6 = arith.constant 0 : index
    %c0_7 = arith.constant 0 : index
    %8 = vector.load %arg8[%c0_6, %c0_7] : memref<8x256xf32, #tpu.memory_space<vmem>>, vector<8x256xf32>
    tpu.vector_store %arg8[%c0_6, %c0_7], %7 {strides = array<i32>} : memref<8x256xf32, #tpu.memory_space<vmem>>, vector<8x256xf32>,
    %c0_i32_8 = arith.constant 0 : i32
    %9 = arith.cmpi eq, %arg2, %c0_i32_8 : i32
    %10 = arith.extui %9 : i1 to i32
    %c0_i32_9 = arith.constant 0 : i32
    %11 = arith.cmpi ne, %10, %c0_i32_9 : i32
    scf.if %11 {
      %c0_10 = arith.constant 0 : index
      %c0_11 = arith.constant 0 : index
      %12 = vector.load %arg8[%c0_10, %c0_11] : memref<8x256xf32, #tpu.memory_space<vmem>>, vector<8x256xf32>
      %c0_12 = arith.constant 0 : index
      %c0_13 = arith.constant 0 : index
      %13 = vector.load %arg5[%c0_12, %c0_13] : memref<1x256xf32, #tpu.memory_space<vmem>>, vector<1x256xf32>
      %14 = vector.broadcast %13 : vector<1x256xf32> to vector<8x256xf32>
      %15 = arith.mulf %12, %14 : vector<8x256xf32>
      %c0_14 = arith.constant 0 : index
      %c0_15 = arith.constant 0 : index
      %16 = vector.load %arg6[%c0_14, %c0_15] : memref<1x256xf32, #tpu.memory_space<vmem>>, vector<1x256xf32>
      %17 = vector.broadcast %16 : vector<1x256xf32> to vector<8x256xf32>
      %18 = arith.addf %15, %17 : vector<8x256xf32>
      %cst_16 = arith.constant 0.00999999977 : f32
      %19 = vector.broadcast %cst_16 : f32 to vector<8x256xf32>
      %20 = arith.mulf %19, %18 : vector<8x256xf32>
      %21 = arith.maximumf %18, %20 : vector<8x256xf32>
      %c0_17 = arith.constant 0 : index
      %c0_18 = arith.constant 0 : index
      %22 = vector.load %arg7[%c0_17, %c0_18] : memref<8x256xf32, #tpu.memory_space<vmem>>, vector<8x256xf32>
      tpu.vector_store %arg7[%c0_17, %c0_18], %21 {strides = array<i32>} : memref<8x256xf32, #tpu.memory_space<vmem>>, vector<8x256xf32>,
    } else {
    }
    return
  }
  func.func @transform_0(%arg0: i32, %arg1: i32, %arg2: i32) -> (i32, i32) {
    %c0_i32 = arith.constant 0 : i32
    return %arg0, %arg2 : i32, i32
  }
  func.func @transform_1(%arg0: i32, %arg1: i32, %arg2: i32) -> (i32, i32) {
    %c0_i32 = arith.constant 0 : i32
    return %arg2, %arg1 : i32, i32
  }
  func.func @transform_2(%arg0: i32, %arg1: i32, %arg2: i32) -> (i32, i32) {
    %c0_i32 = arith.constant 0 : i32
    %c0_i32_0 = arith.constant 0 : i32
    return %c0_i32, %arg1 : i32, i32
  }
  func.func @transform_3(%arg0: i32, %arg1: i32, %arg2: i32) -> (i32, i32) {
    %c0_i32 = arith.constant 0 : i32
    %c0_i32_0 = arith.constant 0 : i32
    return %c0_i32, %arg1 : i32, i32
  }
  func.func @transform_4(%arg0: i32, %arg1: i32, %arg2: i32) -> (i32, i32) {
    %c0_i32 = arith.constant 0 : i32
    return %arg0, %arg1 : i32, i32
  }
}

</mosaic_0001>

<llo_original>
// kernel: _lambda_.6
$region0: #{_lambda_.6}
  #allocation0 [shape = 'u32[]', space=smem, size = 0x4, offset = 0x4, fixed_abs, tag = 'smem constant byte address 0x4 - core index']
  #allocation1 [shape = 'u32[144,128]{1,0:T(1,128)}', space=vmem, size = 0x12000, scoped, tag = 'internal scratch']
  #allocation2 [shape = 'f32[176,128]{1,0:T(8,128)}', space=vmem, size = 0x16000, scoped, tag = 'scratch operand']
  %s0 = inlined_call_operand.vmem [shape: bf16[2,49,176,84], index: 0, kind: input, shape index: {}]
  %s1 = inlined_call_operand.vmem [shape: bf16[7,84,128], index: 1, kind: input, shape index: {}]
  %s2 = inlined_call_operand.vmem [shape: f32[1,128], index: 2, kind: input, shape index: {}]
  %s3 = inlined_call_operand.vmem [shape: f32[1,128], index: 3, kind: input, shape index: {}]
  %s4 = inlined_call_operand.vmem [shape: bf16[2,22,176,128], index: 4, kind: output, shape index: {}]
  %s5 = sld [smem:[#allocation0]]
  $region57: #{_lambda_.6} parent=0
    _
  %s7 = ssub.s32 1, %s5
  %s8 = scalar_select 0, %s7, %s5
  loop: start=0, step=1, limit=310
  $region2: #{_lambda_.6} parent=0 // loop_pre_header
    _
  $region3: #{_lambda_.6} parent=0 // loop_header
    %s10 = sphi 0, %s14
    %p11 = scmp.ge.s32.totalorder %s10, 310
    %s17 = sphi 0, %s36
    %s18 = sphi 0, %s32
    %s19 = sphi 0, %s28
    %s20 = sphi 0, %s17
    %s21 = sphi 0, %s18
    %s22 = sphi 0, %s19
    %s23 = sphi 0, %s20
    %s24 = sphi 0, %s21
    %s25 = sphi 0, %s22
    %s45 = sphi 0, %s47
    %s48 = sphi 0, %s45
    %s49 = sphi 0, %s48
    %s65 = sphi 0, %s49
    %s69 = sphi 0, %s69
    %s71 = sphi 0, %s69
    %s72 = sphi 0, %s71
    %s86 = sphi 0, %s72
    %s90 = sphi 0, %s90
    %s92 = sphi 0, %s90
    %s93 = sphi 0, %s92
    %s107 = sphi 0, %s93
    %s111 = sphi 0, %s111
    %s113 = sphi 0, %s111
    %s114 = sphi 0, %s113
    %s128 = sphi 0, %s114
    %s136 = sphi 0, %s138
    %s139 = sphi 0, %s136
    %s140 = sphi 0, %s139
    %s156 = sphi 0, %s140
  $region4: #{_lambda_.6} parent=0 // loop_header_branch
    %13 = sbr.rel (%p11) target = $region8
  $region5: #{_lambda_.6} parent=0 // loop_body
    %s15 = ssub.s32 %s10, 1
    %s16 = ssub.s32 %s10, 2
    %s26 = sadd.s32 1, %s19
    %p27 = scmp.ge.s32.totalorder %s26, 7
    %s28 = scalar_select %p27, 0, %s26
    %s29 = sadd.s32 1, %s18
    %s30 = scalar_select %p27, %s29, %s18
    %p31 = scmp.ge.s32.totalorder %s30, 22
    %s32 = scalar_select %p31, 0, %s30
    %s33 = sadd.s32 1, %s17
    %s34 = scalar_select %p31, %s33, %s17
    %p35 = scmp.ge.s32.totalorder %s34, 2
    %s36 = scalar_select %p35, 0, %s34
    %s37 = smul.u32 %s18, 2
    %s38 = sadd.s32 %s37, %s19
    %s39 = smul.u32 %s32, 2
    %s40 = sadd.s32 %s39, %s28
    %s41 = ssub.s32 %s17, %s36
    %s42 = ssub.s32 %s38, %s40
    %s43 = sor.u32 %s41, %s42
    %p44 = scmp.eq.s32.totalorder %s43, 0
    %s46 = sadd.s32 %s45, 1
    %s47 = scalar_select %p44, %s45, %s46
    %p50 = pneg %p44
    %p51 = scmp.eq.s32.totalorder %s10, 307
    %p52 = por %p50, %p51
    %p53 = scmp.ne.s32.totalorder %s45, %s48
    %p54 = scmp.eq.s32.totalorder %s10, 0
    %p55 = por %p53, %p54
    %p56 = scmp.ne.s32.totalorder %s45, %s48
    %p57 = scmp.eq.s32.totalorder %s15, 307
    %p58 = por %p56, %p57
    %p59 = scmp.ne.s32.totalorder %s48, %s49
    %p60 = scmp.eq.s32.totalorder %s15, 0
    %p61 = por %p59, %p60
    %p62 = scmp.ne.s32.totalorder %s48, %s49
    %p63 = scmp.eq.s32.totalorder %s16, 307
    %p64 = por %p62, %p63
    %p66 = scmp.ne.s32.totalorder %s49, %s65
    %p67 = scmp.eq.s32.totalorder %s16, 0
    %p68 = por %p66, %p67
    %s70 = sadd.s32 %s69, 1
    %p73 = scmp.eq.s32.totalorder %s10, 307
    %p74 = scmp.ne.s32.totalorder %s69, %s71
    %p75 = scmp.eq.s32.totalorder %s10, 0
    %p76 = por %p74, %p75
    %p77 = scmp.ne.s32.totalorder %s69, %s71
    %p78 = scmp.eq.s32.totalorder %s15, 307
    %p79 = por %p77, %p78
    %p80 = scmp.ne.s32.totalorder %s71, %s72
    %p81 = scmp.eq.s32.totalorder %s15, 0
    %p82 = por %p80, %p81
    %p83 = scmp.ne.s32.totalorder %s71, %s72
    %p84 = scmp.eq.s32.totalorder %s16, 307
    %p85 = por %p83, %p84
    %p87 = scmp.ne.s32.totalorder %s72, %s86
    %p88 = scmp.eq.s32.totalorder %s16, 0
    %p89 = por %p87, %p88
    %s91 = sadd.s32 %s90, 1
    %p94 = scmp.eq.s32.totalorder %s10, 307
    %p95 = scmp.ne.s32.totalorder %s90, %s92
    %p96 = scmp.eq.s32.totalorder %s10, 0
    %p97 = por %p95, %p96
    %p98 = scmp.ne.s32.totalorder %s90, %s92
    %p99 = scmp.eq.s32.totalorder %s15, 307
    %p100 = por %p98, %p99
    %p101 = scmp.ne.s32.totalorder %s92, %s93
    %p102 = scmp.eq.s32.totalorder %s15, 0
    %p103 = por %p101, %p102
    %p104 = scmp.ne.s32.totalorder %s92, %s93
    %p105 = scmp.eq.s32.totalorder %s16, 307
    %p106 = por %p104, %p105
    %p108 = scmp.ne.s32.totalorder %s93, %s107
    %p109 = scmp.eq.s32.totalorder %s16, 0
    %p110 = por %p108, %p109
    %s112 = sadd.s32 %s111, 1
    %p115 = scmp.eq.s32.totalorder %s10, 307
    %p116 = scmp.ne.s32.totalorder %s111, %s113
    %p117 = scmp.eq.s32.totalorder %s10, 0
    %p118 = por %p116, %p117
    %p119 = scmp.ne.s32.totalorder %s111, %s113
    %p120 = scmp.eq.s32.totalorder %s15, 307
    %p121 = por %p119, %p120
    %p122 = scmp.ne.s32.totalorder %s113, %s114
    %p123 = scmp.eq.s32.totalorder %s15, 0
    %p124 = por %p122, %p123
    %p125 = scmp.ne.s32.totalorder %s113, %s114
    %p126 = scmp.eq.s32.totalorder %s16, 307
    %p127 = por %p125, %p126
    %p129 = scmp.ne.s32.totalorder %s114, %s128
    %p130 = scmp.eq.s32.totalorder %s16, 0
    %p131 = por %p129, %p130
    %s132 = ssub.s32 %s17, %s36
    %s133 = ssub.s32 %s18, %s32
    %s134 = sor.u32 %s132, %s133
    %p135 = scmp.eq.s32.totalorder %s134, 0
    %s137 = sadd.s32 %s136, 1
    %s138 = scalar_select %p135, %s136, %s137
    %p141 = pneg %p135
    %p142 = scmp.eq.s32.totalorder %s10, 307
    %p143 = por %p141, %p142
    %p144 = scmp.ne.s32.totalorder %s136, %s139
    %p145 = scmp.eq.s32.totalorder %s10, 0
    %p146 = por %p144, %p145
    %p147 = scmp.ne.s32.totalorder %s136, %s139
    %p148 = scmp.eq.s32.totalorder %s15, 307
    %p149 = por %p147, %p148
    %p150 = scmp.ne.s32.totalorder %s139, %s140
    %p151 = scmp.eq.s32.totalorder %s15, 0
    %p152 = por %p150, %p151
    %p153 = scmp.ne.s32.totalorder %s139, %s140
    %p154 = scmp.eq.s32.totalorder %s16, 307
    %p155 = por %p153, %p154
    %p157 = scmp.ne.s32.totalorder %s140, %s156
    %p158 = scmp.eq.s32.totalorder %s16, 0
    %p159 = por %p157, %p158
    %p160 = scmp.le.s32.totalorder 1, %s10
    %p161 = scmp.lt.s32.totalorder %s10, 309
    %p162 = pnand %p160, %p161
    %p163 = pneg %p162
    // Predicated region
    $region9: #{_lambda_.6} parent=5 // pred_check
      _
    $region10: #{_lambda_.6} parent=5 // pred_check_branch
      %165 = sbr.rel (%p162) target = $region12
    $region11: #{_lambda_.6} parent=5 // pred_region
      %s166 = ssub.s32 %s10, 1
      // Predicated region
      $region13: #{_lambda_.6} parent=11 // pred_check
        %p167 = pneg %p82
      $region14: #{_lambda_.6} parent=11 // pred_check_branch
        %169 = sbr.rel (%p167) target = $region16
      $region15: #{_lambda_.6} parent=11 // pred_region
        _
      $region16: #{_lambda_.6} parent=11 // pred_fallthru
        _
      // Predicated region
      $region17: #{_lambda_.6} parent=11 // pred_check
        %p170 = pneg %p103
      $region18: #{_lambda_.6} parent=11 // pred_check_branch
        %172 = sbr.rel (%p170) target = $region20
      $region19: #{_lambda_.6} parent=11 // pred_region
        _
      $region20: #{_lambda_.6} parent=11 // pred_fallthru
        _
      // Predicated region
      $region21: #{_lambda_.6} parent=11 // pred_check
        %p173 = pneg %p124
      $region22: #{_lambda_.6} parent=11 // pred_check_branch
        %175 = sbr.rel (%p173) target = $region24
      $region23: #{_lambda_.6} parent=11 // pred_region
        _
      $region24: #{_lambda_.6} parent=11 // pred_fallthru
        _
    $region12: #{_lambda_.6} parent=5 // pred_fallthru
      _
    %p176 = scmp.lt.s32.totalorder %s10, 308
    // Predicated region
    $region25: #{_lambda_.6} parent=5 // pred_check
      %p177 = pneg %p176
    $region26: #{_lambda_.6} parent=5 // pred_check_branch
      %179 = sbr.rel (%p177) target = $region28
    $region27: #{_lambda_.6} parent=5 // pred_region
      // Predicated region
      $region29: #{_lambda_.6} parent=27 // pred_check
        %p180 = pneg %p55
      $region30: #{_lambda_.6} parent=27 // pred_check_branch
        %182 = sbr.rel (%p180) target = $region32
      $region31: #{_lambda_.6} parent=27 // pred_region
        %s183 = smul.u32 %s18, 2
        %s184 = sadd.s32 %s183, %s19
        %p185 = scmp.lt.s32.totalorder %s17, 1
        %s186 = scalar_select %p185, %s17, 1
        %p187 = scmp.lt.s32.totalorder %s184, 48
        %s188 = scalar_select %p187, %s184, 48
        %s189 = smul.addr %s188, 22
        %s190 = smul.addr %s186, 1078
        %s191 = sadd.s32 %s189, %s190
        %s192 = smul.addr %s191, 4
        %s193 = scalar_lea.vmem %s0, %s192
        %s194 = smul.u32 %s18, 2
        %s195 = sadd.s32 %s194, %s19
      $region32: #{_lambda_.6} parent=27 // pred_fallthru
        _
    $region28: #{_lambda_.6} parent=5 // pred_fallthru
      _
    %p196 = scmp.le.s32.totalorder 1, %s10
    %p197 = scmp.lt.s32.totalorder %s10, 309
    %p198 = pnand %p196, %p197
    %p199 = pneg %p198
    // Predicated region
    $region33: #{_lambda_.6} parent=5 // pred_check
      _
    $region34: #{_lambda_.6} parent=5 // pred_check_branch
      %201 = sbr.rel (%p198) target = $region36
    $region35: #{_lambda_.6} parent=5 // pred_region
      %s202 = ssub.s32 %s10, 1
      %s203 = smul.u32 %s21, 2
      %s204 = sadd.s32 %s203, %s22
      %p205 = scmp.lt.s32.totalorder %s20, 1
      %s206 = scalar_select %p205, %s20, 1
      %p207 = scmp.lt.s32.totalorder %s204, 48
      %s208 = scalar_select %p207, %s204, 48
      %s209 = smul.addr %s208, 22
      %s210 = smul.addr %s206, 1078
      %s211 = sadd.s32 %s209, %s210
      %s212 = smul.addr %s211, 4
      %s213 = scalar_lea.vmem %s0, %s212
      %p214 = pneg %p61
      %p215 = pneg %p58
      %p216 = pneg %p82
      %p217 = pneg %p79
      %p218 = pneg %p103
      %p219 = pneg %p100
      %p220 = pneg %p124
      %p221 = pneg %p121
      %p222 = pneg %p152
      %p223 = pneg %p149
      %p224 = scmp.lt.s32.totalorder %s20, 1
      %s225 = scalar_select %p224, %s20, 1
      %p226 = scmp.lt.s32.totalorder %s21, 21
      %s227 = scalar_select %p226, %s21, 21
      %s228 = smul.addr %s227, 22
      %s229 = smul.addr %s225, 484
      %s230 = sadd.s32 %s228, %s229
      %s231 = smul.addr %s230, 4
      %s232 = scalar_lea.vmem %s4, %s231
      %s233 = smul.u32 %s21, 2
      %s234 = sadd.s32 %s233, %s22
      %p235 = scmp.lt.s32.totalorder %s20, 1
      %s236 = scalar_select %p235, %s20, 1
      %p237 = scmp.lt.s32.totalorder %s234, 48
      %s238 = scalar_select %p237, %s234, 48
      %s239 = smul.addr %s238, 22
      %s240 = smul.addr %s236, 1078
      %s241 = sadd.s32 %s239, %s240
      %s242 = smul.addr %s241, 4
      %s243 = scalar_lea.vmem %s0, %s242
      %s244 = smul.u32 %s21, 2
      %s245 = sadd.s32 %s244, %s22
      %p246 = scmp.lt.s32.totalorder %s20, 1
      %s247 = scalar_select %p246, %s20, 1
      %p248 = scmp.lt.s32.totalorder %s21, 21
      %s249 = scalar_select %p248, %s21, 21
      %s250 = smul.addr %s249, 22
      %s251 = smul.addr %s247, 484
      %s252 = sadd.s32 %s250, %s251
      %s253 = smul.addr %s252, 4
      %s254 = scalar_lea.vmem %s4, %s253
      %p256 = scmp.eq.s32.totalorder %s22, 0
      // Predicated region
      $region37: #{_lambda_.6} parent=35 // pred_check
        %p257 = pneg %p256
      $region38: #{_lambda_.6} parent=35 // pred_check_branch
        %259 = sbr.rel (%p257) target = $region40
      $region39: #{_lambda_.6} parent=35 // pred_region
        %260 = vst [vmem:[#allocation2] sm:$0xff] 0.0
        %261 = vst [vmem:[#allocation2 + $0x8] sm:$0xff] 0.0
        %262 = vst [vmem:[#allocation2 + $0x10] sm:$0xff] 0.0
        %263 = vst [vmem:[#allocation2 + $0x18] sm:$0xff] 0.0
        %264 = vst [vmem:[#allocation2 + $0x20] sm:$0xff] 0.0
        %265 = vst [vmem:[#allocation2 + $0x28] sm:$0xff] 0.0
        %266 = vst [vmem:[#allocation2 + $0x30] sm:$0xff] 0.0
        %267 = vst [vmem:[#allocation2 + $0x38] sm:$0xff] 0.0
        %268 = vst [vmem:[#allocation2 + $0x40] sm:$0xff] 0.0
        %269 = vst [vmem:[#allocation2 + $0x48] sm:$0xff] 0.0
        %270 = vst [vmem:[#allocation2 + $0x50] sm:$0xff] 0.0
        %271 = vst [vmem:[#allocation2 + $0x58] sm:$0xff] 0.0
        %272 = vst [vmem:[#allocation2 + $0x60] sm:$0xff] 0.0
        %273 = vst [vmem:[#allocation2 + $0x68] sm:$0xff] 0.0
        %274 = vst [vmem:[#allocation2 + $0x70] sm:$0xff] 0.0
        %275 = vst [vmem:[#allocation2 + $0x78] sm:$0xff] 0.0
        %276 = vst [vmem:[#allocation2 + $0x80] sm:$0xff] 0.0
        %277 = vst [vmem:[#allocation2 + $0x88] sm:$0xff] 0.0
        %278 = vst [vmem:[#allocation2 + $0x90] sm:$0xff] 0.0
        %279 = vst [vmem:[#allocation2 + $0x98] sm:$0xff] 0.0
        %280 = vst [vmem:[#allocation2 + $0xa0] sm:$0xff] 0.0
        %281 = vst [vmem:[#allocation2 + $0xa8] sm:$0xff] 0.0
      $region40: #{_lambda_.6} parent=35 // pred_fallthru
        _
      %v282 = vld [vmem:[#allocation2] sm:$0xff]
      %v283 = vld [vmem:[#allocation2 + $0x8] sm:$0xff]
      %v284 = vld [vmem:[#allocation2 + $0x10] sm:$0xff]
      %v285 = vld [vmem:[#allocation2 + $0x18] sm:$0xff]
      %v286 = vld [vmem:[#allocation2 + $0x20] sm:$0xff]
      %v287 = vld [vmem:[#allocation2 + $0x28] sm:$0xff]
      %v288 = vld [vmem:[#allocation2 + $0x30] sm:$0xff]
      %v289 = vld [vmem:[#allocation2 + $0x38] sm:$0xff]
      %v290 = vld [vmem:[#allocation2 + $0x40] sm:$0xff]
      %v291 = vld [vmem:[#allocation2 + $0x48] sm:$0xff]
      %v292 = vld [vmem:[#allocation2 + $0x50] sm:$0xff]
      %v293 = vld [vmem:[#allocation2 + $0x58] sm:$0xff]
      %v294 = vld [vmem:[#allocation2 + $0x60] sm:$0xff]
      %v295 = vld [vmem:[#allocation2 + $0x68] sm:$0xff]
      %v296 = vld [vmem:[#allocation2 + $0x70] sm:$0xff]
      %v297 = vld [vmem:[#allocation2 + $0x78] sm:$0xff]
      %v298 = vld [vmem:[#allocation2 + $0x80] sm:$0xff]
      %v299 = vld [vmem:[#allocation2 + $0x88] sm:$0xff]
      %v300 = vld [vmem:[#allocation2 + $0x90] sm:$0xff]
      %v301 = vld [vmem:[#allocation2 + $0x98] sm:$0xff]
      %v302 = vld [vmem:[#allocation2 + $0xa0] sm:$0xff]
      %v303 = vld [vmem:[#allocation2 + $0xa8] sm:$0xff]
      %v304 = vld [vmem:[%s243] sm:$0xf]
      %v305 = vld [vmem:[%s243 + $0x4] sm:$0xf]
      %v306 = vld [vmem:[%s243 + $0x8] sm:$0xf]
      %v307 = vld [vmem:[%s243 + $0xc] sm:$0xf]
      %v308 = vld [vmem:[%s243 + $0x10] sm:$0xf]
      %v309 = vld [vmem:[%s243 + $0x14] sm:$0xf]
      %v310 = vld [vmem:[%s243 + $0x18] sm:$0xf]
      %v311 = vld [vmem:[%s243 + $0x1c] sm:$0xf]
      %v312 = vld [vmem:[%s243 + $0x20] sm:$0xf]
      %v313 = vld [vmem:[%s243 + $0x24] sm:$0xf]
      %v314 = vld [vmem:[%s243 + $0x28] sm:$0xf]
      %v315 = vld [vmem:[%s243 + $0x2c] sm:$0xf]
      %v316 = vld [vmem:[%s243 + $0x30] sm:$0xf]
      %v317 = vld [vmem:[%s243 + $0x34] sm:$0xf]
      %v318 = vld [vmem:[%s243 + $0x38] sm:$0xf]
      %v319 = vld [vmem:[%s243 + $0x3c] sm:$0xf]
      %v320 = vld [vmem:[%s243 + $0x40] sm:$0xf]
      %v321 = vld [vmem:[%s243 + $0x44] sm:$0xf]
      %v322 = vld [vmem:[%s243 + $0x48] sm:$0xf]
      %v323 = vld [vmem:[%s243 + $0x4c] sm:$0xf]
      %v324 = vld [vmem:[%s243 + $0x50] sm:$0xf]
      %v325 = vld [vmem:[%s243 + $0x54] sm:$0xf]
      %s326 = smul.u32 %s22, 11
      %s327 = smul.addr %s326, 4
      %s328 = scalar_lea.vmem %s1, %s327
      %v329 = vld [vmem:[%s328] sm:$0xf]
      %v330 = vld [vmem:[%s328 + $0x4] sm:$0xf]
      %v331 = vld [vmem:[%s328 + $0x8] sm:$0xf]
      %v332 = vld [vmem:[%s328 + $0xc] sm:$0xf]
      %v333 = vld [vmem:[%s328 + $0x10] sm:$0xf]
      %v334 = vld [vmem:[%s328 + $0x14] sm:$0xf]
      %v335 = vld [vmem:[%s328 + $0x18] sm:$0xf]
      %v336 = vld [vmem:[%s328 + $0x1c] sm:$0xf]
      %v337 = vld [vmem:[%s328 + $0x20] sm:$0xf]
      %v338 = vld [vmem:[%s328 + $0x24] sm:$0xf]
      %v339 = vld [vmem:[%s328 + $0x28] sm:$0x3]
      %v362 = vunpack.c.l.b16 %v304
      %v363 = vunpack.c.l.b16 %v305
      %v364 = vunpack.c.l.b16 %v306
      %v365 = vunpack.c.l.b16 %v307
      %v366 = vunpack.c.l.b16 %v308
      %v367 = vunpack.c.l.b16 %v309
      %v368 = vunpack.c.l.b16 %v310
      %v369 = vunpack.c.l.b16 %v311
      %v370 = vunpack.c.l.b16 %v312
      %v371 = vunpack.c.l.b16 %v313
      %v372 = vunpack.c.l.b16 %v314
      %v373 = vunpack.c.l.b16 %v315
      %v374 = vunpack.c.l.b16 %v316
      %v375 = vunpack.c.l.b16 %v317
      %v376 = vunpack.c.l.b16 %v318
      %v377 = vunpack.c.l.b16 %v319
      %v378 = vunpack.c.l.b16 %v320
      %v379 = vunpack.c.l.b16 %v321
      %v380 = vunpack.c.l.b16 %v322
      %v381 = vunpack.c.l.b16 %v323
      %v382 = vunpack.c.l.b16 %v324
      %v383 = vunpack.c.l.b16 %v325
      %v384 = vpack.c.b16 %v363, %v362
      %v385 = vpack.c.b16 %v365, %v364
      %v386 = vpack.c.b16 %v367, %v366
      %v387 = vpack.c.b16 %v369, %v368
      %v388 = vpack.c.b16 %v371, %v370
      %v389 = vpack.c.b16 %v373, %v372
      %v390 = vpack.c.b16 %v375, %v374
      %v391 = vpack.c.b16 %v377, %v376
      %v392 = vpack.c.b16 %v379, %v378
      %v393 = vpack.c.b16 %v381, %v380
      %v394 = vpack.c.b16 %v383, %v382
      %v406 = vunpack.c.l.b16 %v329
      %v407 = vunpack.c.l.b16 %v330
      %v408 = vunpack.c.l.b16 %v331
      %v409 = vunpack.c.l.b16 %v332
      %v410 = vunpack.c.l.b16 %v333
      %v411 = vunpack.c.l.b16 %v334
      %v412 = vunpack.c.l.b16 %v335
      %v413 = vunpack.c.l.b16 %v336
      %v414 = vunpack.c.l.b16 %v337
      %v415 = vunpack.c.l.b16 %v338
      %v416 = vunpack.c.l.b16 %v339
      %v417 = vpack.c.b16 %v407, %v406
      %v418 = vpack.c.b16 %v409, %v408
      %v419 = vpack.c.b16 %v411, %v410
      %v420 = vpack.c.b16 %v413, %v412
      %v421 = vpack.c.b16 %v415, %v414
      %v422 = vpack.c.b16 %v416, %v416
      %vm428 = vcmask 687104
      %v430 = vsel %vm428, %v384, 0
      %v433 = vsel %vm428, %v385, 0
      %v436 = vsel %vm428, %v386, 0
      %v439 = vsel %vm428, %v387, 0
      %v442 = vsel %vm428, %v388, 0
      %v445 = vsel %vm428, %v389, 0
      %v448 = vsel %vm428, %v390, 0
      %v451 = vsel %vm428, %v391, 0
      %v454 = vsel %vm428, %v392, 0
      %v457 = vsel %vm428, %v393, 0
      %v460 = vsel %vm428, %v394, 0
      %vm462 = vcmask 1041408
      %v464 = vsel %vm462, %v422, 0
      %466 = vmatprep.subr.bf16.mxu0 0
      %467 = vmatpush1.bf16.msra.mxu0 0
      %468 = vmatprep.subr.bf16.mxu0 0
      %469 = vmatpush1.bf16.msra.mxu0 0
      %470 = vmatprep.subr.bf16.mxu0 0
      %471 = vmatpush1.bf16.msra.mxu0 %v464
      %472 = vmatprep.subr.bf16.mxu0 0
      %473 = vmatpush1.bf16.msra.mxu0 %v421
      %474 = vmatprep.subr.bf16.mxu0 0
      %475 = vmatpush1.bf16.msra.mxu0 %v420
      %476 = vmatprep.subr.bf16.mxu0 0
      %477 = vmatpush1.bf16.msra.mxu0 %v419
      %478 = vmatprep.subr.bf16.mxu0 0
      %479 = vmatpush1.bf16.msra.mxu0 %v418
      %480 = vmatprep.subr.bf16.mxu0 0
      %481 = vmatpush1.bf16.msra.mxu0 %v417
      %482 = vmatprep.subr.bf16.mxu0 0
      %483 = vmatpush2.bf16.msra.mxu0 0
      %484 = vmatprep.subr.bf16.mxu0 0
      %485 = vmatpush2.bf16.msra.mxu0 0
      %486 = vmatprep.subr.bf16.mxu0 0
      %487 = vmatpush2.bf16.msra.mxu0 0
      %488 = vmatprep.subr.bf16.mxu0 0
      %489 = vmatpush2.bf16.msra.mxu0 0
      %490 = vmatprep.subr.bf16.mxu0 0
      %491 = vmatpush2.bf16.msra.mxu0 0
      %492 = vmatprep.subr.bf16.mxu0 0
      %493 = vmatpush2.bf16.msra.mxu0 0
      %494 = vmatprep.subr.bf16.mxu0 0
      %495 = vmatpush2.bf16.msra.mxu0 0
      %496 = vmatprep.subr.bf16.mxu0 0
      %497 = vmatpush2.bf16.msra.mxu0 0
      %498 = vmatprep.mubr.bf16.mxu0 0
      %499 = vmatmul.mubr.bf16.gmra.mxu0 %v430
      %v500 = vpop.f32.mrf.mxu0
      %v501 = vadd.f32 0.0, %v500
      %v502 = vpop.f32.mrf.mxu0
      %v503 = vpop.f32.mrf.mxu0
      %v504 = vadd.f32 0.0, %v503
      %v505 = vpop.f32.mrf.mxu0
      %506 = vmatprep.mubr.bf16.mxu0 0
      %507 = vmatmul.mubr.bf16.gmra.mxu0 %v433
      %v508 = vpop.f32.mrf.mxu0
      %v509 = vadd.f32 0.0, %v508
      %v510 = vpop.f32.mrf.mxu0
      %v511 = vpop.f32.mrf.mxu0
      %v512 = vadd.f32 0.0, %v511
      %v513 = vpop.f32.mrf.mxu0
      %514 = vmatprep.mubr.bf16.mxu0 0
      %515 = vmatmul.mubr.bf16.gmra.mxu0 %v436
      %v516 = vpop.f32.mrf.mxu0
      %v517 = vadd.f32 0.0, %v516
      %v518 = vpop.f32.mrf.mxu0
      %v519 = vpop.f32.mrf.mxu0
      %v520 = vadd.f32 0.0, %v519
      %v521 = vpop.f32.mrf.mxu0
      %522 = vmatprep.mubr.bf16.mxu0 0
      %523 = vmatmul.mubr.bf16.gmra.mxu0 %v439
      %v524 = vpop.f32.mrf.mxu0
      %v525 = vadd.f32 0.0, %v524
      %v526 = vpop.f32.mrf.mxu0
      %v527 = vpop.f32.mrf.mxu0
      %v528 = vadd.f32 0.0, %v527
      %v529 = vpop.f32.mrf.mxu0
      %530 = vmatprep.mubr.bf16.mxu0 0
      %531 = vmatmul.mubr.bf16.gmra.mxu0 %v442
      %v532 = vpop.f32.mrf.mxu0
      %v533 = vadd.f32 0.0, %v532
      %v534 = vpop.f32.mrf.mxu0
      %v535 = vpop.f32.mrf.mxu0
      %v536 = vadd.f32 0.0, %v535
      %v537 = vpop.f32.mrf.mxu0
      %538 = vmatprep.mubr.bf16.mxu0 0
      %539 = vmatmul.mubr.bf16.gmra.mxu0 %v445
      %v540 = vpop.f32.mrf.mxu0
      %v541 = vadd.f32 0.0, %v540
      %v542 = vpop.f32.mrf.mxu0
      %v543 = vpop.f32.mrf.mxu0
      %v544 = vadd.f32 0.0, %v543
      %v545 = vpop.f32.mrf.mxu0
      %546 = vmatprep.mubr.bf16.mxu0 0
      %547 = vmatmul.mubr.bf16.gmra.mxu0 %v448
      %v548 = vpop.f32.mrf.mxu0
      %v549 = vadd.f32 0.0, %v548
      %v550 = vpop.f32.mrf.mxu0
      %v551 = vpop.f32.mrf.mxu0
      %v552 = vadd.f32 0.0, %v551
      %v553 = vpop.f32.mrf.mxu0
      %554 = vmatprep.mubr.bf16.mxu0 0
      %555 = vmatmul.mubr.bf16.gmra.mxu0 %v451
      %v556 = vpop.f32.mrf.mxu0
      %v557 = vadd.f32 0.0, %v556
      %v558 = vpop.f32.mrf.mxu0
      %v559 = vpop.f32.mrf.mxu0
      %v560 = vadd.f32 0.0, %v559
      %v561 = vpop.f32.mrf.mxu0
      %562 = vmatprep.mubr.bf16.mxu0 0
      %563 = vmatmul.mubr.bf16.gmra.mxu0 %v454
      %v564 = vpop.f32.mrf.mxu0
      %v565 = vadd.f32 0.0, %v564
      %v566 = vpop.f32.mrf.mxu0
      %v567 = vpop.f32.mrf.mxu0
      %v568 = vadd.f32 0.0, %v567
      %v569 = vpop.f32.mrf.mxu0
      %570 = vmatprep.mubr.bf16.mxu0 0
      %571 = vmatmul.mubr.bf16.gmra.mxu0 %v457
      %v572 = vpop.f32.mrf.mxu0
      %v573 = vadd.f32 0.0, %v572
      %v574 = vpop.f32.mrf.mxu0
      %v575 = vpop.f32.mrf.mxu0
      %v576 = vadd.f32 0.0, %v575
      %v577 = vpop.f32.mrf.mxu0
      %578 = vmatprep.mubr.bf16.mxu0 0
      %579 = vmatmul.mubr.bf16.gmra.mxu0 %v460
      %v580 = vpop.f32.mrf.mxu0
      %v581 = vadd.f32 0.0, %v580
      %v582 = vpop.f32.mrf.mxu0
      %v583 = vpop.f32.mrf.mxu0
      %v584 = vadd.f32 0.0, %v583
      %v585 = vpop.f32.mrf.mxu0
      %586 = vdwg.mxu0
      %v587 = vadd.f32 %v282, %v501
      %v588 = vadd.f32 %v283, %v504
      %v589 = vadd.f32 %v284, %v509
      %v590 = vadd.f32 %v285, %v512
      %v591 = vadd.f32 %v286, %v517
      %v592 = vadd.f32 %v287, %v520
      %v593 = vadd.f32 %v288, %v525
      %v594 = vadd.f32 %v289, %v528
      %v595 = vadd.f32 %v290, %v533
      %v596 = vadd.f32 %v291, %v536
      %v597 = vadd.f32 %v292, %v541
      %v598 = vadd.f32 %v293, %v544
      %v599 = vadd.f32 %v294, %v549
      %v600 = vadd.f32 %v295, %v552
      %v601 = vadd.f32 %v296, %v557
      %v602 = vadd.f32 %v297, %v560
      %v603 = vadd.f32 %v298, %v565
      %v604 = vadd.f32 %v299, %v568
      %v605 = vadd.f32 %v300, %v573
      %v606 = vadd.f32 %v301, %v576
      %v607 = vadd.f32 %v302, %v581
      %v608 = vadd.f32 %v303, %v584
      %609 = vst [vmem:[#allocation2] sm:$0xff] %v587
      %610 = vst [vmem:[#allocation2 + $0x8] sm:$0xff] %v588
      %611 = vst [vmem:[#allocation2 + $0x10] sm:$0xff] %v589
      %612 = vst [vmem:[#allocation2 + $0x18] sm:$0xff] %v590
      %613 = vst [vmem:[#allocation2 + $0x20] sm:$0xff] %v591
      %614 = vst [vmem:[#allocation2 + $0x28] sm:$0xff] %v592
      %615 = vst [vmem:[#allocation2 + $0x30] sm:$0xff] %v593
      %616 = vst [vmem:[#allocation2 + $0x38] sm:$0xff] %v594
      %617 = vst [vmem:[#allocation2 + $0x40] sm:$0xff] %v595
      %618 = vst [vmem:[#allocation2 + $0x48] sm:$0xff] %v596
      %619 = vst [vmem:[#allocation2 + $0x50] sm:$0xff] %v597
      %620 = vst [vmem:[#allocation2 + $0x58] sm:$0xff] %v598
      %621 = vst [vmem:[#allocation2 + $0x60] sm:$0xff] %v599
      %622 = vst [vmem:[#allocation2 + $0x68] sm:$0xff] %v600
      %623 = vst [vmem:[#allocation2 + $0x70] sm:$0xff] %v601
      %624 = vst [vmem:[#allocation2 + $0x78] sm:$0xff] %v602
      %625 = vst [vmem:[#allocation2 + $0x80] sm:$0xff] %v603
      %626 = vst [vmem:[#allocation2 + $0x88] sm:$0xff] %v604
      %627 = vst [vmem:[#allocation2 + $0x90] sm:$0xff] %v605
      %628 = vst [vmem:[#allocation2 + $0x98] sm:$0xff] %v606
      %629 = vst [vmem:[#allocation2 + $0xa0] sm:$0xff] %v607
      %630 = vst [vmem:[#allocation2 + $0xa8] sm:$0xff] %v608
      %p631 = scmp.eq.s32.totalorder %s22, 6
      // Predicated region
      $region41: #{_lambda_.6} parent=35 // pred_check
        %p632 = pneg %p631
      $region42: #{_lambda_.6} parent=35 // pred_check_branch
        %634 = sbr.rel (%p632) target = $region44
      $region43: #{_lambda_.6} parent=35 // pred_region
        %v635 = vld [vmem:[#allocation2] sm:$0xff]
        %v636 = vld [vmem:[#allocation2 + $0x8] sm:$0xff]
        %v637 = vld [vmem:[#allocation2 + $0x10] sm:$0xff]
        %v638 = vld [vmem:[#allocation2 + $0x18] sm:$0xff]
        %v639 = vld [vmem:[#allocation2 + $0x20] sm:$0xff]
        %v640 = vld [vmem:[#allocation2 + $0x28] sm:$0xff]
        %v641 = vld [vmem:[#allocation2 + $0x30] sm:$0xff]
        %v642 = vld [vmem:[#allocation2 + $0x38] sm:$0xff]
        %v643 = vld [vmem:[#allocation2 + $0x40] sm:$0xff]
        %v644 = vld [vmem:[#allocation2 + $0x48] sm:$0xff]
        %v645 = vld [vmem:[#allocation2 + $0x50] sm:$0xff]
        %v646 = vld [vmem:[#allocation2 + $0x58] sm:$0xff]
        %v647 = vld [vmem:[#allocation2 + $0x60] sm:$0xff]
        %v648 = vld [vmem:[#allocation2 + $0x68] sm:$0xff]
        %v649 = vld [vmem:[#allocation2 + $0x70] sm:$0xff]
        %v650 = vld [vmem:[#allocation2 + $0x78] sm:$0xff]
        %v651 = vld [vmem:[#allocation2 + $0x80] sm:$0xff]
        %v652 = vld [vmem:[#allocation2 + $0x88] sm:$0xff]
        %v653 = vld [vmem:[#allocation2 + $0x90] sm:$0xff]
        %v654 = vld [vmem:[#allocation2 + $0x98] sm:$0xff]
        %v655 = vld [vmem:[#allocation2 + $0xa0] sm:$0xff]
        %v656 = vld [vmem:[#allocation2 + $0xa8] sm:$0xff]
        %v657 = vld [vmem:[%s2] sm:$0x1]
        %v659 = vlaneseq
        %v660 = vshrl.u32 %v659, 7
        %v661 = vsub.s32 0, %v660
        %v662 = vrot.slane %v657, %v661
        %v664 = vmul.f32 %v635, %v662
        %v665 = vmul.f32 %v636, %v662
        %v666 = vmul.f32 %v637, %v662
        %v667 = vmul.f32 %v638, %v662
        %v668 = vmul.f32 %v639, %v662
        %v669 = vmul.f32 %v640, %v662
        %v670 = vmul.f32 %v641, %v662
        %v671 = vmul.f32 %v642, %v662
        %v672 = vmul.f32 %v643, %v662
        %v673 = vmul.f32 %v644, %v662
        %v674 = vmul.f32 %v645, %v662
        %v675 = vmul.f32 %v646, %v662
        %v676 = vmul.f32 %v647, %v662
        %v677 = vmul.f32 %v648, %v662
        %v678 = vmul.f32 %v649, %v662
        %v679 = vmul.f32 %v650, %v662
        %v680 = vmul.f32 %v651, %v662
        %v681 = vmul.f32 %v652, %v662
        %v682 = vmul.f32 %v653, %v662
        %v683 = vmul.f32 %v654, %v662
        %v684 = vmul.f32 %v655, %v662
        %v685 = vmul.f32 %v656, %v662
        %v686 = vld [vmem:[%s3] sm:$0x1]
        %v688 = vlaneseq
        %v689 = vshrl.u32 %v688, 7
        %v690 = vsub.s32 0, %v689
        %v691 = vrot.slane %v686, %v690
        %v693 = vadd.f32 %v664, %v691
        %v694 = vadd.f32 %v665, %v691
        %v695 = vadd.f32 %v666, %v691
        %v696 = vadd.f32 %v667, %v691
        %v697 = vadd.f32 %v668, %v691
        %v698 = vadd.f32 %v669, %v691
        %v699 = vadd.f32 %v670, %v691
        %v700 = vadd.f32 %v671, %v691
        %v701 = vadd.f32 %v672, %v691
        %v702 = vadd.f32 %v673, %v691
        %v703 = vadd.f32 %v674, %v691
        %v704 = vadd.f32 %v675, %v691
        %v705 = vadd.f32 %v676, %v691
        %v706 = vadd.f32 %v677, %v691
        %v707 = vadd.f32 %v678, %v691
        %v708 = vadd.f32 %v679, %v691
        %v709 = vadd.f32 %v680, %v691
        %v710 = vadd.f32 %v681, %v691
        %v711 = vadd.f32 %v682, %v691
        %v712 = vadd.f32 %v683, %v691
        %v713 = vadd.f32 %v684, %v691
        %v714 = vadd.f32 %v685, %v691
        %v715 = vmul.f32 %v693, 0.1
        %v716 = vmul.f32 %v694, 0.1
        %v717 = vmul.f32 %v695, 0.1
        %v718 = vmul.f32 %v696, 0.1
        %v719 = vmul.f32 %v697, 0.1
        %v720 = vmul.f32 %v698, 0.1
        %v721 = vmul.f32 %v699, 0.1
        %v722 = vmul.f32 %v700, 0.1
        %v723 = vmul.f32 %v701, 0.1
        %v724 = vmul.f32 %v702, 0.1
        %v725 = vmul.f32 %v703, 0.1
        %v726 = vmul.f32 %v704, 0.1
        %v727 = vmul.f32 %v705, 0.1
        %v728 = vmul.f32 %v706, 0.1
        %v729 = vmul.f32 %v707, 0.1
        %v730 = vmul.f32 %v708, 0.1
        %v731 = vmul.f32 %v709, 0.1
        %v732 = vmul.f32 %v710, 0.1
        %v733 = vmul.f32 %v711, 0.1
        %v734 = vmul.f32 %v712, 0.1
        %v735 = vmul.f32 %v713, 0.1
        %v736 = vmul.f32 %v714, 0.1
        %v737 = vmax.f32 %v693, %v715
        %v738 = vmax.f32 %v694, %v716
        %v739 = vmax.f32 %v695, %v717
        %v740 = vmax.f32 %v696, %v718
        %v741 = vmax.f32 %v697, %v719
        %v742 = vmax.f32 %v698, %v720
        %v743 = vmax.f32 %v699, %v721
        %v744 = vmax.f32 %v700, %v722
        %v745 = vmax.f32 %v701, %v723
        %v746 = vmax.f32 %v702, %v724
        %v747 = vmax.f32 %v703, %v725
        %v748 = vmax.f32 %v704, %v726
        %v749 = vmax.f32 %v705, %v727
        %v750 = vmax.f32 %v706, %v728
        %v751 = vmax.f32 %v707, %v729
        %v752 = vmax.f32 %v708, %v730
        %v753 = vmax.f32 %v709, %v731
        %v754 = vmax.f32 %v710, %v732
        %v755 = vmax.f32 %v711, %v733
        %v756 = vmax.f32 %v712, %v734
        %v757 = vmax.f32 %v713, %v735
        %v758 = vmax.f32 %v714, %v736
        %v759 = vpack.c.bf16 %v738, %v737
        %v760 = vpack.c.bf16 %v740, %v739
        %v761 = vpack.c.bf16 %v742, %v741
        %v762 = vpack.c.bf16 %v744, %v743
        %v763 = vpack.c.bf16 %v746, %v745
        %v764 = vpack.c.bf16 %v748, %v747
        %v765 = vpack.c.bf16 %v750, %v749
        %v766 = vpack.c.bf16 %v752, %v751
        %v767 = vpack.c.bf16 %v754, %v753
        %v768 = vpack.c.bf16 %v756, %v755
        %v769 = vpack.c.bf16 %v758, %v757
        %v781 = vunpack.c.l.b16 %v759
        %v782 = vunpack.c.h.b16 %v759
        %v783 = vunpack.c.l.b16 %v760
        %v784 = vunpack.c.h.b16 %v760
        %v785 = vunpack.c.l.b16 %v761
        %v786 = vunpack.c.h.b16 %v761
        %v787 = vunpack.c.l.b16 %v762
        %v788 = vunpack.c.h.b16 %v762
        %v789 = vunpack.c.l.b16 %v763
        %v790 = vunpack.c.h.b16 %v763
        %v791 = vunpack.c.l.b16 %v764
        %v792 = vunpack.c.h.b16 %v764
        %v793 = vunpack.c.l.b16 %v765
        %v794 = vunpack.c.h.b16 %v765
        %v795 = vunpack.c.l.b16 %v766
        %v796 = vunpack.c.h.b16 %v766
        %v797 = vunpack.c.l.b16 %v767
        %v798 = vunpack.c.h.b16 %v767
        %v799 = vunpack.c.l.b16 %v768
        %v800 = vunpack.c.h.b16 %v768
        %v801 = vunpack.c.l.b16 %v769
        %v802 = vunpack.c.h.b16 %v769
        %v803 = vpack.c.b16 %v781, %v781
        %v804 = vpack.c.b16 %v782, %v782
        %v805 = vpack.c.b16 %v783, %v783
        %v806 = vpack.c.b16 %v784, %v784
        %v807 = vpack.c.b16 %v785, %v785
        %v808 = vpack.c.b16 %v786, %v786
        %v809 = vpack.c.b16 %v787, %v787
        %v810 = vpack.c.b16 %v788, %v788
        %v811 = vpack.c.b16 %v789, %v789
        %v812 = vpack.c.b16 %v790, %v790
        %v813 = vpack.c.b16 %v791, %v791
        %v814 = vpack.c.b16 %v792, %v792
        %v815 = vpack.c.b16 %v793, %v793
        %v816 = vpack.c.b16 %v794, %v794
        %v817 = vpack.c.b16 %v795, %v795
        %v818 = vpack.c.b16 %v796, %v796
        %v819 = vpack.c.b16 %v797, %v797
        %v820 = vpack.c.b16 %v798, %v798
        %v821 = vpack.c.b16 %v799, %v799
        %v822 = vpack.c.b16 %v800, %v800
        %v823 = vpack.c.b16 %v801, %v801
        %v824 = vpack.c.b16 %v802, %v802
        %847 = vst [vmem:[%s254] sm:$0xf] %v803
        %848 = vst [vmem:[%s254 + $0x4] sm:$0xf] %v804
        %849 = vst [vmem:[%s254 + $0x8] sm:$0xf] %v805
        %850 = vst [vmem:[%s254 + $0xc] sm:$0xf] %v806
        %851 = vst [vmem:[%s254 + $0x10] sm:$0xf] %v807
        %852 = vst [vmem:[%s254 + $0x14] sm:$0xf] %v808
        %853 = vst [vmem:[%s254 + $0x18] sm:$0xf] %v809
        %854 = vst [vmem:[%s254 + $0x1c] sm:$0xf] %v810
        %855 = vst [vmem:[%s254 + $0x20] sm:$0xf] %v811
        %856 = vst [vmem:[%s254 + $0x24] sm:$0xf] %v812
        %857 = vst [vmem:[%s254 + $0x28] sm:$0xf] %v813
        %858 = vst [vmem:[%s254 + $0x2c] sm:$0xf] %v814
        %859 = vst [vmem:[%s254 + $0x30] sm:$0xf] %v815
        %860 = vst [vmem:[%s254 + $0x34] sm:$0xf] %v816
        %861 = vst [vmem:[%s254 + $0x38] sm:$0xf] %v817
        %862 = vst [vmem:[%s254 + $0x3c] sm:$0xf] %v818
        %863 = vst [vmem:[%s254 + $0x40] sm:$0xf] %v819
        %864 = vst [vmem:[%s254 + $0x44] sm:$0xf] %v820
        %865 = vst [vmem:[%s254 + $0x48] sm:$0xf] %v821
        %866 = vst [vmem:[%s254 + $0x4c] sm:$0xf] %v822
        %867 = vst [vmem:[%s254 + $0x50] sm:$0xf] %v823
        %868 = vst [vmem:[%s254 + $0x54] sm:$0xf] %v824
      $region44: #{_lambda_.6} parent=35 // pred_fallthru
        _
      %p869 = scmp.lt.s32.totalorder %s20, 1
      %s870 = scalar_select %p869, %s20, 1
      %p871 = scmp.lt.s32.totalorder %s21, 21
      %s872 = scalar_select %p871, %s21, 21
      %s873 = smul.addr %s872, 22
      %s874 = smul.addr %s870, 484
      %s875 = sadd.s32 %s873, %s874
      %s876 = smul.addr %s875, 4
      %s877 = scalar_lea.vmem %s4, %s876
      // Predicated region
      $region45: #{_lambda_.6} parent=35 // pred_check
        %p878 = pneg %p149
      $region46: #{_lambda_.6} parent=35 // pred_check_branch
        %880 = sbr.rel (%p878) target = $region48
      $region47: #{_lambda_.6} parent=35 // pred_region
        _
      $region48: #{_lambda_.6} parent=35 // pred_fallthru
        _
    $region36: #{_lambda_.6} parent=5 // pred_fallthru
      _
    %p881 = scmp.le.s32.totalorder 2, %s10
    // Predicated region
    $region49: #{_lambda_.6} parent=5 // pred_check
      %p882 = pneg %p881
    $region50: #{_lambda_.6} parent=5 // pred_check_branch
      %884 = sbr.rel (%p882) target = $region52
    $region51: #{_lambda_.6} parent=5 // pred_region
      %s885 = ssub.s32 %s10, 2
      // Predicated region
      $region53: #{_lambda_.6} parent=51 // pred_check
        %p886 = pneg %p155
      $region54: #{_lambda_.6} parent=51 // pred_check_branch
        %888 = sbr.rel (%p886) target = $region56
      $region55: #{_lambda_.6} parent=51 // pred_region
        %p889 = scmp.lt.s32.totalorder %s23, 1
        %s890 = scalar_select %p889, %s23, 1
        %p891 = scmp.lt.s32.totalorder %s24, 21
        %s892 = scalar_select %p891, %s24, 21
        %s893 = smul.addr %s892, 22
        %s894 = smul.addr %s890, 484
        %s895 = sadd.s32 %s893, %s894
        %s896 = smul.addr %s895, 4
        %s897 = scalar_lea.vmem %s4, %s896
      $region56: #{_lambda_.6} parent=51 // pred_fallthru
        _
    $region52: #{_lambda_.6} parent=5 // pred_fallthru
      _
  $region6: #{_lambda_.6} parent=0 // loop_footer
    %s14 = sadd.s32 1, %s10
  $region7: #{_lambda_.6} parent=0 // loop_footer_branch
    %9 = sbr.rel target = $region3
  $region8: #{_lambda_.6} parent=0 // loop_exit
    _

// kernel: _lambda_.7
$region0: #{_lambda_.7}
  #allocation0 [shape = 'u32[]', space=smem, size = 0x4, offset = 0x4, fixed_abs, tag = 'smem constant byte address 0x4 - core index']
  #allocation1 [shape = 'u32[144,128]{1,0:T(1,128)}', space=vmem, size = 0x12000, scoped, tag = 'internal scratch']
  #allocation2 [shape = 'f32[112,128]{1,0:T(8,128)}', space=vmem, size = 0xe000, scoped, tag = 'scratch operand']
  %s0 = inlined_call_operand.vmem [shape: bf16[2,22,112,240], index: 0, kind: input, shape index: {}]
  %s1 = inlined_call_operand.vmem [shape: bf16[5,240,128], index: 1, kind: input, shape index: {}]
  %s2 = inlined_call_operand.vmem [shape: f32[1,128], index: 2, kind: input, shape index: {}]
  %s3 = inlined_call_operand.vmem [shape: f32[1,128], index: 3, kind: input, shape index: {}]
  %s4 = inlined_call_operand.vmem [shape: bf16[2,18,112,128], index: 4, kind: output, shape index: {}]
  %s5 = sld [smem:[#allocation0]]
  $region57: #{_lambda_.7} parent=0
    _
  %s7 = ssub.s32 1, %s5
  %s8 = scalar_select 0, %s7, %s5
  loop: start=0, step=1, limit=182
  $region2: #{_lambda_.7} parent=0 // loop_pre_header
    _
  $region3: #{_lambda_.7} parent=0 // loop_header
    %s10 = sphi 0, %s14
    %p11 = scmp.ge.s32.totalorder %s10, 182
    %s17 = sphi 0, %s36
    %s18 = sphi 0, %s32
    %s19 = sphi 0, %s28
    %s20 = sphi 0, %s17
    %s21 = sphi 0, %s18
    %s22 = sphi 0, %s19
    %s23 = sphi 0, %s20
    %s24 = sphi 0, %s21
    %s25 = sphi 0, %s22
    %s43 = sphi 0, %s45
    %s46 = sphi 0, %s43
    %s47 = sphi 0, %s46
    %s63 = sphi 0, %s47
    %s67 = sphi 0, %s67
    %s69 = sphi 0, %s67
    %s70 = sphi 0, %s69
    %s84 = sphi 0, %s70
    %s88 = sphi 0, %s88
    %s90 = sphi 0, %s88
    %s91 = sphi 0, %s90
    %s105 = sphi 0, %s91
    %s109 = sphi 0, %s109
    %s111 = sphi 0, %s109
    %s112 = sphi 0, %s111
    %s126 = sphi 0, %s112
    %s134 = sphi 0, %s136
    %s137 = sphi 0, %s134
    %s138 = sphi 0, %s137
    %s154 = sphi 0, %s138
  $region4: #{_lambda_.7} parent=0 // loop_header_branch
    %13 = sbr.rel (%p11) target = $region8
  $region5: #{_lambda_.7} parent=0 // loop_body
    %s15 = ssub.s32 %s10, 1
    %s16 = ssub.s32 %s10, 2
    %s26 = sadd.s32 1, %s19
    %p27 = scmp.ge.s32.totalorder %s26, 5
    %s28 = scalar_select %p27, 0, %s26
    %s29 = sadd.s32 1, %s18
    %s30 = scalar_select %p27, %s29, %s18
    %p31 = scmp.ge.s32.totalorder %s30, 18
    %s32 = scalar_select %p31, 0, %s30
    %s33 = sadd.s32 1, %s17
    %s34 = scalar_select %p31, %s33, %s17
    %p35 = scmp.ge.s32.totalorder %s34, 2
    %s36 = scalar_select %p35, 0, %s34
    %s37 = sadd.s32 %s18, %s19
    %s38 = sadd.s32 %s32, %s28
    %s39 = ssub.s32 %s17, %s36
    %s40 = ssub.s32 %s37, %s38
    %s41 = sor.u32 %s39, %s40
    %p42 = scmp.eq.s32.totalorder %s41, 0
    %s44 = sadd.s32 %s43, 1
    %s45 = scalar_select %p42, %s43, %s44
    %p48 = pneg %p42
    %p49 = scmp.eq.s32.totalorder %s10, 179
    %p50 = por %p48, %p49
    %p51 = scmp.ne.s32.totalorder %s43, %s46
    %p52 = scmp.eq.s32.totalorder %s10, 0
    %p53 = por %p51, %p52
    %p54 = scmp.ne.s32.totalorder %s43, %s46
    %p55 = scmp.eq.s32.totalorder %s15, 179
    %p56 = por %p54, %p55
    %p57 = scmp.ne.s32.totalorder %s46, %s47
    %p58 = scmp.eq.s32.totalorder %s15, 0
    %p59 = por %p57, %p58
    %p60 = scmp.ne.s32.totalorder %s46, %s47
    %p61 = scmp.eq.s32.totalorder %s16, 179
    %p62 = por %p60, %p61
    %p64 = scmp.ne.s32.totalorder %s47, %s63
    %p65 = scmp.eq.s32.totalorder %s16, 0
    %p66 = por %p64, %p65
    %s68 = sadd.s32 %s67, 1
    %p71 = scmp.eq.s32.totalorder %s10, 179
    %p72 = scmp.ne.s32.totalorder %s67, %s69
    %p73 = scmp.eq.s32.totalorder %s10, 0
    %p74 = por %p72, %p73
    %p75 = scmp.ne.s32.totalorder %s67, %s69
    %p76 = scmp.eq.s32.totalorder %s15, 179
    %p77 = por %p75, %p76
    %p78 = scmp.ne.s32.totalorder %s69, %s70
    %p79 = scmp.eq.s32.totalorder %s15, 0
    %p80 = por %p78, %p79
    %p81 = scmp.ne.s32.totalorder %s69, %s70
    %p82 = scmp.eq.s32.totalorder %s16, 179
    %p83 = por %p81, %p82
    %p85 = scmp.ne.s32.totalorder %s70, %s84
    %p86 = scmp.eq.s32.totalorder %s16, 0
    %p87 = por %p85, %p86
    %s89 = sadd.s32 %s88, 1
    %p92 = scmp.eq.s32.totalorder %s10, 179
    %p93 = scmp.ne.s32.totalorder %s88, %s90
    %p94 = scmp.eq.s32.totalorder %s10, 0
    %p95 = por %p93, %p94
    %p96 = scmp.ne.s32.totalorder %s88, %s90
    %p97 = scmp.eq.s32.totalorder %s15, 179
    %p98 = por %p96, %p97
    %p99 = scmp.ne.s32.totalorder %s90, %s91
    %p100 = scmp.eq.s32.totalorder %s15, 0
    %p101 = por %p99, %p100
    %p102 = scmp.ne.s32.totalorder %s90, %s91
    %p103 = scmp.eq.s32.totalorder %s16, 179
    %p104 = por %p102, %p103
    %p106 = scmp.ne.s32.totalorder %s91, %s105
    %p107 = scmp.eq.s32.totalorder %s16, 0
    %p108 = por %p106, %p107
    %s110 = sadd.s32 %s109, 1
    %p113 = scmp.eq.s32.totalorder %s10, 179
    %p114 = scmp.ne.s32.totalorder %s109, %s111
    %p115 = scmp.eq.s32.totalorder %s10, 0
    %p116 = por %p114, %p115
    %p117 = scmp.ne.s32.totalorder %s109, %s111
    %p118 = scmp.eq.s32.totalorder %s15, 179
    %p119 = por %p117, %p118
    %p120 = scmp.ne.s32.totalorder %s111, %s112
    %p121 = scmp.eq.s32.totalorder %s15, 0
    %p122 = por %p120, %p121
    %p123 = scmp.ne.s32.totalorder %s111, %s112
    %p124 = scmp.eq.s32.totalorder %s16, 179
    %p125 = por %p123, %p124
    %p127 = scmp.ne.s32.totalorder %s112, %s126
    %p128 = scmp.eq.s32.totalorder %s16, 0
    %p129 = por %p127, %p128
    %s130 = ssub.s32 %s17, %s36
    %s131 = ssub.s32 %s18, %s32
    %s132 = sor.u32 %s130, %s131
    %p133 = scmp.eq.s32.totalorder %s132, 0
    %s135 = sadd.s32 %s134, 1
    %s136 = scalar_select %p133, %s134, %s135
    %p139 = pneg %p133
    %p140 = scmp.eq.s32.totalorder %s10, 179
    %p141 = por %p139, %p140
    %p142 = scmp.ne.s32.totalorder %s134, %s137
    %p143 = scmp.eq.s32.totalorder %s10, 0
    %p144 = por %p142, %p143
    %p145 = scmp.ne.s32.totalorder %s134, %s137
    %p146 = scmp.eq.s32.totalorder %s15, 179
    %p147 = por %p145, %p146
    %p148 = scmp.ne.s32.totalorder %s137, %s138
    %p149 = scmp.eq.s32.totalorder %s15, 0
    %p150 = por %p148, %p149
    %p151 = scmp.ne.s32.totalorder %s137, %s138
    %p152 = scmp.eq.s32.totalorder %s16, 179
    %p153 = por %p151, %p152
    %p155 = scmp.ne.s32.totalorder %s138, %s154
    %p156 = scmp.eq.s32.totalorder %s16, 0
    %p157 = por %p155, %p156
    %p158 = scmp.le.s32.totalorder 1, %s10
    %p159 = scmp.lt.s32.totalorder %s10, 181
    %p160 = pnand %p158, %p159
    %p161 = pneg %p160
    // Predicated region
    $region9: #{_lambda_.7} parent=5 // pred_check
      _
    $region10: #{_lambda_.7} parent=5 // pred_check_branch
      %163 = sbr.rel (%p160) target = $region12
    $region11: #{_lambda_.7} parent=5 // pred_region
      %s164 = ssub.s32 %s10, 1
      // Predicated region
      $region13: #{_lambda_.7} parent=11 // pred_check
        %p165 = pneg %p80
      $region14: #{_lambda_.7} parent=11 // pred_check_branch
        %167 = sbr.rel (%p165) target = $region16
      $region15: #{_lambda_.7} parent=11 // pred_region
        _
      $region16: #{_lambda_.7} parent=11 // pred_fallthru
        _
      // Predicated region
      $region17: #{_lambda_.7} parent=11 // pred_check
        %p168 = pneg %p101
      $region18: #{_lambda_.7} parent=11 // pred_check_branch
        %170 = sbr.rel (%p168) target = $region20
      $region19: #{_lambda_.7} parent=11 // pred_region
        _
      $region20: #{_lambda_.7} parent=11 // pred_fallthru
        _
      // Predicated region
      $region21: #{_lambda_.7} parent=11 // pred_check
        %p171 = pneg %p122
      $region22: #{_lambda_.7} parent=11 // pred_check_branch
        %173 = sbr.rel (%p171) target = $region24
      $region23: #{_lambda_.7} parent=11 // pred_region
        _
      $region24: #{_lambda_.7} parent=11 // pred_fallthru
        _
    $region12: #{_lambda_.7} parent=5 // pred_fallthru
      _
    %p174 = scmp.lt.s32.totalorder %s10, 180
    // Predicated region
    $region25: #{_lambda_.7} parent=5 // pred_check
      %p175 = pneg %p174
    $region26: #{_lambda_.7} parent=5 // pred_check_branch
      %177 = sbr.rel (%p175) target = $region28
    $region27: #{_lambda_.7} parent=5 // pred_region
      // Predicated region
      $region29: #{_lambda_.7} parent=27 // pred_check
        %p178 = pneg %p53
      $region30: #{_lambda_.7} parent=27 // pred_check_branch
        %180 = sbr.rel (%p178) target = $region32
      $region31: #{_lambda_.7} parent=27 // pred_region
        %s181 = sadd.s32 %s18, %s19
        %p182 = scmp.lt.s32.totalorder %s17, 1
        %s183 = scalar_select %p182, %s17, 1
        %p184 = scmp.lt.s32.totalorder %s181, 21
        %s185 = scalar_select %p184, %s181, 21
        %s186 = smul.addr %s185, 28
        %s187 = smul.addr %s183, 616
        %s188 = sadd.s32 %s186, %s187
        %s189 = smul.addr %s188, 4
        %s190 = scalar_lea.vmem %s0, %s189
        %s191 = sadd.s32 %s18, %s19
      $region32: #{_lambda_.7} parent=27 // pred_fallthru
        _
    $region28: #{_lambda_.7} parent=5 // pred_fallthru
      _
    %p192 = scmp.le.s32.totalorder 1, %s10
    %p193 = scmp.lt.s32.totalorder %s10, 181
    %p194 = pnand %p192, %p193
    %p195 = pneg %p194
    // Predicated region
    $region33: #{_lambda_.7} parent=5 // pred_check
      _
    $region34: #{_lambda_.7} parent=5 // pred_check_branch
      %197 = sbr.rel (%p194) target = $region36
    $region35: #{_lambda_.7} parent=5 // pred_region
      %s198 = ssub.s32 %s10, 1
      %s199 = sadd.s32 %s21, %s22
      %p200 = scmp.lt.s32.totalorder %s20, 1
      %s201 = scalar_select %p200, %s20, 1
      %p202 = scmp.lt.s32.totalorder %s199, 21
      %s203 = scalar_select %p202, %s199, 21
      %s204 = smul.addr %s203, 28
      %s205 = smul.addr %s201, 616
      %s206 = sadd.s32 %s204, %s205
      %s207 = smul.addr %s206, 4
      %s208 = scalar_lea.vmem %s0, %s207
      %p209 = pneg %p59
      %p210 = pneg %p56
      %p211 = pneg %p80
      %p212 = pneg %p77
      %p213 = pneg %p101
      %p214 = pneg %p98
      %p215 = pneg %p122
      %p216 = pneg %p119
      %p217 = pneg %p150
      %p218 = pneg %p147
      %p219 = scmp.lt.s32.totalorder %s20, 1
      %s220 = scalar_select %p219, %s20, 1
      %p221 = scmp.lt.s32.totalorder %s21, 17
      %s222 = scalar_select %p221, %s21, 17
      %s223 = smul.addr %s222, 14
      %s224 = smul.addr %s220, 252
      %s225 = sadd.s32 %s223, %s224
      %s226 = smul.addr %s225, 4
      %s227 = scalar_lea.vmem %s4, %s226
      %s228 = sadd.s32 %s21, %s22
      %p229 = scmp.lt.s32.totalorder %s20, 1
      %s230 = scalar_select %p229, %s20, 1
      %p231 = scmp.lt.s32.totalorder %s228, 21
      %s232 = scalar_select %p231, %s228, 21
      %s233 = smul.addr %s232, 28
      %s234 = smul.addr %s230, 616
      %s235 = sadd.s32 %s233, %s234
      %s236 = smul.addr %s235, 4
      %s237 = scalar_lea.vmem %s0, %s236
      %s238 = sadd.s32 %s21, %s22
      %p239 = scmp.lt.s32.totalorder %s20, 1
      %s240 = scalar_select %p239, %s20, 1
      %p241 = scmp.lt.s32.totalorder %s21, 17
      %s242 = scalar_select %p241, %s21, 17
      %s243 = smul.addr %s242, 14
      %s244 = smul.addr %s240, 252
      %s245 = sadd.s32 %s243, %s244
      %s246 = smul.addr %s245, 4
      %s247 = scalar_lea.vmem %s4, %s246
      %p249 = scmp.eq.s32.totalorder %s22, 0
      // Predicated region
      $region37: #{_lambda_.7} parent=35 // pred_check
        %p250 = pneg %p249
      $region38: #{_lambda_.7} parent=35 // pred_check_branch
        %252 = sbr.rel (%p250) target = $region40
      $region39: #{_lambda_.7} parent=35 // pred_region
        %253 = vst [vmem:[#allocation2] sm:$0xff] 0.0
        %254 = vst [vmem:[#allocation2 + $0x8] sm:$0xff] 0.0
        %255 = vst [vmem:[#allocation2 + $0x10] sm:$0xff] 0.0
        %256 = vst [vmem:[#allocation2 + $0x18] sm:$0xff] 0.0
        %257 = vst [vmem:[#allocation2 + $0x20] sm:$0xff] 0.0
        %258 = vst [vmem:[#allocation2 + $0x28] sm:$0xff] 0.0
        %259 = vst [vmem:[#allocation2 + $0x30] sm:$0xff] 0.0
        %260 = vst [vmem:[#allocation2 + $0x38] sm:$0xff] 0.0
        %261 = vst [vmem:[#allocation2 + $0x40] sm:$0xff] 0.0
        %262 = vst [vmem:[#allocation2 + $0x48] sm:$0xff] 0.0
        %263 = vst [vmem:[#allocation2 + $0x50] sm:$0xff] 0.0
        %264 = vst [vmem:[#allocation2 + $0x58] sm:$0xff] 0.0
        %265 = vst [vmem:[#allocation2 + $0x60] sm:$0xff] 0.0
        %266 = vst [vmem:[#allocation2 + $0x68] sm:$0xff] 0.0
      $region40: #{_lambda_.7} parent=35 // pred_fallthru
        _
      %v267 = vld [vmem:[#allocation2] sm:$0xff]
      %v268 = vld [vmem:[#allocation2 + $0x8] sm:$0xff]
      %v269 = vld [vmem:[#allocation2 + $0x10] sm:$0xff]
      %v270 = vld [vmem:[#allocation2 + $0x18] sm:$0xff]
      %v271 = vld [vmem:[#allocation2 + $0x20] sm:$0xff]
      %v272 = vld [vmem:[#allocation2 + $0x28] sm:$0xff]
      %v273 = vld [vmem:[#allocation2 + $0x30] sm:$0xff]
      %v274 = vld [vmem:[#allocation2 + $0x38] sm:$0xff]
      %v275 = vld [vmem:[#allocation2 + $0x40] sm:$0xff]
      %v276 = vld [vmem:[#allocation2 + $0x48] sm:$0xff]
      %v277 = vld [vmem:[#allocation2 + $0x50] sm:$0xff]
      %v278 = vld [vmem:[#allocation2 + $0x58] sm:$0xff]
      %v279 = vld [vmem:[#allocation2 + $0x60] sm:$0xff]
      %v280 = vld [vmem:[#allocation2 + $0x68] sm:$0xff]
      %v281 = vld [vmem:[%s237] sm:$0xff]
      %v282 = vld [vmem:[%s237 + $0x8] sm:$0xff]
      %v283 = vld [vmem:[%s237 + $0x10] sm:$0xff]
      %v284 = vld [vmem:[%s237 + $0x18] sm:$0xff]
      %v285 = vld [vmem:[%s237 + $0x20] sm:$0xff]
      %v286 = vld [vmem:[%s237 + $0x28] sm:$0xff]
      %v287 = vld [vmem:[%s237 + $0x30] sm:$0xff]
      %v288 = vld [vmem:[%s237 + $0x38] sm:$0xff]
      %v289 = vld [vmem:[%s237 + $0x40] sm:$0xff]
      %v290 = vld [vmem:[%s237 + $0x48] sm:$0xff]
      %v291 = vld [vmem:[%s237 + $0x50] sm:$0xff]
      %v292 = vld [vmem:[%s237 + $0x58] sm:$0xff]
      %v293 = vld [vmem:[%s237 + $0x60] sm:$0xff]
      %v294 = vld [vmem:[%s237 + $0x68] sm:$0xff]
      %s295 = smul.u32 %s22, 30
      %s296 = smul.addr %s295, 4
      %s297 = scalar_lea.vmem %s1, %s296
      %v298 = vld [vmem:[%s297] sm:$0xf]
      %v299 = vld [vmem:[%s297 + $0x4] sm:$0xf]
      %v300 = vld [vmem:[%s297 + $0x8] sm:$0xf]
      %v301 = vld [vmem:[%s297 + $0xc] sm:$0xf]
      %v302 = vld [vmem:[%s297 + $0x10] sm:$0xf]
      %v303 = vld [vmem:[%s297 + $0x14] sm:$0xf]
      %v304 = vld [vmem:[%s297 + $0x18] sm:$0xf]
      %v305 = vld [vmem:[%s297 + $0x1c] sm:$0xf]
      %v306 = vld [vmem:[%s297 + $0x20] sm:$0xf]
      %v307 = vld [vmem:[%s297 + $0x24] sm:$0xf]
      %v308 = vld [vmem:[%s297 + $0x28] sm:$0xf]
      %v309 = vld [vmem:[%s297 + $0x2c] sm:$0xf]
      %v310 = vld [vmem:[%s297 + $0x30] sm:$0xf]
      %v311 = vld [vmem:[%s297 + $0x34] sm:$0xf]
      %v312 = vld [vmem:[%s297 + $0x38] sm:$0xf]
      %v313 = vld [vmem:[%s297 + $0x3c] sm:$0xf]
      %v314 = vld [vmem:[%s297 + $0x40] sm:$0xf]
      %v315 = vld [vmem:[%s297 + $0x44] sm:$0xf]
      %v316 = vld [vmem:[%s297 + $0x48] sm:$0xf]
      %v317 = vld [vmem:[%s297 + $0x4c] sm:$0xf]
      %v318 = vld [vmem:[%s297 + $0x50] sm:$0xf]
      %v319 = vld [vmem:[%s297 + $0x54] sm:$0xf]
      %v320 = vld [vmem:[%s297 + $0x58] sm:$0xf]
      %v321 = vld [vmem:[%s297 + $0x5c] sm:$0xf]
      %v322 = vld [vmem:[%s297 + $0x60] sm:$0xf]
      %v323 = vld [vmem:[%s297 + $0x64] sm:$0xf]
      %v324 = vld [vmem:[%s297 + $0x68] sm:$0xf]
      %v325 = vld [vmem:[%s297 + $0x6c] sm:$0xf]
      %v326 = vld [vmem:[%s297 + $0x70] sm:$0xf]
      %v327 = vld [vmem:[%s297 + $0x74] sm:$0xf]
      %v342 = vunpack.c.l.b16 %v281
      %v343 = vunpack.c.h.b16 %v281
      %v344 = vunpack.c.l.b16 %v282
      %v345 = vunpack.c.h.b16 %v282
      %v346 = vunpack.c.l.b16 %v283
      %v347 = vunpack.c.h.b16 %v283
      %v348 = vunpack.c.l.b16 %v284
      %v349 = vunpack.c.h.b16 %v284
      %v350 = vunpack.c.l.b16 %v285
      %v351 = vunpack.c.h.b16 %v285
      %v352 = vunpack.c.l.b16 %v286
      %v353 = vunpack.c.h.b16 %v286
      %v354 = vunpack.c.l.b16 %v287
      %v355 = vunpack.c.h.b16 %v287
      %v356 = vunpack.c.l.b16 %v288
      %v357 = vunpack.c.h.b16 %v288
      %v358 = vunpack.c.l.b16 %v289
      %v359 = vunpack.c.h.b16 %v289
      %v360 = vunpack.c.l.b16 %v290
      %v361 = vunpack.c.h.b16 %v290
      %v362 = vunpack.c.l.b16 %v291
      %v363 = vunpack.c.h.b16 %v291
      %v364 = vunpack.c.l.b16 %v292
      %v365 = vunpack.c.h.b16 %v292
      %v366 = vunpack.c.l.b16 %v293
      %v367 = vunpack.c.h.b16 %v293
      %v368 = vunpack.c.l.b16 %v294
      %v369 = vunpack.c.h.b16 %v294
      %v370 = vpack.c.b16 %v344, %v342
      %v371 = vpack.c.b16 %v345, %v343
      %v372 = vpack.c.b16 %v348, %v346
      %v373 = vpack.c.b16 %v349, %v347
      %v374 = vpack.c.b16 %v352, %v350
      %v375 = vpack.c.b16 %v353, %v351
      %v376 = vpack.c.b16 %v356, %v354
      %v377 = vpack.c.b16 %v357, %v355
      %v378 = vpack.c.b16 %v360, %v358
      %v379 = vpack.c.b16 %v361, %v359
      %v380 = vpack.c.b16 %v364, %v362
      %v381 = vpack.c.b16 %v365, %v363
      %v382 = vpack.c.b16 %v368, %v366
      %v383 = vpack.c.b16 %v369, %v367
      %v421 = vunpack.c.l.b16 %v298
      %v422 = vunpack.c.l.b16 %v299
      %v423 = vunpack.c.l.b16 %v300
      %v424 = vunpack.c.l.b16 %v301
      %v425 = vunpack.c.l.b16 %v302
      %v426 = vunpack.c.l.b16 %v303
      %v427 = vunpack.c.l.b16 %v304
      %v428 = vunpack.c.l.b16 %v305
      %v429 = vunpack.c.l.b16 %v306
      %v430 = vunpack.c.l.b16 %v307
      %v431 = vunpack.c.l.b16 %v308
      %v432 = vunpack.c.l.b16 %v309
      %v433 = vunpack.c.l.b16 %v310
      %v434 = vunpack.c.l.b16 %v311
      %v435 = vunpack.c.l.b16 %v312
      %v436 = vunpack.c.l.b16 %v313
      %v437 = vunpack.c.l.b16 %v314
      %v438 = vunpack.c.l.b16 %v315
      %v439 = vunpack.c.l.b16 %v316
      %v440 = vunpack.c.l.b16 %v317
      %v441 = vunpack.c.l.b16 %v318
      %v442 = vunpack.c.l.b16 %v319
      %v443 = vunpack.c.l.b16 %v320
      %v444 = vunpack.c.l.b16 %v321
      %v445 = vunpack.c.l.b16 %v322
      %v446 = vunpack.c.l.b16 %v323
      %v447 = vunpack.c.l.b16 %v324
      %v448 = vunpack.c.l.b16 %v325
      %v449 = vunpack.c.l.b16 %v326
      %v450 = vunpack.c.l.b16 %v327
      %v451 = vpack.c.b16 %v422, %v421
      %v452 = vpack.c.b16 %v424, %v423
      %v453 = vpack.c.b16 %v426, %v425
      %v454 = vpack.c.b16 %v428, %v427
      %v455 = vpack.c.b16 %v430, %v429
      %v456 = vpack.c.b16 %v432, %v431
      %v457 = vpack.c.b16 %v434, %v433
      %v458 = vpack.c.b16 %v436, %v435
      %v459 = vpack.c.b16 %v438, %v437
      %v460 = vpack.c.b16 %v440, %v439
      %v461 = vpack.c.b16 %v442, %v441
      %v462 = vpack.c.b16 %v444, %v443
      %v463 = vpack.c.b16 %v446, %v445
      %v464 = vpack.c.b16 %v448, %v447
      %v465 = vpack.c.b16 %v450, %v449
      %vm481 = vcmask 916480
      %v483 = vsel %vm481, %v371, 0
      %v486 = vsel %vm481, %v373, 0
      %v489 = vsel %vm481, %v375, 0
      %v492 = vsel %vm481, %v377, 0
      %v495 = vsel %vm481, %v379, 0
      %v498 = vsel %vm481, %v381, 0
      %v501 = vsel %vm481, %v383, 0
      %503 = vmatprep.subr.bf16.mxu0 0
      %504 = vmatpush1.bf16.msra.mxu0 %v458
      %505 = vmatprep.subr.bf16.mxu0 0
      %506 = vmatpush1.bf16.msra.mxu0 %v457
      %507 = vmatprep.subr.bf16.mxu0 0
      %508 = vmatpush1.bf16.msra.mxu0 %v456
      %509 = vmatprep.subr.bf16.mxu0 0
      %510 = vmatpush1.bf16.msra.mxu0 %v455
      %511 = vmatprep.subr.bf16.mxu0 0
      %512 = vmatpush1.bf16.msra.mxu0 %v454
      %513 = vmatprep.subr.bf16.mxu0 0
      %514 = vmatpush1.bf16.msra.mxu0 %v453
      %515 = vmatprep.subr.bf16.mxu0 0
      %516 = vmatpush1.bf16.msra.mxu0 %v452
      %517 = vmatprep.subr.bf16.mxu0 0
      %518 = vmatpush1.bf16.msra.mxu0 %v451
      %519 = vmatprep.subr.bf16.mxu0 0
      %520 = vmatpush2.bf16.msra.mxu0 0
      %521 = vmatprep.subr.bf16.mxu0 0
      %522 = vmatpush2.bf16.msra.mxu0 %v465
      %523 = vmatprep.subr.bf16.mxu0 0
      %524 = vmatpush2.bf16.msra.mxu0 %v464
      %525 = vmatprep.subr.bf16.mxu0 0
      %526 = vmatpush2.bf16.msra.mxu0 %v463
      %527 = vmatprep.subr.bf16.mxu0 0
      %528 = vmatpush2.bf16.msra.mxu0 %v462
      %529 = vmatprep.subr.bf16.mxu0 0
      %530 = vmatpush2.bf16.msra.mxu0 %v461
      %531 = vmatprep.subr.bf16.mxu0 0
      %532 = vmatpush2.bf16.msra.mxu0 %v460
      %533 = vmatprep.subr.bf16.mxu0 0
      %534 = vmatpush2.bf16.msra.mxu0 %v459
      %535 = vmatprep.mubr.bf16.mxu0 %v483
      %536 = vmatmul.mubr.bf16.gmra.mxu0 %v370
      %v537 = vpop.f32.mrf.mxu0
      %v538 = vadd.f32 0.0, %v537
      %v539 = vpop.f32.mrf.mxu0
      %v540 = vpop.f32.mrf.mxu0
      %v541 = vadd.f32 0.0, %v540
      %v542 = vpop.f32.mrf.mxu0
      %543 = vmatprep.mubr.bf16.mxu0 %v486
      %544 = vmatmul.mubr.bf16.gmra.mxu0 %v372
      %v545 = vpop.f32.mrf.mxu0
      %v546 = vadd.f32 0.0, %v545
      %v547 = vpop.f32.mrf.mxu0
      %v548 = vpop.f32.mrf.mxu0
      %v549 = vadd.f32 0.0, %v548
      %v550 = vpop.f32.mrf.mxu0
      %551 = vmatprep.mubr.bf16.mxu0 %v489
      %552 = vmatmul.mubr.bf16.gmra.mxu0 %v374
      %v553 = vpop.f32.mrf.mxu0
      %v554 = vadd.f32 0.0, %v553
      %v555 = vpop.f32.mrf.mxu0
      %v556 = vpop.f32.mrf.mxu0
      %v557 = vadd.f32 0.0, %v556
      %v558 = vpop.f32.mrf.mxu0
      %559 = vmatprep.mubr.bf16.mxu0 %v492
      %560 = vmatmul.mubr.bf16.gmra.mxu0 %v376
      %v561 = vpop.f32.mrf.mxu0
      %v562 = vadd.f32 0.0, %v561
      %v563 = vpop.f32.mrf.mxu0
      %v564 = vpop.f32.mrf.mxu0
      %v565 = vadd.f32 0.0, %v564
      %v566 = vpop.f32.mrf.mxu0
      %567 = vmatprep.mubr.bf16.mxu0 %v495
      %568 = vmatmul.mubr.bf16.gmra.mxu0 %v378
      %v569 = vpop.f32.mrf.mxu0
      %v570 = vadd.f32 0.0, %v569
      %v571 = vpop.f32.mrf.mxu0
      %v572 = vpop.f32.mrf.mxu0
      %v573 = vadd.f32 0.0, %v572
      %v574 = vpop.f32.mrf.mxu0
      %575 = vmatprep.mubr.bf16.mxu0 %v498
      %576 = vmatmul.mubr.bf16.gmra.mxu0 %v380
      %v577 = vpop.f32.mrf.mxu0
      %v578 = vadd.f32 0.0, %v577
      %v579 = vpop.f32.mrf.mxu0
      %v580 = vpop.f32.mrf.mxu0
      %v581 = vadd.f32 0.0, %v580
      %v582 = vpop.f32.mrf.mxu0
      %583 = vmatprep.mubr.bf16.mxu0 %v501
      %584 = vmatmul.mubr.bf16.gmra.mxu0 %v382
      %v585 = vpop.f32.mrf.mxu0
      %v586 = vadd.f32 0.0, %v585
      %v587 = vpop.f32.mrf.mxu0
      %v588 = vpop.f32.mrf.mxu0
      %v589 = vadd.f32 0.0, %v588
      %v590 = vpop.f32.mrf.mxu0
      %591 = vdwg.mxu0
      %v592 = vadd.f32 %v267, %v538
      %v593 = vadd.f32 %v268, %v541
      %v594 = vadd.f32 %v269, %v546
      %v595 = vadd.f32 %v270, %v549
      %v596 = vadd.f32 %v271, %v554
      %v597 = vadd.f32 %v272, %v557
      %v598 = vadd.f32 %v273, %v562
      %v599 = vadd.f32 %v274, %v565
      %v600 = vadd.f32 %v275, %v570
      %v601 = vadd.f32 %v276, %v573
      %v602 = vadd.f32 %v277, %v578
      %v603 = vadd.f32 %v278, %v581
      %v604 = vadd.f32 %v279, %v586
      %v605 = vadd.f32 %v280, %v589
      %606 = vst [vmem:[#allocation2] sm:$0xff] %v592
      %607 = vst [vmem:[#allocation2 + $0x8] sm:$0xff] %v593
      %608 = vst [vmem:[#allocation2 + $0x10] sm:$0xff] %v594
      %609 = vst [vmem:[#allocation2 + $0x18] sm:$0xff] %v595
      %610 = vst [vmem:[#allocation2 + $0x20] sm:$0xff] %v596
      %611 = vst [vmem:[#allocation2 + $0x28] sm:$0xff] %v597
      %612 = vst [vmem:[#allocation2 + $0x30] sm:$0xff] %v598
      %613 = vst [vmem:[#allocation2 + $0x38] sm:$0xff] %v599
      %614 = vst [vmem:[#allocation2 + $0x40] sm:$0xff] %v600
      %615 = vst [vmem:[#allocation2 + $0x48] sm:$0xff] %v601
      %616 = vst [vmem:[#allocation2 + $0x50] sm:$0xff] %v602
      %617 = vst [vmem:[#allocation2 + $0x58] sm:$0xff] %v603
      %618 = vst [vmem:[#allocation2 + $0x60] sm:$0xff] %v604
      %619 = vst [vmem:[#allocation2 + $0x68] sm:$0xff] %v605
      %p620 = scmp.eq.s32.totalorder %s22, 4
      // Predicated region
      $region41: #{_lambda_.7} parent=35 // pred_check
        %p621 = pneg %p620
      $region42: #{_lambda_.7} parent=35 // pred_check_branch
        %623 = sbr.rel (%p621) target = $region44
      $region43: #{_lambda_.7} parent=35 // pred_region
        %v624 = vld [vmem:[#allocation2] sm:$0xff]
        %v625 = vld [vmem:[#allocation2 + $0x8] sm:$0xff]
        %v626 = vld [vmem:[#allocation2 + $0x10] sm:$0xff]
        %v627 = vld [vmem:[#allocation2 + $0x18] sm:$0xff]
        %v628 = vld [vmem:[#allocation2 + $0x20] sm:$0xff]
        %v629 = vld [vmem:[#allocation2 + $0x28] sm:$0xff]
        %v630 = vld [vmem:[#allocation2 + $0x30] sm:$0xff]
        %v631 = vld [vmem:[#allocation2 + $0x38] sm:$0xff]
        %v632 = vld [vmem:[#allocation2 + $0x40] sm:$0xff]
        %v633 = vld [vmem:[#allocation2 + $0x48] sm:$0xff]
        %v634 = vld [vmem:[#allocation2 + $0x50] sm:$0xff]
        %v635 = vld [vmem:[#allocation2 + $0x58] sm:$0xff]
        %v636 = vld [vmem:[#allocation2 + $0x60] sm:$0xff]
        %v637 = vld [vmem:[#allocation2 + $0x68] sm:$0xff]
        %v638 = vld [vmem:[%s2] sm:$0x1]
        %v640 = vlaneseq
        %v641 = vshrl.u32 %v640, 7
        %v642 = vsub.s32 0, %v641
        %v643 = vrot.slane %v638, %v642
        %v645 = vmul.f32 %v624, %v643
        %v646 = vmul.f32 %v625, %v643
        %v647 = vmul.f32 %v626, %v643
        %v648 = vmul.f32 %v627, %v643
        %v649 = vmul.f32 %v628, %v643
        %v650 = vmul.f32 %v629, %v643
        %v651 = vmul.f32 %v630, %v643
        %v652 = vmul.f32 %v631, %v643
        %v653 = vmul.f32 %v632, %v643
        %v654 = vmul.f32 %v633, %v643
        %v655 = vmul.f32 %v634, %v643
        %v656 = vmul.f32 %v635, %v643
        %v657 = vmul.f32 %v636, %v643
        %v658 = vmul.f32 %v637, %v643
        %v659 = vld [vmem:[%s3] sm:$0x1]
        %v661 = vlaneseq
        %v662 = vshrl.u32 %v661, 7
        %v663 = vsub.s32 0, %v662
        %v664 = vrot.slane %v659, %v663
        %v666 = vadd.f32 %v645, %v664
        %v667 = vadd.f32 %v646, %v664
        %v668 = vadd.f32 %v647, %v664
        %v669 = vadd.f32 %v648, %v664
        %v670 = vadd.f32 %v649, %v664
        %v671 = vadd.f32 %v650, %v664
        %v672 = vadd.f32 %v651, %v664
        %v673 = vadd.f32 %v652, %v664
        %v674 = vadd.f32 %v653, %v664
        %v675 = vadd.f32 %v654, %v664
        %v676 = vadd.f32 %v655, %v664
        %v677 = vadd.f32 %v656, %v664
        %v678 = vadd.f32 %v657, %v664
        %v679 = vadd.f32 %v658, %v664
        %v680 = vmul.f32 %v666, 0.1
        %v681 = vmul.f32 %v667, 0.1
        %v682 = vmul.f32 %v668, 0.1
        %v683 = vmul.f32 %v669, 0.1
        %v684 = vmul.f32 %v670, 0.1
        %v685 = vmul.f32 %v671, 0.1
        %v686 = vmul.f32 %v672, 0.1
        %v687 = vmul.f32 %v673, 0.1
        %v688 = vmul.f32 %v674, 0.1
        %v689 = vmul.f32 %v675, 0.1
        %v690 = vmul.f32 %v676, 0.1
        %v691 = vmul.f32 %v677, 0.1
        %v692 = vmul.f32 %v678, 0.1
        %v693 = vmul.f32 %v679, 0.1
        %v694 = vmax.f32 %v666, %v680
        %v695 = vmax.f32 %v667, %v681
        %v696 = vmax.f32 %v668, %v682
        %v697 = vmax.f32 %v669, %v683
        %v698 = vmax.f32 %v670, %v684
        %v699 = vmax.f32 %v671, %v685
        %v700 = vmax.f32 %v672, %v686
        %v701 = vmax.f32 %v673, %v687
        %v702 = vmax.f32 %v674, %v688
        %v703 = vmax.f32 %v675, %v689
        %v704 = vmax.f32 %v676, %v690
        %v705 = vmax.f32 %v677, %v691
        %v706 = vmax.f32 %v678, %v692
        %v707 = vmax.f32 %v679, %v693
        %v708 = vpack.c.bf16 %v695, %v694
        %v709 = vpack.c.bf16 %v697, %v696
        %v710 = vpack.c.bf16 %v699, %v698
        %v711 = vpack.c.bf16 %v701, %v700
        %v712 = vpack.c.bf16 %v703, %v702
        %v713 = vpack.c.bf16 %v705, %v704
        %v714 = vpack.c.bf16 %v707, %v706
        %v722 = vunpack.c.l.b16 %v708
        %v723 = vunpack.c.h.b16 %v708
        %v724 = vunpack.c.l.b16 %v709
        %v725 = vunpack.c.h.b16 %v709
        %v726 = vunpack.c.l.b16 %v710
        %v727 = vunpack.c.h.b16 %v710
        %v728 = vunpack.c.l.b16 %v711
        %v729 = vunpack.c.h.b16 %v711
        %v730 = vunpack.c.l.b16 %v712
        %v731 = vunpack.c.h.b16 %v712
        %v732 = vunpack.c.l.b16 %v713
        %v733 = vunpack.c.h.b16 %v713
        %v734 = vunpack.c.l.b16 %v714
        %v735 = vunpack.c.h.b16 %v714
        %v736 = vpack.c.b16 %v722, %v722
        %v737 = vpack.c.b16 %v723, %v723
        %v738 = vpack.c.b16 %v724, %v724
        %v739 = vpack.c.b16 %v725, %v725
        %v740 = vpack.c.b16 %v726, %v726
        %v741 = vpack.c.b16 %v727, %v727
        %v742 = vpack.c.b16 %v728, %v728
        %v743 = vpack.c.b16 %v729, %v729
        %v744 = vpack.c.b16 %v730, %v730
        %v745 = vpack.c.b16 %v731, %v731
        %v746 = vpack.c.b16 %v732, %v732
        %v747 = vpack.c.b16 %v733, %v733
        %v748 = vpack.c.b16 %v734, %v734
        %v749 = vpack.c.b16 %v735, %v735
        %764 = vst [vmem:[%s247] sm:$0xf] %v736
        %765 = vst [vmem:[%s247 + $0x4] sm:$0xf] %v737
        %766 = vst [vmem:[%s247 + $0x8] sm:$0xf] %v738
        %767 = vst [vmem:[%s247 + $0xc] sm:$0xf] %v739
        %768 = vst [vmem:[%s247 + $0x10] sm:$0xf] %v740
        %769 = vst [vmem:[%s247 + $0x14] sm:$0xf] %v741
        %770 = vst [vmem:[%s247 + $0x18] sm:$0xf] %v742
        %771 = vst [vmem:[%s247 + $0x1c] sm:$0xf] %v743
        %772 = vst [vmem:[%s247 + $0x20] sm:$0xf] %v744
        %773 = vst [vmem:[%s247 + $0x24] sm:$0xf] %v745
        %774 = vst [vmem:[%s247 + $0x28] sm:$0xf] %v746
        %775 = vst [vmem:[%s247 + $0x2c] sm:$0xf] %v747
        %776 = vst [vmem:[%s247 + $0x30] sm:$0xf] %v748
        %777 = vst [vmem:[%s247 + $0x34] sm:$0xf] %v749
      $region44: #{_lambda_.7} parent=35 // pred_fallthru
        _
      %p778 = scmp.lt.s32.totalorder %s20, 1
      %s779 = scalar_select %p778, %s20, 1
      %p780 = scmp.lt.s32.totalorder %s21, 17
      %s781 = scalar_select %p780, %s21, 17
      %s782 = smul.addr %s781, 14
      %s783 = smul.addr %s779, 252
      %s784 = sadd.s32 %s782, %s783
      %s785 = smul.addr %s784, 4
      %s786 = scalar_lea.vmem %s4, %s785
      // Predicated region
      $region45: #{_lambda_.7} parent=35 // pred_check
        %p787 = pneg %p147
      $region46: #{_lambda_.7} parent=35 // pred_check_branch
        %789 = sbr.rel (%p787) target = $region48
      $region47: #{_lambda_.7} parent=35 // pred_region
        _
      $region48: #{_lambda_.7} parent=35 // pred_fallthru
        _
    $region36: #{_lambda_.7} parent=5 // pred_fallthru
      _
    %p790 = scmp.le.s32.totalorder 2, %s10
    // Predicated region
    $region49: #{_lambda_.7} parent=5 // pred_check
      %p791 = pneg %p790
    $region50: #{_lambda_.7} parent=5 // pred_check_branch
      %793 = sbr.rel (%p791) target = $region52
    $region51: #{_lambda_.7} parent=5 // pred_region
      %s794 = ssub.s32 %s10, 2
      // Predicated region
      $region53: #{_lambda_.7} parent=51 // pred_check
        %p795 = pneg %p153
      $region54: #{_lambda_.7} parent=51 // pred_check_branch
        %797 = sbr.rel (%p795) target = $region56
      $region55: #{_lambda_.7} parent=51 // pred_region
        %p798 = scmp.lt.s32.totalorder %s23, 1
        %s799 = scalar_select %p798, %s23, 1
        %p800 = scmp.lt.s32.totalorder %s24, 17
        %s801 = scalar_select %p800, %s24, 17
        %s802 = smul.addr %s801, 14
        %s803 = smul.addr %s799, 252
        %s804 = sadd.s32 %s802, %s803
        %s805 = smul.addr %s804, 4
        %s806 = scalar_lea.vmem %s4, %s805
      $region56: #{_lambda_.7} parent=51 // pred_fallthru
        _
    $region52: #{_lambda_.7} parent=5 // pred_fallthru
      _
  $region6: #{_lambda_.7} parent=0 // loop_footer
    %s14 = sadd.s32 1, %s10
  $region7: #{_lambda_.7} parent=0 // loop_footer_branch
    %9 = sbr.rel target = $region3
  $region8: #{_lambda_.7} parent=0 // loop_exit
    _

// kernel: _lambda_.8
$region0: #{_lambda_.8}
  #allocation0 [shape = 'u32[]', space=smem, size = 0x4, offset = 0x4, fixed_abs, tag = 'smem constant byte address 0x4 - core index']
  #allocation1 [shape = 'u32[144,128]{1,0:T(1,128)}', space=vmem, size = 0x12000, scoped, tag = 'internal scratch']
  %s0 = inlined_call_operand.vmem [shape: bf16[8,128,128], index: 0, kind: input, shape index: {}]
  %s1 = inlined_call_operand.vmem [shape: bf16[128,128], index: 1, kind: output, shape index: {}]
  %s2 = sld [smem:[#allocation0]]
  $region14: #{_lambda_.8} parent=0
    _
  %s4 = ssub.s32 1, %s2
  %s5 = scalar_select 0, %s4, %s2
  // Predicated region
  $region2: #{_lambda_.8} parent=0 // pred_check
    _
  $region3: #{_lambda_.8} parent=0 // pred_check_branch
    %7 = sbr.rel (0) target = $region5
  $region4: #{_lambda_.8} parent=0 // pred_region
    _
  $region5: #{_lambda_.8} parent=0 // pred_fallthru
    _
  %v8 = vld [vmem:[%s0] sm:$0xf]
  %v9 = vld [vmem:[%s0 + $0x4] sm:$0xf]
  %v10 = vld [vmem:[%s0 + $0x8] sm:$0xf]
  %v11 = vld [vmem:[%s0 + $0xc] sm:$0xf]
  %v12 = vld [vmem:[%s0 + $0x10] sm:$0xf]
  %v13 = vld [vmem:[%s0 + $0x14] sm:$0xf]
  %v14 = vld [vmem:[%s0 + $0x18] sm:$0xf]
  %v15 = vld [vmem:[%s0 + $0x1c] sm:$0xf]
  %v16 = vld [vmem:[%s0 + $0x20] sm:$0xf]
  %v17 = vld [vmem:[%s0 + $0x24] sm:$0xf]
  %v18 = vld [vmem:[%s0 + $0x28] sm:$0xf]
  %v19 = vld [vmem:[%s0 + $0x2c] sm:$0xf]
  %v20 = vld [vmem:[%s0 + $0x30] sm:$0xf]
  %v21 = vld [vmem:[%s0 + $0x34] sm:$0xf]
  %v22 = vld [vmem:[%s0 + $0x38] sm:$0xf]
  %v23 = vld [vmem:[%s0 + $0x3c] sm:$0xf]
  %s24 = scalar_lea.vmem %s0, 64
  %v25 = vld [vmem:[%s24] sm:$0xf]
  %v26 = vld [vmem:[%s24 + $0x4] sm:$0xf]
  %v27 = vld [vmem:[%s24 + $0x8] sm:$0xf]
  %v28 = vld [vmem:[%s24 + $0xc] sm:$0xf]
  %v29 = vld [vmem:[%s24 + $0x10] sm:$0xf]
  %v30 = vld [vmem:[%s24 + $0x14] sm:$0xf]
  %v31 = vld [vmem:[%s24 + $0x18] sm:$0xf]
  %v32 = vld [vmem:[%s24 + $0x1c] sm:$0xf]
  %v33 = vld [vmem:[%s24 + $0x20] sm:$0xf]
  %v34 = vld [vmem:[%s24 + $0x24] sm:$0xf]
  %v35 = vld [vmem:[%s24 + $0x28] sm:$0xf]
  %v36 = vld [vmem:[%s24 + $0x2c] sm:$0xf]
  %v37 = vld [vmem:[%s24 + $0x30] sm:$0xf]
  %v38 = vld [vmem:[%s24 + $0x34] sm:$0xf]
  %v39 = vld [vmem:[%s24 + $0x38] sm:$0xf]
  %v40 = vld [vmem:[%s24 + $0x3c] sm:$0xf]
  %v41 = vmax.bf16 %v8, %v25
  %v42 = vmax.bf16 %v9, %v26
  %v43 = vmax.bf16 %v10, %v27
  %v44 = vmax.bf16 %v11, %v28
  %v45 = vmax.bf16 %v12, %v29
  %v46 = vmax.bf16 %v13, %v30
  %v47 = vmax.bf16 %v14, %v31
  %v48 = vmax.bf16 %v15, %v32
  %v49 = vmax.bf16 %v16, %v33
  %v50 = vmax.bf16 %v17, %v34
  %v51 = vmax.bf16 %v18, %v35
  %v52 = vmax.bf16 %v19, %v36
  %v53 = vmax.bf16 %v20, %v37
  %v54 = vmax.bf16 %v21, %v38
  %v55 = vmax.bf16 %v22, %v39
  %v56 = vmax.bf16 %v23, %v40
  %s57 = scalar_lea.vmem %s0, 128
  %v58 = vld [vmem:[%s57] sm:$0xf]
  %v59 = vld [vmem:[%s57 + $0x4] sm:$0xf]
  %v60 = vld [vmem:[%s57 + $0x8] sm:$0xf]
  %v61 = vld [vmem:[%s57 + $0xc] sm:$0xf]
  %v62 = vld [vmem:[%s57 + $0x10] sm:$0xf]
  %v63 = vld [vmem:[%s57 + $0x14] sm:$0xf]
  %v64 = vld [vmem:[%s57 + $0x18] sm:$0xf]
  %v65 = vld [vmem:[%s57 + $0x1c] sm:$0xf]
  %v66 = vld [vmem:[%s57 + $0x20] sm:$0xf]
  %v67 = vld [vmem:[%s57 + $0x24] sm:$0xf]
  %v68 = vld [vmem:[%s57 + $0x28] sm:$0xf]
  %v69 = vld [vmem:[%s57 + $0x2c] sm:$0xf]
  %v70 = vld [vmem:[%s57 + $0x30] sm:$0xf]
  %v71 = vld [vmem:[%s57 + $0x34] sm:$0xf]
  %v72 = vld [vmem:[%s57 + $0x38] sm:$0xf]
  %v73 = vld [vmem:[%s57 + $0x3c] sm:$0xf]
  %v74 = vmax.bf16 %v41, %v58
  %v75 = vmax.bf16 %v42, %v59
  %v76 = vmax.bf16 %v43, %v60
  %v77 = vmax.bf16 %v44, %v61
  %v78 = vmax.bf16 %v45, %v62
  %v79 = vmax.bf16 %v46, %v63
  %v80 = vmax.bf16 %v47, %v64
  %v81 = vmax.bf16 %v48, %v65
  %v82 = vmax.bf16 %v49, %v66
  %v83 = vmax.bf16 %v50, %v67
  %v84 = vmax.bf16 %v51, %v68
  %v85 = vmax.bf16 %v52, %v69
  %v86 = vmax.bf16 %v53, %v70
  %v87 = vmax.bf16 %v54, %v71
  %v88 = vmax.bf16 %v55, %v72
  %v89 = vmax.bf16 %v56, %v73
  %s90 = scalar_lea.vmem %s0, 192
  %v91 = vld [vmem:[%s90] sm:$0xf]
  %v92 = vld [vmem:[%s90 + $0x4] sm:$0xf]
  %v93 = vld [vmem:[%s90 + $0x8] sm:$0xf]
  %v94 = vld [vmem:[%s90 + $0xc] sm:$0xf]
  %v95 = vld [vmem:[%s90 + $0x10] sm:$0xf]
  %v96 = vld [vmem:[%s90 + $0x14] sm:$0xf]
  %v97 = vld [vmem:[%s90 + $0x18] sm:$0xf]
  %v98 = vld [vmem:[%s90 + $0x1c] sm:$0xf]
  %v99 = vld [vmem:[%s90 + $0x20] sm:$0xf]
  %v100 = vld [vmem:[%s90 + $0x24] sm:$0xf]
  %v101 = vld [vmem:[%s90 + $0x28] sm:$0xf]
  %v102 = vld [vmem:[%s90 + $0x2c] sm:$0xf]
  %v103 = vld [vmem:[%s90 + $0x30] sm:$0xf]
  %v104 = vld [vmem:[%s90 + $0x34] sm:$0xf]
  %v105 = vld [vmem:[%s90 + $0x38] sm:$0xf]
  %v106 = vld [vmem:[%s90 + $0x3c] sm:$0xf]
  %v107 = vmax.bf16 %v74, %v91
  %v108 = vmax.bf16 %v75, %v92
  %v109 = vmax.bf16 %v76, %v93
  %v110 = vmax.bf16 %v77, %v94
  %v111 = vmax.bf16 %v78, %v95
  %v112 = vmax.bf16 %v79, %v96
  %v113 = vmax.bf16 %v80, %v97
  %v114 = vmax.bf16 %v81, %v98
  %v115 = vmax.bf16 %v82, %v99
  %v116 = vmax.bf16 %v83, %v100
  %v117 = vmax.bf16 %v84, %v101
  %v118 = vmax.bf16 %v85, %v102
  %v119 = vmax.bf16 %v86, %v103
  %v120 = vmax.bf16 %v87, %v104
  %v121 = vmax.bf16 %v88, %v105
  %v122 = vmax.bf16 %v89, %v106
  %s123 = scalar_lea.vmem %s0, 256
  %v124 = vld [vmem:[%s123] sm:$0xf]
  %v125 = vld [vmem:[%s123 + $0x4] sm:$0xf]
  %v126 = vld [vmem:[%s123 + $0x8] sm:$0xf]
  %v127 = vld [vmem:[%s123 + $0xc] sm:$0xf]
  %v128 = vld [vmem:[%s123 + $0x10] sm:$0xf]
  %v129 = vld [vmem:[%s123 + $0x14] sm:$0xf]
  %v130 = vld [vmem:[%s123 + $0x18] sm:$0xf]
  %v131 = vld [vmem:[%s123 + $0x1c] sm:$0xf]
  %v132 = vld [vmem:[%s123 + $0x20] sm:$0xf]
  %v133 = vld [vmem:[%s123 + $0x24] sm:$0xf]
  %v134 = vld [vmem:[%s123 + $0x28] sm:$0xf]
  %v135 = vld [vmem:[%s123 + $0x2c] sm:$0xf]
  %v136 = vld [vmem:[%s123 + $0x30] sm:$0xf]
  %v137 = vld [vmem:[%s123 + $0x34] sm:$0xf]
  %v138 = vld [vmem:[%s123 + $0x38] sm:$0xf]
  %v139 = vld [vmem:[%s123 + $0x3c] sm:$0xf]
  %v140 = vmax.bf16 %v107, %v124
  %v141 = vmax.bf16 %v108, %v125
  %v142 = vmax.bf16 %v109, %v126
  %v143 = vmax.bf16 %v110, %v127
  %v144 = vmax.bf16 %v111, %v128
  %v145 = vmax.bf16 %v112, %v129
  %v146 = vmax.bf16 %v113, %v130
  %v147 = vmax.bf16 %v114, %v131
  %v148 = vmax.bf16 %v115, %v132
  %v149 = vmax.bf16 %v116, %v133
  %v150 = vmax.bf16 %v117, %v134
  %v151 = vmax.bf16 %v118, %v135
  %v152 = vmax.bf16 %v119, %v136
  %v153 = vmax.bf16 %v120, %v137
  %v154 = vmax.bf16 %v121, %v138
  %v155 = vmax.bf16 %v122, %v139
  %s156 = scalar_lea.vmem %s0, 320
  %v157 = vld [vmem:[%s156] sm:$0xf]
  %v158 = vld [vmem:[%s156 + $0x4] sm:$0xf]
  %v159 = vld [vmem:[%s156 + $0x8] sm:$0xf]
  %v160 = vld [vmem:[%s156 + $0xc] sm:$0xf]
  %v161 = vld [vmem:[%s156 + $0x10] sm:$0xf]
  %v162 = vld [vmem:[%s156 + $0x14] sm:$0xf]
  %v163 = vld [vmem:[%s156 + $0x18] sm:$0xf]
  %v164 = vld [vmem:[%s156 + $0x1c] sm:$0xf]
  %v165 = vld [vmem:[%s156 + $0x20] sm:$0xf]
  %v166 = vld [vmem:[%s156 + $0x24] sm:$0xf]
  %v167 = vld [vmem:[%s156 + $0x28] sm:$0xf]
  %v168 = vld [vmem:[%s156 + $0x2c] sm:$0xf]
  %v169 = vld [vmem:[%s156 + $0x30] sm:$0xf]
  %v170 = vld [vmem:[%s156 + $0x34] sm:$0xf]
  %v171 = vld [vmem:[%s156 + $0x38] sm:$0xf]
  %v172 = vld [vmem:[%s156 + $0x3c] sm:$0xf]
  %v173 = vmax.bf16 %v140, %v157
  %v174 = vmax.bf16 %v141, %v158
  %v175 = vmax.bf16 %v142, %v159
  %v176 = vmax.bf16 %v143, %v160
  %v177 = vmax.bf16 %v144, %v161
  %v178 = vmax.bf16 %v145, %v162
  %v179 = vmax.bf16 %v146, %v163
  %v180 = vmax.bf16 %v147, %v164
  %v181 = vmax.bf16 %v148, %v165
  %v182 = vmax.bf16 %v149, %v166
  %v183 = vmax.bf16 %v150, %v167
  %v184 = vmax.bf16 %v151, %v168
  %v185 = vmax.bf16 %v152, %v169
  %v186 = vmax.bf16 %v153, %v170
  %v187 = vmax.bf16 %v154, %v171
  %v188 = vmax.bf16 %v155, %v172
  %s189 = scalar_lea.vmem %s0, 384
  %v190 = vld [vmem:[%s189] sm:$0xf]
  %v191 = vld [vmem:[%s189 + $0x4] sm:$0xf]
  %v192 = vld [vmem:[%s189 + $0x8] sm:$0xf]
  %v193 = vld [vmem:[%s189 + $0xc] sm:$0xf]
  %v194 = vld [vmem:[%s189 + $0x10] sm:$0xf]
  %v195 = vld [vmem:[%s189 + $0x14] sm:$0xf]
  %v196 = vld [vmem:[%s189 + $0x18] sm:$0xf]
  %v197 = vld [vmem:[%s189 + $0x1c] sm:$0xf]
  %v198 = vld [vmem:[%s189 + $0x20] sm:$0xf]
  %v199 = vld [vmem:[%s189 + $0x24] sm:$0xf]
  %v200 = vld [vmem:[%s189 + $0x28] sm:$0xf]
  %v201 = vld [vmem:[%s189 + $0x2c] sm:$0xf]
  %v202 = vld [vmem:[%s189 + $0x30] sm:$0xf]
  %v203 = vld [vmem:[%s189 + $0x34] sm:$0xf]
  %v204 = vld [vmem:[%s189 + $0x38] sm:$0xf]
  %v205 = vld [vmem:[%s189 + $0x3c] sm:$0xf]
  %v206 = vmax.bf16 %v173, %v190
  %v207 = vmax.bf16 %v174, %v191
  %v208 = vmax.bf16 %v175, %v192
  %v209 = vmax.bf16 %v176, %v193
  %v210 = vmax.bf16 %v177, %v194
  %v211 = vmax.bf16 %v178, %v195
  %v212 = vmax.bf16 %v179, %v196
  %v213 = vmax.bf16 %v180, %v197
  %v214 = vmax.bf16 %v181, %v198
  %v215 = vmax.bf16 %v182, %v199
  %v216 = vmax.bf16 %v183, %v200
  %v217 = vmax.bf16 %v184, %v201
  %v218 = vmax.bf16 %v185, %v202
  %v219 = vmax.bf16 %v186, %v203
  %v220 = vmax.bf16 %v187, %v204
  %v221 = vmax.bf16 %v188, %v205
  %s222 = scalar_lea.vmem %s0, 448
  %v223 = vld [vmem:[%s222] sm:$0xf]
  %v224 = vld [vmem:[%s222 + $0x4] sm:$0xf]
  %v225 = vld [vmem:[%s222 + $0x8] sm:$0xf]
  %v226 = vld [vmem:[%s222 + $0xc] sm:$0xf]
  %v227 = vld [vmem:[%s222 + $0x10] sm:$0xf]
  %v228 = vld [vmem:[%s222 + $0x14] sm:$0xf]
  %v229 = vld [vmem:[%s222 + $0x18] sm:$0xf]
  %v230 = vld [vmem:[%s222 + $0x1c] sm:$0xf]
  %v231 = vld [vmem:[%s222 + $0x20] sm:$0xf]
  %v232 = vld [vmem:[%s222 + $0x24] sm:$0xf]
  %v233 = vld [vmem:[%s222 + $0x28] sm:$0xf]
  %v234 = vld [vmem:[%s222 + $0x2c] sm:$0xf]
  %v235 = vld [vmem:[%s222 + $0x30] sm:$0xf]
  %v236 = vld [vmem:[%s222 + $0x34] sm:$0xf]
  %v237 = vld [vmem:[%s222 + $0x38] sm:$0xf]
  %v238 = vld [vmem:[%s222 + $0x3c] sm:$0xf]
  %v239 = vmax.bf16 %v206, %v223
  %v240 = vmax.bf16 %v207, %v224
  %v241 = vmax.bf16 %v208, %v225
  %v242 = vmax.bf16 %v209, %v226
  %v243 = vmax.bf16 %v210, %v227
  %v244 = vmax.bf16 %v211, %v228
  %v245 = vmax.bf16 %v212, %v229
  %v246 = vmax.bf16 %v213, %v230
  %v247 = vmax.bf16 %v214, %v231
  %v248 = vmax.bf16 %v215, %v232
  %v249 = vmax.bf16 %v216, %v233
  %v250 = vmax.bf16 %v217, %v234
  %v251 = vmax.bf16 %v218, %v235
  %v252 = vmax.bf16 %v219, %v236
  %v253 = vmax.bf16 %v220, %v237
  %v254 = vmax.bf16 %v221, %v238
  %255 = vst [vmem:[%s1] sm:$0xf] %v239
  %256 = vst [vmem:[%s1 + $0x4] sm:$0xf] %v240
  %257 = vst [vmem:[%s1 + $0x8] sm:$0xf] %v241
  %258 = vst [vmem:[%s1 + $0xc] sm:$0xf] %v242
  %259 = vst [vmem:[%s1 + $0x10] sm:$0xf] %v243
  %260 = vst [vmem:[%s1 + $0x14] sm:$0xf] %v244
  %261 = vst [vmem:[%s1 + $0x18] sm:$0xf] %v245
  %262 = vst [vmem:[%s1 + $0x1c] sm:$0xf] %v246
  %263 = vst [vmem:[%s1 + $0x20] sm:$0xf] %v247
  %264 = vst [vmem:[%s1 + $0x24] sm:$0xf] %v248
  %265 = vst [vmem:[%s1 + $0x28] sm:$0xf] %v249
  %266 = vst [vmem:[%s1 + $0x2c] sm:$0xf] %v250
  %267 = vst [vmem:[%s1 + $0x30] sm:$0xf] %v251
  %268 = vst [vmem:[%s1 + $0x34] sm:$0xf] %v252
  %269 = vst [vmem:[%s1 + $0x38] sm:$0xf] %v253
  %270 = vst [vmem:[%s1 + $0x3c] sm:$0xf] %v254
  // Predicated region
  $region6: #{_lambda_.8} parent=0 // pred_check
    _
  $region7: #{_lambda_.8} parent=0 // pred_check_branch
    %272 = sbr.rel (0) target = $region9
  $region8: #{_lambda_.8} parent=0 // pred_region
    _
  $region9: #{_lambda_.8} parent=0 // pred_fallthru
    _
  // Predicated region
  $region10: #{_lambda_.8} parent=0 // pred_check
    _
  $region11: #{_lambda_.8} parent=0 // pred_check_branch
    %274 = sbr.rel (0) target = $region13
  $region12: #{_lambda_.8} parent=0 // pred_region
    _
  $region13: #{_lambda_.8} parent=0 // pred_fallthru
    _

// kernel: _lambda_.9
$region0: #{_lambda_.9}
  #allocation0 [shape = 'u32[]', space=smem, size = 0x4, offset = 0x4, fixed_abs, tag = 'smem constant byte address 0x4 - core index']
  #allocation1 [shape = 'u32[144,128]{1,0:T(1,128)}', space=vmem, size = 0x12000, scoped, tag = 'internal scratch']
  #allocation2 [shape = 'f32[16,128]{1,0:T(8,128)}', space=vmem, size = 0x2000, scoped, tag = 'scratch operand']
  %s0 = inlined_call_operand.vmem [shape: bf16[2,9,16,480], index: 0, kind: input, shape index: {}]
  %s1 = inlined_call_operand.vmem [shape: bf16[5,480,128], index: 1, kind: input, shape index: {}]
  %s2 = inlined_call_operand.vmem [shape: f32[1,128], index: 2, kind: input, shape index: {}]
  %s3 = inlined_call_operand.vmem [shape: f32[1,128], index: 3, kind: input, shape index: {}]
  %s4 = inlined_call_operand.vmem [shape: bf16[2,5,16,128], index: 4, kind: output, shape index: {}]
  %s5 = sld [smem:[#allocation0]]
  $region57: #{_lambda_.9} parent=0
    _
  %s7 = ssub.s32 1, %s5
  %s8 = scalar_select 0, %s7, %s5
  loop: start=0, step=1, limit=52
  $region2: #{_lambda_.9} parent=0 // loop_pre_header
    _
  $region3: #{_lambda_.9} parent=0 // loop_header
    %s10 = sphi 0, %s14
    %p11 = scmp.ge.s32.totalorder %s10, 52
    %s17 = sphi 0, %s36
    %s18 = sphi 0, %s32
    %s19 = sphi 0, %s28
    %s20 = sphi 0, %s17
    %s21 = sphi 0, %s18
    %s22 = sphi 0, %s19
    %s23 = sphi 0, %s20
    %s24 = sphi 0, %s21
    %s25 = sphi 0, %s22
    %s43 = sphi 0, %s45
    %s46 = sphi 0, %s43
    %s47 = sphi 0, %s46
    %s63 = sphi 0, %s47
    %s67 = sphi 0, %s67
    %s69 = sphi 0, %s67
    %s70 = sphi 0, %s69
    %s84 = sphi 0, %s70
    %s88 = sphi 0, %s88
    %s90 = sphi 0, %s88
    %s91 = sphi 0, %s90
    %s105 = sphi 0, %s91
    %s109 = sphi 0, %s109
    %s111 = sphi 0, %s109
    %s112 = sphi 0, %s111
    %s126 = sphi 0, %s112
    %s134 = sphi 0, %s136
    %s137 = sphi 0, %s134
    %s138 = sphi 0, %s137
    %s154 = sphi 0, %s138
  $region4: #{_lambda_.9} parent=0 // loop_header_branch
    %13 = sbr.rel (%p11) target = $region8
  $region5: #{_lambda_.9} parent=0 // loop_body
    %s15 = ssub.s32 %s10, 1
    %s16 = ssub.s32 %s10, 2
    %s26 = sadd.s32 1, %s19
    %p27 = scmp.ge.s32.totalorder %s26, 5
    %s28 = scalar_select %p27, 0, %s26
    %s29 = sadd.s32 1, %s18
    %s30 = scalar_select %p27, %s29, %s18
    %p31 = scmp.ge.s32.totalorder %s30, 5
    %s32 = scalar_select %p31, 0, %s30
    %s33 = sadd.s32 1, %s17
    %s34 = scalar_select %p31, %s33, %s17
    %p35 = scmp.ge.s32.totalorder %s34, 2
    %s36 = scalar_select %p35, 0, %s34
    %s37 = sadd.s32 %s18, %s19
    %s38 = sadd.s32 %s32, %s28
    %s39 = ssub.s32 %s17, %s36
    %s40 = ssub.s32 %s37, %s38
    %s41 = sor.u32 %s39, %s40
    %p42 = scmp.eq.s32.totalorder %s41, 0
    %s44 = sadd.s32 %s43, 1
    %s45 = scalar_select %p42, %s43, %s44
    %p48 = pneg %p42
    %p49 = scmp.eq.s32.totalorder %s10, 49
    %p50 = por %p48, %p49
    %p51 = scmp.ne.s32.totalorder %s43, %s46
    %p52 = scmp.eq.s32.totalorder %s10, 0
    %p53 = por %p51, %p52
    %p54 = scmp.ne.s32.totalorder %s43, %s46
    %p55 = scmp.eq.s32.totalorder %s15, 49
    %p56 = por %p54, %p55
    %p57 = scmp.ne.s32.totalorder %s46, %s47
    %p58 = scmp.eq.s32.totalorder %s15, 0
    %p59 = por %p57, %p58
    %p60 = scmp.ne.s32.totalorder %s46, %s47
    %p61 = scmp.eq.s32.totalorder %s16, 49
    %p62 = por %p60, %p61
    %p64 = scmp.ne.s32.totalorder %s47, %s63
    %p65 = scmp.eq.s32.totalorder %s16, 0
    %p66 = por %p64, %p65
    %s68 = sadd.s32 %s67, 1
    %p71 = scmp.eq.s32.totalorder %s10, 49
    %p72 = scmp.ne.s32.totalorder %s67, %s69
    %p73 = scmp.eq.s32.totalorder %s10, 0
    %p74 = por %p72, %p73
    %p75 = scmp.ne.s32.totalorder %s67, %s69
    %p76 = scmp.eq.s32.totalorder %s15, 49
    %p77 = por %p75, %p76
    %p78 = scmp.ne.s32.totalorder %s69, %s70
    %p79 = scmp.eq.s32.totalorder %s15, 0
    %p80 = por %p78, %p79
    %p81 = scmp.ne.s32.totalorder %s69, %s70
    %p82 = scmp.eq.s32.totalorder %s16, 49
    %p83 = por %p81, %p82
    %p85 = scmp.ne.s32.totalorder %s70, %s84
    %p86 = scmp.eq.s32.totalorder %s16, 0
    %p87 = por %p85, %p86
    %s89 = sadd.s32 %s88, 1
    %p92 = scmp.eq.s32.totalorder %s10, 49
    %p93 = scmp.ne.s32.totalorder %s88, %s90
    %p94 = scmp.eq.s32.totalorder %s10, 0
    %p95 = por %p93, %p94
    %p96 = scmp.ne.s32.totalorder %s88, %s90
    %p97 = scmp.eq.s32.totalorder %s15, 49
    %p98 = por %p96, %p97
    %p99 = scmp.ne.s32.totalorder %s90, %s91
    %p100 = scmp.eq.s32.totalorder %s15, 0
    %p101 = por %p99, %p100
    %p102 = scmp.ne.s32.totalorder %s90, %s91
    %p103 = scmp.eq.s32.totalorder %s16, 49
    %p104 = por %p102, %p103
    %p106 = scmp.ne.s32.totalorder %s91, %s105
    %p107 = scmp.eq.s32.totalorder %s16, 0
    %p108 = por %p106, %p107
    %s110 = sadd.s32 %s109, 1
    %p113 = scmp.eq.s32.totalorder %s10, 49
    %p114 = scmp.ne.s32.totalorder %s109, %s111
    %p115 = scmp.eq.s32.totalorder %s10, 0
    %p116 = por %p114, %p115
    %p117 = scmp.ne.s32.totalorder %s109, %s111
    %p118 = scmp.eq.s32.totalorder %s15, 49
    %p119 = por %p117, %p118
    %p120 = scmp.ne.s32.totalorder %s111, %s112
    %p121 = scmp.eq.s32.totalorder %s15, 0
    %p122 = por %p120, %p121
    %p123 = scmp.ne.s32.totalorder %s111, %s112
    %p124 = scmp.eq.s32.totalorder %s16, 49
    %p125 = por %p123, %p124
    %p127 = scmp.ne.s32.totalorder %s112, %s126
    %p128 = scmp.eq.s32.totalorder %s16, 0
    %p129 = por %p127, %p128
    %s130 = ssub.s32 %s17, %s36
    %s131 = ssub.s32 %s18, %s32
    %s132 = sor.u32 %s130, %s131
    %p133 = scmp.eq.s32.totalorder %s132, 0
    %s135 = sadd.s32 %s134, 1
    %s136 = scalar_select %p133, %s134, %s135
    %p139 = pneg %p133
    %p140 = scmp.eq.s32.totalorder %s10, 49
    %p141 = por %p139, %p140
    %p142 = scmp.ne.s32.totalorder %s134, %s137
    %p143 = scmp.eq.s32.totalorder %s10, 0
    %p144 = por %p142, %p143
    %p145 = scmp.ne.s32.totalorder %s134, %s137
    %p146 = scmp.eq.s32.totalorder %s15, 49
    %p147 = por %p145, %p146
    %p148 = scmp.ne.s32.totalorder %s137, %s138
    %p149 = scmp.eq.s32.totalorder %s15, 0
    %p150 = por %p148, %p149
    %p151 = scmp.ne.s32.totalorder %s137, %s138
    %p152 = scmp.eq.s32.totalorder %s16, 49
    %p153 = por %p151, %p152
    %p155 = scmp.ne.s32.totalorder %s138, %s154
    %p156 = scmp.eq.s32.totalorder %s16, 0
    %p157 = por %p155, %p156
    %p158 = scmp.le.s32.totalorder 1, %s10
    %p159 = scmp.lt.s32.totalorder %s10, 51
    %p160 = pnand %p158, %p159
    %p161 = pneg %p160
    // Predicated region
    $region9: #{_lambda_.9} parent=5 // pred_check
      _
    $region10: #{_lambda_.9} parent=5 // pred_check_branch
      %163 = sbr.rel (%p160) target = $region12
    $region11: #{_lambda_.9} parent=5 // pred_region
      %s164 = ssub.s32 %s10, 1
      // Predicated region
      $region13: #{_lambda_.9} parent=11 // pred_check
        %p165 = pneg %p80
      $region14: #{_lambda_.9} parent=11 // pred_check_branch
        %167 = sbr.rel (%p165) target = $region16
      $region15: #{_lambda_.9} parent=11 // pred_region
        _
      $region16: #{_lambda_.9} parent=11 // pred_fallthru
        _
      // Predicated region
      $region17: #{_lambda_.9} parent=11 // pred_check
        %p168 = pneg %p101
      $region18: #{_lambda_.9} parent=11 // pred_check_branch
        %170 = sbr.rel (%p168) target = $region20
      $region19: #{_lambda_.9} parent=11 // pred_region
        _
      $region20: #{_lambda_.9} parent=11 // pred_fallthru
        _
      // Predicated region
      $region21: #{_lambda_.9} parent=11 // pred_check
        %p171 = pneg %p122
      $region22: #{_lambda_.9} parent=11 // pred_check_branch
        %173 = sbr.rel (%p171) target = $region24
      $region23: #{_lambda_.9} parent=11 // pred_region
        _
      $region24: #{_lambda_.9} parent=11 // pred_fallthru
        _
    $region12: #{_lambda_.9} parent=5 // pred_fallthru
      _
    %p174 = scmp.lt.s32.totalorder %s10, 50
    // Predicated region
    $region25: #{_lambda_.9} parent=5 // pred_check
      %p175 = pneg %p174
    $region26: #{_lambda_.9} parent=5 // pred_check_branch
      %177 = sbr.rel (%p175) target = $region28
    $region27: #{_lambda_.9} parent=5 // pred_region
      // Predicated region
      $region29: #{_lambda_.9} parent=27 // pred_check
        %p178 = pneg %p53
      $region30: #{_lambda_.9} parent=27 // pred_check_branch
        %180 = sbr.rel (%p178) target = $region32
      $region31: #{_lambda_.9} parent=27 // pred_region
        %s181 = sadd.s32 %s18, %s19
        %p182 = scmp.lt.s32.totalorder %s17, 1
        %s183 = scalar_select %p182, %s17, 1
        %p184 = scmp.lt.s32.totalorder %s181, 8
        %s185 = scalar_select %p184, %s181, 8
        %s186 = smul.addr %s185, 8
        %s187 = smul.addr %s183, 72
        %s188 = sadd.s32 %s186, %s187
        %s189 = smul.addr %s188, 4
        %s190 = scalar_lea.vmem %s0, %s189
        %s191 = sadd.s32 %s18, %s19
      $region32: #{_lambda_.9} parent=27 // pred_fallthru
        _
    $region28: #{_lambda_.9} parent=5 // pred_fallthru
      _
    %p192 = scmp.le.s32.totalorder 1, %s10
    %p193 = scmp.lt.s32.totalorder %s10, 51
    %p194 = pnand %p192, %p193
    %p195 = pneg %p194
    // Predicated region
    $region33: #{_lambda_.9} parent=5 // pred_check
      _
    $region34: #{_lambda_.9} parent=5 // pred_check_branch
      %197 = sbr.rel (%p194) target = $region36
    $region35: #{_lambda_.9} parent=5 // pred_region
      %s198 = ssub.s32 %s10, 1
      %s199 = sadd.s32 %s21, %s22
      %p200 = scmp.lt.s32.totalorder %s20, 1
      %s201 = scalar_select %p200, %s20, 1
      %p202 = scmp.lt.s32.totalorder %s199, 8
      %s203 = scalar_select %p202, %s199, 8
      %s204 = smul.addr %s203, 8
      %s205 = smul.addr %s201, 72
      %s206 = sadd.s32 %s204, %s205
      %s207 = smul.addr %s206, 4
      %s208 = scalar_lea.vmem %s0, %s207
      %p209 = pneg %p59
      %p210 = pneg %p56
      %p211 = pneg %p80
      %p212 = pneg %p77
      %p213 = pneg %p101
      %p214 = pneg %p98
      %p215 = pneg %p122
      %p216 = pneg %p119
      %p217 = pneg %p150
      %p218 = pneg %p147
      %p219 = scmp.lt.s32.totalorder %s20, 1
      %s220 = scalar_select %p219, %s20, 1
      %p221 = scmp.lt.s32.totalorder %s21, 4
      %s222 = scalar_select %p221, %s21, 4
      %s223 = smul.addr %s222, 2
      %s224 = smul.addr %s220, 10
      %s225 = sadd.s32 %s223, %s224
      %s226 = smul.addr %s225, 4
      %s227 = scalar_lea.vmem %s4, %s226
      %s228 = sadd.s32 %s21, %s22
      %p229 = scmp.lt.s32.totalorder %s20, 1
      %s230 = scalar_select %p229, %s20, 1
      %p231 = scmp.lt.s32.totalorder %s228, 8
      %s232 = scalar_select %p231, %s228, 8
      %s233 = smul.addr %s232, 8
      %s234 = smul.addr %s230, 72
      %s235 = sadd.s32 %s233, %s234
      %s236 = smul.addr %s235, 4
      %s237 = scalar_lea.vmem %s0, %s236
      %s238 = sadd.s32 %s21, %s22
      %p239 = scmp.lt.s32.totalorder %s20, 1
      %s240 = scalar_select %p239, %s20, 1
      %p241 = scmp.lt.s32.totalorder %s21, 4
      %s242 = scalar_select %p241, %s21, 4
      %s243 = smul.addr %s242, 2
      %s244 = smul.addr %s240, 10
      %s245 = sadd.s32 %s243, %s244
      %s246 = smul.addr %s245, 4
      %s247 = scalar_lea.vmem %s4, %s246
      %p249 = scmp.eq.s32.totalorder %s22, 0
      // Predicated region
      $region37: #{_lambda_.9} parent=35 // pred_check
        %p250 = pneg %p249
      $region38: #{_lambda_.9} parent=35 // pred_check_branch
        %252 = sbr.rel (%p250) target = $region40
      $region39: #{_lambda_.9} parent=35 // pred_region
        %253 = vst [vmem:[#allocation2] sm:$0xff] 0.0
        %254 = vst [vmem:[#allocation2 + $0x8] sm:$0xff] 0.0
      $region40: #{_lambda_.9} parent=35 // pred_fallthru
        _
      %v255 = vld [vmem:[#allocation2] sm:$0xff]
      %v256 = vld [vmem:[#allocation2 + $0x8] sm:$0xff]
      %v257 = vld [vmem:[%s237] sm:$0xff]
      %v258 = vld [vmem:[%s237 + $0x8] sm:$0xff]
      %v259 = vld [vmem:[%s237 + $0x10] sm:$0xff]
      %v260 = vld [vmem:[%s237 + $0x18] sm:$0xff]
      %s261 = smul.u32 %s22, 60
      %s262 = smul.addr %s261, 4
      %s263 = scalar_lea.vmem %s1, %s262
      %v264 = vld [vmem:[%s263] sm:$0xf]
      %v265 = vld [vmem:[%s263 + $0x4] sm:$0xf]
      %v266 = vld [vmem:[%s263 + $0x8] sm:$0xf]
      %v267 = vld [vmem:[%s263 + $0xc] sm:$0xf]
      %v268 = vld [vmem:[%s263 + $0x10] sm:$0xf]
      %v269 = vld [vmem:[%s263 + $0x14] sm:$0xf]
      %v270 = vld [vmem:[%s263 + $0x18] sm:$0xf]
      %v271 = vld [vmem:[%s263 + $0x1c] sm:$0xf]
      %v272 = vld [vmem:[%s263 + $0x20] sm:$0xf]
      %v273 = vld [vmem:[%s263 + $0x24] sm:$0xf]
      %v274 = vld [vmem:[%s263 + $0x28] sm:$0xf]
      %v275 = vld [vmem:[%s263 + $0x2c] sm:$0xf]
      %v276 = vld [vmem:[%s263 + $0x30] sm:$0xf]
      %v277 = vld [vmem:[%s263 + $0x34] sm:$0xf]
      %v278 = vld [vmem:[%s263 + $0x38] sm:$0xf]
      %v279 = vld [vmem:[%s263 + $0x3c] sm:$0xf]
      %v280 = vld [vmem:[%s263 + $0x40] sm:$0xf]
      %v281 = vld [vmem:[%s263 + $0x44] sm:$0xf]
      %v282 = vld [vmem:[%s263 + $0x48] sm:$0xf]
      %v283 = vld [vmem:[%s263 + $0x4c] sm:$0xf]
      %v284 = vld [vmem:[%s263 + $0x50] sm:$0xf]
      %v285 = vld [vmem:[%s263 + $0x54] sm:$0xf]
      %v286 = vld [vmem:[%s263 + $0x58] sm:$0xf]
      %v287 = vld [vmem:[%s263 + $0x5c] sm:$0xf]
      %v288 = vld [vmem:[%s263 + $0x60] sm:$0xf]
      %v289 = vld [vmem:[%s263 + $0x64] sm:$0xf]
      %v290 = vld [vmem:[%s263 + $0x68] sm:$0xf]
      %v291 = vld [vmem:[%s263 + $0x6c] sm:$0xf]
      %v292 = vld [vmem:[%s263 + $0x70] sm:$0xf]
      %v293 = vld [vmem:[%s263 + $0x74] sm:$0xf]
      %v294 = vld [vmem:[%s263 + $0x78] sm:$0xf]
      %v295 = vld [vmem:[%s263 + $0x7c] sm:$0xf]
      %v296 = vld [vmem:[%s263 + $0x80] sm:$0xf]
      %v297 = vld [vmem:[%s263 + $0x84] sm:$0xf]
      %v298 = vld [vmem:[%s263 + $0x88] sm:$0xf]
      %v299 = vld [vmem:[%s263 + $0x8c] sm:$0xf]
      %v300 = vld [vmem:[%s263 + $0x90] sm:$0xf]
      %v301 = vld [vmem:[%s263 + $0x94] sm:$0xf]
      %v302 = vld [vmem:[%s263 + $0x98] sm:$0xf]
      %v303 = vld [vmem:[%s263 + $0x9c] sm:$0xf]
      %v304 = vld [vmem:[%s263 + $0xa0] sm:$0xf]
      %v305 = vld [vmem:[%s263 + $0xa4] sm:$0xf]
      %v306 = vld [vmem:[%s263 + $0xa8] sm:$0xf]
      %v307 = vld [vmem:[%s263 + $0xac] sm:$0xf]
      %v308 = vld [vmem:[%s263 + $0xb0] sm:$0xf]
      %v309 = vld [vmem:[%s263 + $0xb4] sm:$0xf]
      %v310 = vld [vmem:[%s263 + $0xb8] sm:$0xf]
      %v311 = vld [vmem:[%s263 + $0xbc] sm:$0xf]
      %v312 = vld [vmem:[%s263 + $0xc0] sm:$0xf]
      %v313 = vld [vmem:[%s263 + $0xc4] sm:$0xf]
      %v314 = vld [vmem:[%s263 + $0xc8] sm:$0xf]
      %v315 = vld [vmem:[%s263 + $0xcc] sm:$0xf]
      %v316 = vld [vmem:[%s263 + $0xd0] sm:$0xf]
      %v317 = vld [vmem:[%s263 + $0xd4] sm:$0xf]
      %v318 = vld [vmem:[%s263 + $0xd8] sm:$0xf]
      %v319 = vld [vmem:[%s263 + $0xdc] sm:$0xf]
      %v320 = vld [vmem:[%s263 + $0xe0] sm:$0xf]
      %v321 = vld [vmem:[%s263 + $0xe4] sm:$0xf]
      %v322 = vld [vmem:[%s263 + $0xe8] sm:$0xf]
      %v323 = vld [vmem:[%s263 + $0xec] sm:$0xf]
      %v328 = vunpack.c.l.b16 %v257
      %v329 = vunpack.c.h.b16 %v257
      %v330 = vunpack.c.l.b16 %v258
      %v331 = vunpack.c.h.b16 %v258
      %v332 = vunpack.c.l.b16 %v259
      %v333 = vunpack.c.h.b16 %v259
      %v334 = vunpack.c.l.b16 %v260
      %v335 = vunpack.c.h.b16 %v260
      %v336 = vpack.c.b16 %v332, %v328
      %v337 = vpack.c.b16 %v333, %v329
      %v338 = vpack.c.b16 %v334, %v330
      %v339 = vpack.c.b16 %v335, %v331
      %v403 = vunpack.c.l.b16 %v264
      %v404 = vunpack.c.l.b16 %v265
      %v405 = vunpack.c.l.b16 %v266
      %v406 = vunpack.c.l.b16 %v267
      %v407 = vunpack.c.l.b16 %v268
      %v408 = vunpack.c.l.b16 %v269
      %v409 = vunpack.c.l.b16 %v270
      %v410 = vunpack.c.l.b16 %v271
      %v411 = vunpack.c.l.b16 %v272
      %v412 = vunpack.c.l.b16 %v273
      %v413 = vunpack.c.l.b16 %v274
      %v414 = vunpack.c.l.b16 %v275
      %v415 = vunpack.c.l.b16 %v276
      %v416 = vunpack.c.l.b16 %v277
      %v417 = vunpack.c.l.b16 %v278
      %v418 = vunpack.c.l.b16 %v279
      %v419 = vunpack.c.l.b16 %v280
      %v420 = vunpack.c.l.b16 %v281
      %v421 = vunpack.c.l.b16 %v282
      %v422 = vunpack.c.l.b16 %v283
      %v423 = vunpack.c.l.b16 %v284
      %v424 = vunpack.c.l.b16 %v285
      %v425 = vunpack.c.l.b16 %v286
      %v426 = vunpack.c.l.b16 %v287
      %v427 = vunpack.c.l.b16 %v288
      %v428 = vunpack.c.l.b16 %v289
      %v429 = vunpack.c.l.b16 %v290
      %v430 = vunpack.c.l.b16 %v291
      %v431 = vunpack.c.l.b16 %v292
      %v432 = vunpack.c.l.b16 %v293
      %v433 = vunpack.c.l.b16 %v294
      %v434 = vunpack.c.l.b16 %v295
      %v435 = vunpack.c.l.b16 %v296
      %v436 = vunpack.c.l.b16 %v297
      %v437 = vunpack.c.l.b16 %v298
      %v438 = vunpack.c.l.b16 %v299
      %v439 = vunpack.c.l.b16 %v300
      %v440 = vunpack.c.l.b16 %v301
      %v441 = vunpack.c.l.b16 %v302
      %v442 = vunpack.c.l.b16 %v303
      %v443 = vunpack.c.l.b16 %v304
      %v444 = vunpack.c.l.b16 %v305
      %v445 = vunpack.c.l.b16 %v306
      %v446 = vunpack.c.l.b16 %v307
      %v447 = vunpack.c.l.b16 %v308
      %v448 = vunpack.c.l.b16 %v309
      %v449 = vunpack.c.l.b16 %v310
      %v450 = vunpack.c.l.b16 %v311
      %v451 = vunpack.c.l.b16 %v312
      %v452 = vunpack.c.l.b16 %v313
      %v453 = vunpack.c.l.b16 %v314
      %v454 = vunpack.c.l.b16 %v315
      %v455 = vunpack.c.l.b16 %v316
      %v456 = vunpack.c.l.b16 %v317
      %v457 = vunpack.c.l.b16 %v318
      %v458 = vunpack.c.l.b16 %v319
      %v459 = vunpack.c.l.b16 %v320
      %v460 = vunpack.c.l.b16 %v321
      %v461 = vunpack.c.l.b16 %v322
      %v462 = vunpack.c.l.b16 %v323
      %v463 = vpack.c.b16 %v404, %v403
      %v464 = vpack.c.b16 %v406, %v405
      %v465 = vpack.c.b16 %v408, %v407
      %v466 = vpack.c.b16 %v410, %v409
      %v467 = vpack.c.b16 %v412, %v411
      %v468 = vpack.c.b16 %v414, %v413
      %v469 = vpack.c.b16 %v416, %v415
      %v470 = vpack.c.b16 %v418, %v417
      %v471 = vpack.c.b16 %v420, %v419
      %v472 = vpack.c.b16 %v422, %v421
      %v473 = vpack.c.b16 %v424, %v423
      %v474 = vpack.c.b16 %v426, %v425
      %v475 = vpack.c.b16 %v428, %v427
      %v476 = vpack.c.b16 %v430, %v429
      %v477 = vpack.c.b16 %v432, %v431
      %v478 = vpack.c.b16 %v434, %v433
      %v479 = vpack.c.b16 %v436, %v435
      %v480 = vpack.c.b16 %v438, %v437
      %v481 = vpack.c.b16 %v440, %v439
      %v482 = vpack.c.b16 %v442, %v441
      %v483 = vpack.c.b16 %v444, %v443
      %v484 = vpack.c.b16 %v446, %v445
      %v485 = vpack.c.b16 %v448, %v447
      %v486 = vpack.c.b16 %v450, %v449
      %v487 = vpack.c.b16 %v452, %v451
      %v488 = vpack.c.b16 %v454, %v453
      %v489 = vpack.c.b16 %v456, %v455
      %v490 = vpack.c.b16 %v458, %v457
      %v491 = vpack.c.b16 %v460, %v459
      %v492 = vpack.c.b16 %v462, %v461
      %vm523 = vcmask 785408
      %v525 = vsel %vm523, %v339, 0
      %527 = vmatprep.subr.bf16.mxu0 0
      %528 = vmatpush1.bf16.msra.mxu0 %v470
      %529 = vmatprep.subr.bf16.mxu0 0
      %530 = vmatpush1.bf16.msra.mxu0 %v469
      %531 = vmatprep.subr.bf16.mxu0 0
      %532 = vmatpush1.bf16.msra.mxu0 %v468
      %533 = vmatprep.subr.bf16.mxu0 0
      %534 = vmatpush1.bf16.msra.mxu0 %v467
      %535 = vmatprep.subr.bf16.mxu0 0
      %536 = vmatpush1.bf16.msra.mxu0 %v466
      %537 = vmatprep.subr.bf16.mxu0 0
      %538 = vmatpush1.bf16.msra.mxu0 %v465
      %539 = vmatprep.subr.bf16.mxu0 0
      %540 = vmatpush1.bf16.msra.mxu0 %v464
      %541 = vmatprep.subr.bf16.mxu0 0
      %542 = vmatpush1.bf16.msra.mxu0 %v463
      %543 = vmatprep.subr.bf16.mxu0 0
      %544 = vmatpush2.bf16.msra.mxu0 %v478
      %545 = vmatprep.subr.bf16.mxu0 0
      %546 = vmatpush2.bf16.msra.mxu0 %v477
      %547 = vmatprep.subr.bf16.mxu0 0
      %548 = vmatpush2.bf16.msra.mxu0 %v476
      %549 = vmatprep.subr.bf16.mxu0 0
      %550 = vmatpush2.bf16.msra.mxu0 %v475
      %551 = vmatprep.subr.bf16.mxu0 0
      %552 = vmatpush2.bf16.msra.mxu0 %v474
      %553 = vmatprep.subr.bf16.mxu0 0
      %554 = vmatpush2.bf16.msra.mxu0 %v473
      %555 = vmatprep.subr.bf16.mxu0 0
      %556 = vmatpush2.bf16.msra.mxu0 %v472
      %557 = vmatprep.subr.bf16.mxu0 0
      %558 = vmatpush2.bf16.msra.mxu0 %v471
      %559 = vmatprep.mubr.bf16.mxu0 %v337
      %560 = vmatmul.mubr.bf16.gmra.mxu0 %v336
      %v561 = vpop.f32.mrf.mxu0
      %v562 = vadd.f32 0.0, %v561
      %v563 = vpop.f32.mrf.mxu0
      %v564 = vpop.f32.mrf.mxu0
      %v565 = vadd.f32 0.0, %v564
      %v566 = vpop.f32.mrf.mxu0
      %567 = vdwg.mxu0
      %568 = vmatprep.subr.bf16.mxu0 0
      %569 = vmatpush1.bf16.msra.mxu0 %v486
      %570 = vmatprep.subr.bf16.mxu0 0
      %571 = vmatpush1.bf16.msra.mxu0 %v485
      %572 = vmatprep.subr.bf16.mxu0 0
      %573 = vmatpush1.bf16.msra.mxu0 %v484
      %574 = vmatprep.subr.bf16.mxu0 0
      %575 = vmatpush1.bf16.msra.mxu0 %v483
      %576 = vmatprep.subr.bf16.mxu0 0
      %577 = vmatpush1.bf16.msra.mxu0 %v482
      %578 = vmatprep.subr.bf16.mxu0 0
      %579 = vmatpush1.bf16.msra.mxu0 %v481
      %580 = vmatprep.subr.bf16.mxu0 0
      %581 = vmatpush1.bf16.msra.mxu0 %v480
      %582 = vmatprep.subr.bf16.mxu0 0
      %583 = vmatpush1.bf16.msra.mxu0 %v479
      %584 = vmatprep.subr.bf16.mxu0 0
      %585 = vmatpush2.bf16.msra.mxu0 0
      %586 = vmatprep.subr.bf16.mxu0 0
      %587 = vmatpush2.bf16.msra.mxu0 0
      %588 = vmatprep.subr.bf16.mxu0 0
      %589 = vmatpush2.bf16.msra.mxu0 %v492
      %590 = vmatprep.subr.bf16.mxu0 0
      %591 = vmatpush2.bf16.msra.mxu0 %v491
      %592 = vmatprep.subr.bf16.mxu0 0
      %593 = vmatpush2.bf16.msra.mxu0 %v490
      %594 = vmatprep.subr.bf16.mxu0 0
      %595 = vmatpush2.bf16.msra.mxu0 %v489
      %596 = vmatprep.subr.bf16.mxu0 0
      %597 = vmatpush2.bf16.msra.mxu0 %v488
      %598 = vmatprep.subr.bf16.mxu0 0
      %599 = vmatpush2.bf16.msra.mxu0 %v487
      %600 = vmatprep.mubr.bf16.mxu0 %v525
      %601 = vmatmul.mubr.bf16.gmra.mxu0 %v338
      %v602 = vpop.f32.mrf.mxu0
      %v603 = vadd.f32 %v562, %v602
      %v604 = vpop.f32.mrf.mxu0
      %v605 = vpop.f32.mrf.mxu0
      %v606 = vadd.f32 %v565, %v605
      %v607 = vpop.f32.mrf.mxu0
      %608 = vdwg.mxu0
      %v609 = vadd.f32 %v255, %v603
      %v610 = vadd.f32 %v256, %v606
      %611 = vst [vmem:[#allocation2] sm:$0xff] %v609
      %612 = vst [vmem:[#allocation2 + $0x8] sm:$0xff] %v610
      %p613 = scmp.eq.s32.totalorder %s22, 4
      // Predicated region
      $region41: #{_lambda_.9} parent=35 // pred_check
        %p614 = pneg %p613
      $region42: #{_lambda_.9} parent=35 // pred_check_branch
        %616 = sbr.rel (%p614) target = $region44
      $region43: #{_lambda_.9} parent=35 // pred_region
        %v617 = vld [vmem:[#allocation2] sm:$0xff]
        %v618 = vld [vmem:[#allocation2 + $0x8] sm:$0xff]
        %v619 = vld [vmem:[%s2] sm:$0x1]
        %v621 = vlaneseq
        %v622 = vshrl.u32 %v621, 7
        %v623 = vsub.s32 0, %v622
        %v624 = vrot.slane %v619, %v623
        %v626 = vmul.f32 %v617, %v624
        %v627 = vmul.f32 %v618, %v624
        %v628 = vld [vmem:[%s3] sm:$0x1]
        %v630 = vlaneseq
        %v631 = vshrl.u32 %v630, 7
        %v632 = vsub.s32 0, %v631
        %v633 = vrot.slane %v628, %v632
        %v635 = vadd.f32 %v626, %v633
        %v636 = vadd.f32 %v627, %v633
        %v637 = vmul.f32 %v635, 0.1
        %v638 = vmul.f32 %v636, 0.1
        %v639 = vmax.f32 %v635, %v637
        %v640 = vmax.f32 %v636, %v638
        %v641 = vpack.c.bf16 %v640, %v639
        %v643 = vunpack.c.l.b16 %v641
        %v644 = vunpack.c.h.b16 %v641
        %v645 = vpack.c.b16 %v643, %v643
        %v646 = vpack.c.b16 %v644, %v644
        %649 = vst [vmem:[%s247] sm:$0xf] %v645
        %650 = vst [vmem:[%s247 + $0x4] sm:$0xf] %v646
      $region44: #{_lambda_.9} parent=35 // pred_fallthru
        _
      %p651 = scmp.lt.s32.totalorder %s20, 1
      %s652 = scalar_select %p651, %s20, 1
      %p653 = scmp.lt.s32.totalorder %s21, 4
      %s654 = scalar_select %p653, %s21, 4
      %s655 = smul.addr %s654, 2
      %s656 = smul.addr %s652, 10
      %s657 = sadd.s32 %s655, %s656
      %s658 = smul.addr %s657, 4
      %s659 = scalar_lea.vmem %s4, %s658
      // Predicated region
      $region45: #{_lambda_.9} parent=35 // pred_check
        %p660 = pneg %p147
      $region46: #{_lambda_.9} parent=35 // pred_check_branch
        %662 = sbr.rel (%p660) target = $region48
      $region47: #{_lambda_.9} parent=35 // pred_region
        _
      $region48: #{_lambda_.9} parent=35 // pred_fallthru
        _
    $region36: #{_lambda_.9} parent=5 // pred_fallthru
      _
    %p663 = scmp.le.s32.totalorder 2, %s10
    // Predicated region
    $region49: #{_lambda_.9} parent=5 // pred_check
      %p664 = pneg %p663
    $region50: #{_lambda_.9} parent=5 // pred_check_branch
      %666 = sbr.rel (%p664) target = $region52
    $region51: #{_lambda_.9} parent=5 // pred_region
      %s667 = ssub.s32 %s10, 2
      // Predicated region
      $region53: #{_lambda_.9} parent=51 // pred_check
        %p668 = pneg %p153
      $region54: #{_lambda_.9} parent=51 // pred_check_branch
        %670 = sbr.rel (%p668) target = $region56
      $region55: #{_lambda_.9} parent=51 // pred_region
        %p671 = scmp.lt.s32.totalorder %s23, 1
        %s672 = scalar_select %p671, %s23, 1
        %p673 = scmp.lt.s32.totalorder %s24, 4
        %s674 = scalar_select %p673, %s24, 4
        %s675 = smul.addr %s674, 2
        %s676 = smul.addr %s672, 10
        %s677 = sadd.s32 %s675, %s676
        %s678 = smul.addr %s677, 4
        %s679 = scalar_lea.vmem %s4, %s678
      $region56: #{_lambda_.9} parent=51 // pred_fallthru
        _
    $region52: #{_lambda_.9} parent=5 // pred_fallthru
      _
  $region6: #{_lambda_.9} parent=0 // loop_footer
    %s14 = sadd.s32 1, %s10
  $region7: #{_lambda_.9} parent=0 // loop_footer_branch
    %9 = sbr.rel target = $region3
  $region8: #{_lambda_.9} parent=0 // loop_exit
    _

// kernel: _lambda_.10
$region0: #{_lambda_.10}
  #allocation0 [shape = 'u32[]', space=smem, size = 0x4, offset = 0x4, fixed_abs, tag = 'smem constant byte address 0x4 - core index']
  #allocation1 [shape = 'u32[144,128]{1,0:T(1,128)}', space=vmem, size = 0x12000, scoped, tag = 'internal scratch']
  #allocation2 [shape = 'f32[16,128]{1,0:T(8,128)}', space=vmem, size = 0x2000, scoped, tag = 'scratch operand']
  %s0 = inlined_call_operand.vmem [shape: bf16[2,5,16,320], index: 0, kind: input, shape index: {}]
  %s1 = inlined_call_operand.vmem [shape: bf16[5,320,128], index: 1, kind: input, shape index: {}]
  %s2 = inlined_call_operand.vmem [shape: f32[1,128], index: 2, kind: input, shape index: {}]
  %s3 = inlined_call_operand.vmem [shape: f32[1,128], index: 3, kind: input, shape index: {}]
  %s4 = inlined_call_operand.vmem [shape: bf16[2,1,16,128], index: 4, kind: output, shape index: {}]
  %s5 = sld [smem:[#allocation0]]
  $region57: #{_lambda_.10} parent=0
    _
  %s7 = ssub.s32 1, %s5
  %s8 = scalar_select 0, %s7, %s5
  loop: start=0, step=1, limit=12
  $region2: #{_lambda_.10} parent=0 // loop_pre_header
    _
  $region3: #{_lambda_.10} parent=0 // loop_header
    %s10 = sphi 0, %s14
    %p11 = scmp.ge.s32.totalorder %s10, 12
    %s17 = sphi 0, %s36
    %s18 = sphi 0, %s32
    %s19 = sphi 0, %s28
    %s20 = sphi 0, %s17
    %s21 = sphi 0, %s18
    %s22 = sphi 0, %s19
    %s23 = sphi 0, %s20
    %s24 = sphi 0, %s21
    %s25 = sphi 0, %s22
    %s43 = sphi 0, %s45
    %s46 = sphi 0, %s43
    %s47 = sphi 0, %s46
    %s63 = sphi 0, %s47
    %s67 = sphi 0, %s67
    %s69 = sphi 0, %s67
    %s70 = sphi 0, %s69
    %s84 = sphi 0, %s70
    %s88 = sphi 0, %s88
    %s90 = sphi 0, %s88
    %s91 = sphi 0, %s90
    %s105 = sphi 0, %s91
    %s109 = sphi 0, %s109
    %s111 = sphi 0, %s109
    %s112 = sphi 0, %s111
    %s126 = sphi 0, %s112
    %s134 = sphi 0, %s136
    %s137 = sphi 0, %s134
    %s138 = sphi 0, %s137
    %s154 = sphi 0, %s138
  $region4: #{_lambda_.10} parent=0 // loop_header_branch
    %13 = sbr.rel (%p11) target = $region8
  $region5: #{_lambda_.10} parent=0 // loop_body
    %s15 = ssub.s32 %s10, 1
    %s16 = ssub.s32 %s10, 2
    %s26 = sadd.s32 1, %s19
    %p27 = scmp.ge.s32.totalorder %s26, 5
    %s28 = scalar_select %p27, 0, %s26
    %s29 = sadd.s32 1, %s18
    %s30 = scalar_select %p27, %s29, %s18
    %p31 = scmp.ge.s32.totalorder %s30, 1
    %s32 = scalar_select %p31, 0, %s30
    %s33 = sadd.s32 1, %s17
    %s34 = scalar_select %p31, %s33, %s17
    %p35 = scmp.ge.s32.totalorder %s34, 2
    %s36 = scalar_select %p35, 0, %s34
    %s37 = sadd.s32 %s18, %s19
    %s38 = sadd.s32 %s32, %s28
    %s39 = ssub.s32 %s17, %s36
    %s40 = ssub.s32 %s37, %s38
    %s41 = sor.u32 %s39, %s40
    %p42 = scmp.eq.s32.totalorder %s41, 0
    %s44 = sadd.s32 %s43, 1
    %s45 = scalar_select %p42, %s43, %s44
    %p48 = pneg %p42
    %p49 = scmp.eq.s32.totalorder %s10, 9
    %p50 = por %p48, %p49
    %p51 = scmp.ne.s32.totalorder %s43, %s46
    %p52 = scmp.eq.s32.totalorder %s10, 0
    %p53 = por %p51, %p52
    %p54 = scmp.ne.s32.totalorder %s43, %s46
    %p55 = scmp.eq.s32.totalorder %s15, 9
    %p56 = por %p54, %p55
    %p57 = scmp.ne.s32.totalorder %s46, %s47
    %p58 = scmp.eq.s32.totalorder %s15, 0
    %p59 = por %p57, %p58
    %p60 = scmp.ne.s32.totalorder %s46, %s47
    %p61 = scmp.eq.s32.totalorder %s16, 9
    %p62 = por %p60, %p61
    %p64 = scmp.ne.s32.totalorder %s47, %s63
    %p65 = scmp.eq.s32.totalorder %s16, 0
    %p66 = por %p64, %p65
    %s68 = sadd.s32 %s67, 1
    %p71 = scmp.eq.s32.totalorder %s10, 9
    %p72 = scmp.ne.s32.totalorder %s67, %s69
    %p73 = scmp.eq.s32.totalorder %s10, 0
    %p74 = por %p72, %p73
    %p75 = scmp.ne.s32.totalorder %s67, %s69
    %p76 = scmp.eq.s32.totalorder %s15, 9
    %p77 = por %p75, %p76
    %p78 = scmp.ne.s32.totalorder %s69, %s70
    %p79 = scmp.eq.s32.totalorder %s15, 0
    %p80 = por %p78, %p79
    %p81 = scmp.ne.s32.totalorder %s69, %s70
    %p82 = scmp.eq.s32.totalorder %s16, 9
    %p83 = por %p81, %p82
    %p85 = scmp.ne.s32.totalorder %s70, %s84
    %p86 = scmp.eq.s32.totalorder %s16, 0
    %p87 = por %p85, %p86
    %s89 = sadd.s32 %s88, 1
    %p92 = scmp.eq.s32.totalorder %s10, 9
    %p93 = scmp.ne.s32.totalorder %s88, %s90
    %p94 = scmp.eq.s32.totalorder %s10, 0
    %p95 = por %p93, %p94
    %p96 = scmp.ne.s32.totalorder %s88, %s90
    %p97 = scmp.eq.s32.totalorder %s15, 9
    %p98 = por %p96, %p97
    %p99 = scmp.ne.s32.totalorder %s90, %s91
    %p100 = scmp.eq.s32.totalorder %s15, 0
    %p101 = por %p99, %p100
    %p102 = scmp.ne.s32.totalorder %s90, %s91
    %p103 = scmp.eq.s32.totalorder %s16, 9
    %p104 = por %p102, %p103
    %p106 = scmp.ne.s32.totalorder %s91, %s105
    %p107 = scmp.eq.s32.totalorder %s16, 0
    %p108 = por %p106, %p107
    %s110 = sadd.s32 %s109, 1
    %p113 = scmp.eq.s32.totalorder %s10, 9
    %p114 = scmp.ne.s32.totalorder %s109, %s111
    %p115 = scmp.eq.s32.totalorder %s10, 0
    %p116 = por %p114, %p115
    %p117 = scmp.ne.s32.totalorder %s109, %s111
    %p118 = scmp.eq.s32.totalorder %s15, 9
    %p119 = por %p117, %p118
    %p120 = scmp.ne.s32.totalorder %s111, %s112
    %p121 = scmp.eq.s32.totalorder %s15, 0
    %p122 = por %p120, %p121
    %p123 = scmp.ne.s32.totalorder %s111, %s112
    %p124 = scmp.eq.s32.totalorder %s16, 9
    %p125 = por %p123, %p124
    %p127 = scmp.ne.s32.totalorder %s112, %s126
    %p128 = scmp.eq.s32.totalorder %s16, 0
    %p129 = por %p127, %p128
    %s130 = ssub.s32 %s17, %s36
    %s131 = ssub.s32 %s18, %s32
    %s132 = sor.u32 %s130, %s131
    %p133 = scmp.eq.s32.totalorder %s132, 0
    %s135 = sadd.s32 %s134, 1
    %s136 = scalar_select %p133, %s134, %s135
    %p139 = pneg %p133
    %p140 = scmp.eq.s32.totalorder %s10, 9
    %p141 = por %p139, %p140
    %p142 = scmp.ne.s32.totalorder %s134, %s137
    %p143 = scmp.eq.s32.totalorder %s10, 0
    %p144 = por %p142, %p143
    %p145 = scmp.ne.s32.totalorder %s134, %s137
    %p146 = scmp.eq.s32.totalorder %s15, 9
    %p147 = por %p145, %p146
    %p148 = scmp.ne.s32.totalorder %s137, %s138
    %p149 = scmp.eq.s32.totalorder %s15, 0
    %p150 = por %p148, %p149
    %p151 = scmp.ne.s32.totalorder %s137, %s138
    %p152 = scmp.eq.s32.totalorder %s16, 9
    %p153 = por %p151, %p152
    %p155 = scmp.ne.s32.totalorder %s138, %s154
    %p156 = scmp.eq.s32.totalorder %s16, 0
    %p157 = por %p155, %p156
    %p158 = scmp.le.s32.totalorder 1, %s10
    %p159 = scmp.lt.s32.totalorder %s10, 11
    %p160 = pnand %p158, %p159
    %p161 = pneg %p160
    // Predicated region
    $region9: #{_lambda_.10} parent=5 // pred_check
      _
    $region10: #{_lambda_.10} parent=5 // pred_check_branch
      %163 = sbr.rel (%p160) target = $region12
    $region11: #{_lambda_.10} parent=5 // pred_region
      %s164 = ssub.s32 %s10, 1
      // Predicated region
      $region13: #{_lambda_.10} parent=11 // pred_check
        %p165 = pneg %p80
      $region14: #{_lambda_.10} parent=11 // pred_check_branch
        %167 = sbr.rel (%p165) target = $region16
      $region15: #{_lambda_.10} parent=11 // pred_region
        _
      $region16: #{_lambda_.10} parent=11 // pred_fallthru
        _
      // Predicated region
      $region17: #{_lambda_.10} parent=11 // pred_check
        %p168 = pneg %p101
      $region18: #{_lambda_.10} parent=11 // pred_check_branch
        %170 = sbr.rel (%p168) target = $region20
      $region19: #{_lambda_.10} parent=11 // pred_region
        _
      $region20: #{_lambda_.10} parent=11 // pred_fallthru
        _
      // Predicated region
      $region21: #{_lambda_.10} parent=11 // pred_check
        %p171 = pneg %p122
      $region22: #{_lambda_.10} parent=11 // pred_check_branch
        %173 = sbr.rel (%p171) target = $region24
      $region23: #{_lambda_.10} parent=11 // pred_region
        _
      $region24: #{_lambda_.10} parent=11 // pred_fallthru
        _
    $region12: #{_lambda_.10} parent=5 // pred_fallthru
      _
    %p174 = scmp.lt.s32.totalorder %s10, 10
    // Predicated region
    $region25: #{_lambda_.10} parent=5 // pred_check
      %p175 = pneg %p174
    $region26: #{_lambda_.10} parent=5 // pred_check_branch
      %177 = sbr.rel (%p175) target = $region28
    $region27: #{_lambda_.10} parent=5 // pred_region
      // Predicated region
      $region29: #{_lambda_.10} parent=27 // pred_check
        %p178 = pneg %p53
      $region30: #{_lambda_.10} parent=27 // pred_check_branch
        %180 = sbr.rel (%p178) target = $region32
      $region31: #{_lambda_.10} parent=27 // pred_region
        %s181 = sadd.s32 %s18, %s19
        %p182 = scmp.lt.s32.totalorder %s17, 1
        %s183 = scalar_select %p182, %s17, 1
        %p184 = scmp.lt.s32.totalorder %s181, 4
        %s185 = scalar_select %p184, %s181, 4
        %s186 = smul.addr %s185, 6
        %s187 = smul.addr %s183, 30
        %s188 = sadd.s32 %s186, %s187
        %s189 = smul.addr %s188, 4
        %s190 = scalar_lea.vmem %s0, %s189
        %s191 = sadd.s32 %s18, %s19
      $region32: #{_lambda_.10} parent=27 // pred_fallthru
        _
    $region28: #{_lambda_.10} parent=5 // pred_fallthru
      _
    %p192 = scmp.le.s32.totalorder 1, %s10
    %p193 = scmp.lt.s32.totalorder %s10, 11
    %p194 = pnand %p192, %p193
    %p195 = pneg %p194
    // Predicated region
    $region33: #{_lambda_.10} parent=5 // pred_check
      _
    $region34: #{_lambda_.10} parent=5 // pred_check_branch
      %197 = sbr.rel (%p194) target = $region36
    $region35: #{_lambda_.10} parent=5 // pred_region
      %s198 = ssub.s32 %s10, 1
      %s199 = sadd.s32 %s21, %s22
      %p200 = scmp.lt.s32.totalorder %s20, 1
      %s201 = scalar_select %p200, %s20, 1
      %p202 = scmp.lt.s32.totalorder %s199, 4
      %s203 = scalar_select %p202, %s199, 4
      %s204 = smul.addr %s203, 6
      %s205 = smul.addr %s201, 30
      %s206 = sadd.s32 %s204, %s205
      %s207 = smul.addr %s206, 4
      %s208 = scalar_lea.vmem %s0, %s207
      %p209 = pneg %p59
      %p210 = pneg %p56
      %p211 = pneg %p80
      %p212 = pneg %p77
      %p213 = pneg %p101
      %p214 = pneg %p98
      %p215 = pneg %p122
      %p216 = pneg %p119
      %p217 = pneg %p150
      %p218 = pneg %p147
      %p219 = scmp.lt.s32.totalorder %s20, 1
      %s220 = scalar_select %p219, %s20, 1
      %p221 = scmp.lt.s32.totalorder %s21, 0
      %s222 = scalar_select %p221, %s21, 0
      %s223 = smul.addr %s222, 2
      %s224 = smul.addr %s220, 2
      %s225 = sadd.s32 %s223, %s224
      %s226 = smul.addr %s225, 4
      %s227 = scalar_lea.vmem %s4, %s226
      %s228 = sadd.s32 %s21, %s22
      %p229 = scmp.lt.s32.totalorder %s20, 1
      %s230 = scalar_select %p229, %s20, 1
      %p231 = scmp.lt.s32.totalorder %s228, 4
      %s232 = scalar_select %p231, %s228, 4
      %s233 = smul.addr %s232, 6
      %s234 = smul.addr %s230, 30
      %s235 = sadd.s32 %s233, %s234
      %s236 = smul.addr %s235, 4
      %s237 = scalar_lea.vmem %s0, %s236
      %s238 = sadd.s32 %s21, %s22
      %p239 = scmp.lt.s32.totalorder %s20, 1
      %s240 = scalar_select %p239, %s20, 1
      %p241 = scmp.lt.s32.totalorder %s21, 0
      %s242 = scalar_select %p241, %s21, 0
      %s243 = smul.addr %s242, 2
      %s244 = smul.addr %s240, 2
      %s245 = sadd.s32 %s243, %s244
      %s246 = smul.addr %s245, 4
      %s247 = scalar_lea.vmem %s4, %s246
      %p249 = scmp.eq.s32.totalorder %s22, 0
      // Predicated region
      $region37: #{_lambda_.10} parent=35 // pred_check
        %p250 = pneg %p249
      $region38: #{_lambda_.10} parent=35 // pred_check_branch
        %252 = sbr.rel (%p250) target = $region40
      $region39: #{_lambda_.10} parent=35 // pred_region
        %253 = vst [vmem:[#allocation2] sm:$0xff] 0.0
        %254 = vst [vmem:[#allocation2 + $0x8] sm:$0xff] 0.0
      $region40: #{_lambda_.10} parent=35 // pred_fallthru
        _
      %v255 = vld [vmem:[#allocation2] sm:$0xff]
      %v256 = vld [vmem:[#allocation2 + $0x8] sm:$0xff]
      %v257 = vld [vmem:[%s237] sm:$0xff]
      %v258 = vld [vmem:[%s237 + $0x8] sm:$0xf]
      %v259 = vld [vmem:[%s237 + $0xc] sm:$0xff]
      %v260 = vld [vmem:[%s237 + $0x14] sm:$0xf]
      %s261 = smul.u32 %s22, 40
      %s262 = smul.addr %s261, 4
      %s263 = scalar_lea.vmem %s1, %s262
      %v264 = vld [vmem:[%s263] sm:$0xf]
      %v265 = vld [vmem:[%s263 + $0x4] sm:$0xf]
      %v266 = vld [vmem:[%s263 + $0x8] sm:$0xf]
      %v267 = vld [vmem:[%s263 + $0xc] sm:$0xf]
      %v268 = vld [vmem:[%s263 + $0x10] sm:$0xf]
      %v269 = vld [vmem:[%s263 + $0x14] sm:$0xf]
      %v270 = vld [vmem:[%s263 + $0x18] sm:$0xf]
      %v271 = vld [vmem:[%s263 + $0x1c] sm:$0xf]
      %v272 = vld [vmem:[%s263 + $0x20] sm:$0xf]
      %v273 = vld [vmem:[%s263 + $0x24] sm:$0xf]
      %v274 = vld [vmem:[%s263 + $0x28] sm:$0xf]
      %v275 = vld [vmem:[%s263 + $0x2c] sm:$0xf]
      %v276 = vld [vmem:[%s263 + $0x30] sm:$0xf]
      %v277 = vld [vmem:[%s263 + $0x34] sm:$0xf]
      %v278 = vld [vmem:[%s263 + $0x38] sm:$0xf]
      %v279 = vld [vmem:[%s263 + $0x3c] sm:$0xf]
      %v280 = vld [vmem:[%s263 + $0x40] sm:$0xf]
      %v281 = vld [vmem:[%s263 + $0x44] sm:$0xf]
      %v282 = vld [vmem:[%s263 + $0x48] sm:$0xf]
      %v283 = vld [vmem:[%s263 + $0x4c] sm:$0xf]
      %v284 = vld [vmem:[%s263 + $0x50] sm:$0xf]
      %v285 = vld [vmem:[%s263 + $0x54] sm:$0xf]
      %v286 = vld [vmem:[%s263 + $0x58] sm:$0xf]
      %v287 = vld [vmem:[%s263 + $0x5c] sm:$0xf]
      %v288 = vld [vmem:[%s263 + $0x60] sm:$0xf]
      %v289 = vld [vmem:[%s263 + $0x64] sm:$0xf]
      %v290 = vld [vmem:[%s263 + $0x68] sm:$0xf]
      %v291 = vld [vmem:[%s263 + $0x6c] sm:$0xf]
      %v292 = vld [vmem:[%s263 + $0x70] sm:$0xf]
      %v293 = vld [vmem:[%s263 + $0x74] sm:$0xf]
      %v294 = vld [vmem:[%s263 + $0x78] sm:$0xf]
      %v295 = vld [vmem:[%s263 + $0x7c] sm:$0xf]
      %v296 = vld [vmem:[%s263 + $0x80] sm:$0xf]
      %v297 = vld [vmem:[%s263 + $0x84] sm:$0xf]
      %v298 = vld [vmem:[%s263 + $0x88] sm:$0xf]
      %v299 = vld [vmem:[%s263 + $0x8c] sm:$0xf]
      %v300 = vld [vmem:[%s263 + $0x90] sm:$0xf]
      %v301 = vld [vmem:[%s263 + $0x94] sm:$0xf]
      %v302 = vld [vmem:[%s263 + $0x98] sm:$0xf]
      %v303 = vld [vmem:[%s263 + $0x9c] sm:$0xf]
      %v308 = vunpack.c.l.b16 %v257
      %v309 = vunpack.c.h.b16 %v257
      %v310 = vunpack.c.l.b16 %v258
      %v311 = vunpack.c.l.b16 %v259
      %v312 = vunpack.c.h.b16 %v259
      %v313 = vunpack.c.l.b16 %v260
      %v314 = vpack.c.b16 %v311, %v308
      %v315 = vpack.c.b16 %v312, %v309
      %v316 = vpack.c.b16 %v313, %v310
      %v359 = vunpack.c.l.b16 %v264
      %v360 = vunpack.c.l.b16 %v265
      %v361 = vunpack.c.l.b16 %v266
      %v362 = vunpack.c.l.b16 %v267
      %v363 = vunpack.c.l.b16 %v268
      %v364 = vunpack.c.l.b16 %v269
      %v365 = vunpack.c.l.b16 %v270
      %v366 = vunpack.c.l.b16 %v271
      %v367 = vunpack.c.l.b16 %v272
      %v368 = vunpack.c.l.b16 %v273
      %v369 = vunpack.c.l.b16 %v274
      %v370 = vunpack.c.l.b16 %v275
      %v371 = vunpack.c.l.b16 %v276
      %v372 = vunpack.c.l.b16 %v277
      %v373 = vunpack.c.l.b16 %v278
      %v374 = vunpack.c.l.b16 %v279
      %v375 = vunpack.c.l.b16 %v280
      %v376 = vunpack.c.l.b16 %v281
      %v377 = vunpack.c.l.b16 %v282
      %v378 = vunpack.c.l.b16 %v283
      %v379 = vunpack.c.l.b16 %v284
      %v380 = vunpack.c.l.b16 %v285
      %v381 = vunpack.c.l.b16 %v286
      %v382 = vunpack.c.l.b16 %v287
      %v383 = vunpack.c.l.b16 %v288
      %v384 = vunpack.c.l.b16 %v289
      %v385 = vunpack.c.l.b16 %v290
      %v386 = vunpack.c.l.b16 %v291
      %v387 = vunpack.c.l.b16 %v292
      %v388 = vunpack.c.l.b16 %v293
      %v389 = vunpack.c.l.b16 %v294
      %v390 = vunpack.c.l.b16 %v295
      %v391 = vunpack.c.l.b16 %v296
      %v392 = vunpack.c.l.b16 %v297
      %v393 = vunpack.c.l.b16 %v298
      %v394 = vunpack.c.l.b16 %v299
      %v395 = vunpack.c.l.b16 %v300
      %v396 = vunpack.c.l.b16 %v301
      %v397 = vunpack.c.l.b16 %v302
      %v398 = vunpack.c.l.b16 %v303
      %v399 = vpack.c.b16 %v360, %v359
      %v400 = vpack.c.b16 %v362, %v361
      %v401 = vpack.c.b16 %v364, %v363
      %v402 = vpack.c.b16 %v366, %v365
      %v403 = vpack.c.b16 %v368, %v367
      %v404 = vpack.c.b16 %v370, %v369
      %v405 = vpack.c.b16 %v372, %v371
      %v406 = vpack.c.b16 %v374, %v373
      %v407 = vpack.c.b16 %v376, %v375
      %v408 = vpack.c.b16 %v378, %v377
      %v409 = vpack.c.b16 %v380, %v379
      %v410 = vpack.c.b16 %v382, %v381
      %v411 = vpack.c.b16 %v384, %v383
      %v412 = vpack.c.b16 %v386, %v385
      %v413 = vpack.c.b16 %v388, %v387
      %v414 = vpack.c.b16 %v390, %v389
      %v415 = vpack.c.b16 %v392, %v391
      %v416 = vpack.c.b16 %v394, %v393
      %v417 = vpack.c.b16 %v396, %v395
      %v418 = vpack.c.b16 %v398, %v397
      %vm439 = vcmask 523264
      %v441 = vsel %vm439, %v316, 0
      %443 = vmatprep.subr.bf16.mxu0 0
      %444 = vmatpush1.bf16.msra.mxu0 %v406
      %445 = vmatprep.subr.bf16.mxu0 0
      %446 = vmatpush1.bf16.msra.mxu0 %v405
      %447 = vmatprep.subr.bf16.mxu0 0
      %448 = vmatpush1.bf16.msra.mxu0 %v404
      %449 = vmatprep.subr.bf16.mxu0 0
      %450 = vmatpush1.bf16.msra.mxu0 %v403
      %451 = vmatprep.subr.bf16.mxu0 0
      %452 = vmatpush1.bf16.msra.mxu0 %v402
      %453 = vmatprep.subr.bf16.mxu0 0
      %454 = vmatpush1.bf16.msra.mxu0 %v401
      %455 = vmatprep.subr.bf16.mxu0 0
      %456 = vmatpush1.bf16.msra.mxu0 %v400
      %457 = vmatprep.subr.bf16.mxu0 0
      %458 = vmatpush1.bf16.msra.mxu0 %v399
      %459 = vmatprep.subr.bf16.mxu0 0
      %460 = vmatpush2.bf16.msra.mxu0 %v414
      %461 = vmatprep.subr.bf16.mxu0 0
      %462 = vmatpush2.bf16.msra.mxu0 %v413
      %463 = vmatprep.subr.bf16.mxu0 0
      %464 = vmatpush2.bf16.msra.mxu0 %v412
      %465 = vmatprep.subr.bf16.mxu0 0
      %466 = vmatpush2.bf16.msra.mxu0 %v411
      %467 = vmatprep.subr.bf16.mxu0 0
      %468 = vmatpush2.bf16.msra.mxu0 %v410
      %469 = vmatprep.subr.bf16.mxu0 0
      %470 = vmatpush2.bf16.msra.mxu0 %v409
      %471 = vmatprep.subr.bf16.mxu0 0
      %472 = vmatpush2.bf16.msra.mxu0 %v408
      %473 = vmatprep.subr.bf16.mxu0 0
      %474 = vmatpush2.bf16.msra.mxu0 %v407
      %475 = vmatprep.mubr.bf16.mxu0 %v315
      %476 = vmatmul.mubr.bf16.gmra.mxu0 %v314
      %v477 = vpop.f32.mrf.mxu0
      %v478 = vadd.f32 0.0, %v477
      %v479 = vpop.f32.mrf.mxu0
      %v480 = vpop.f32.mrf.mxu0
      %v481 = vadd.f32 0.0, %v480
      %v482 = vpop.f32.mrf.mxu0
      %483 = vdwg.mxu0
      %484 = vmatprep.subr.bf16.mxu0 0
      %485 = vmatpush1.bf16.msra.mxu0 0
      %486 = vmatprep.subr.bf16.mxu0 0
      %487 = vmatpush1.bf16.msra.mxu0 0
      %488 = vmatprep.subr.bf16.mxu0 0
      %489 = vmatpush1.bf16.msra.mxu0 0
      %490 = vmatprep.subr.bf16.mxu0 0
      %491 = vmatpush1.bf16.msra.mxu0 0
      %492 = vmatprep.subr.bf16.mxu0 0
      %493 = vmatpush1.bf16.msra.mxu0 %v418
      %494 = vmatprep.subr.bf16.mxu0 0
      %495 = vmatpush1.bf16.msra.mxu0 %v417
      %496 = vmatprep.subr.bf16.mxu0 0
      %497 = vmatpush1.bf16.msra.mxu0 %v416
      %498 = vmatprep.subr.bf16.mxu0 0
      %499 = vmatpush1.bf16.msra.mxu0 %v415
      %500 = vmatprep.subr.bf16.mxu0 0
      %501 = vmatpush2.bf16.msra.mxu0 0
      %502 = vmatprep.subr.bf16.mxu0 0
      %503 = vmatpush2.bf16.msra.mxu0 0
      %504 = vmatprep.subr.bf16.mxu0 0
      %505 = vmatpush2.bf16.msra.mxu0 0
      %506 = vmatprep.subr.bf16.mxu0 0
      %507 = vmatpush2.bf16.msra.mxu0 0
      %508 = vmatprep.subr.bf16.mxu0 0
      %509 = vmatpush2.bf16.msra.mxu0 0
      %510 = vmatprep.subr.bf16.mxu0 0
      %511 = vmatpush2.bf16.msra.mxu0 0
      %512 = vmatprep.subr.bf16.mxu0 0
      %513 = vmatpush2.bf16.msra.mxu0 0
      %514 = vmatprep.subr.bf16.mxu0 0
      %515 = vmatpush2.bf16.msra.mxu0 0
      %516 = vmatprep.mubr.bf16.mxu0 0
      %517 = vmatmul.mubr.bf16.gmra.mxu0 %v441
      %v518 = vpop.f32.mrf.mxu0
      %v519 = vadd.f32 %v478, %v518
      %v520 = vpop.f32.mrf.mxu0
      %v521 = vpop.f32.mrf.mxu0
      %v522 = vadd.f32 %v481, %v521
      %v523 = vpop.f32.mrf.mxu0
      %524 = vdwg.mxu0
      %v525 = vadd.f32 %v255, %v519
      %v526 = vadd.f32 %v256, %v522
      %527 = vst [vmem:[#allocation2] sm:$0xff] %v525
      %528 = vst [vmem:[#allocation2 + $0x8] sm:$0xff] %v526
      %p529 = scmp.eq.s32.totalorder %s22, 4
      // Predicated region
      $region41: #{_lambda_.10} parent=35 // pred_check
        %p530 = pneg %p529
      $region42: #{_lambda_.10} parent=35 // pred_check_branch
        %532 = sbr.rel (%p530) target = $region44
      $region43: #{_lambda_.10} parent=35 // pred_region
        %v533 = vld [vmem:[#allocation2] sm:$0xff]
        %v534 = vld [vmem:[#allocation2 + $0x8] sm:$0xff]
        %v535 = vld [vmem:[%s2] sm:$0x1]
        %v537 = vlaneseq
        %v538 = vshrl.u32 %v537, 7
        %v539 = vsub.s32 0, %v538
        %v540 = vrot.slane %v535, %v539
        %v542 = vmul.f32 %v533, %v540
        %v543 = vmul.f32 %v534, %v540
        %v544 = vld [vmem:[%s3] sm:$0x1]
        %v546 = vlaneseq
        %v547 = vshrl.u32 %v546, 7
        %v548 = vsub.s32 0, %v547
        %v549 = vrot.slane %v544, %v548
        %v551 = vadd.f32 %v542, %v549
        %v552 = vadd.f32 %v543, %v549
        %v553 = vmul.f32 %v551, 0.1
        %v554 = vmul.f32 %v552, 0.1
        %v555 = vmax.f32 %v551, %v553
        %v556 = vmax.f32 %v552, %v554
        %v557 = vpack.c.bf16 %v556, %v555
        %v559 = vunpack.c.l.b16 %v557
        %v560 = vunpack.c.h.b16 %v557
        %v561 = vpack.c.b16 %v559, %v559
        %v562 = vpack.c.b16 %v560, %v560
        %565 = vst [vmem:[%s247] sm:$0xf] %v561
        %566 = vst [vmem:[%s247 + $0x4] sm:$0xf] %v562
      $region44: #{_lambda_.10} parent=35 // pred_fallthru
        _
      %p567 = scmp.lt.s32.totalorder %s20, 1
      %s568 = scalar_select %p567, %s20, 1
      %p569 = scmp.lt.s32.totalorder %s21, 0
      %s570 = scalar_select %p569, %s21, 0
      %s571 = smul.addr %s570, 2
      %s572 = smul.addr %s568, 2
      %s573 = sadd.s32 %s571, %s572
      %s574 = smul.addr %s573, 4
      %s575 = scalar_lea.vmem %s4, %s574
      // Predicated region
      $region45: #{_lambda_.10} parent=35 // pred_check
        %p576 = pneg %p147
      $region46: #{_lambda_.10} parent=35 // pred_check_branch
        %578 = sbr.rel (%p576) target = $region48
      $region47: #{_lambda_.10} parent=35 // pred_region
        _
      $region48: #{_lambda_.10} parent=35 // pred_fallthru
        _
    $region36: #{_lambda_.10} parent=5 // pred_fallthru
      _
    %p579 = scmp.le.s32.totalorder 2, %s10
    // Predicated region
    $region49: #{_lambda_.10} parent=5 // pred_check
      %p580 = pneg %p579
    $region50: #{_lambda_.10} parent=5 // pred_check_branch
      %582 = sbr.rel (%p580) target = $region52
    $region51: #{_lambda_.10} parent=5 // pred_region
      %s583 = ssub.s32 %s10, 2
      // Predicated region
      $region53: #{_lambda_.10} parent=51 // pred_check
        %p584 = pneg %p153
      $region54: #{_lambda_.10} parent=51 // pred_check_branch
        %586 = sbr.rel (%p584) target = $region56
      $region55: #{_lambda_.10} parent=51 // pred_region
        %p587 = scmp.lt.s32.totalorder %s23, 1
        %s588 = scalar_select %p587, %s23, 1
        %p589 = scmp.lt.s32.totalorder %s24, 0
        %s590 = scalar_select %p589, %s24, 0
        %s591 = smul.addr %s590, 2
        %s592 = smul.addr %s588, 2
        %s593 = sadd.s32 %s591, %s592
        %s594 = smul.addr %s593, 4
        %s595 = scalar_lea.vmem %s4, %s594
      $region56: #{_lambda_.10} parent=51 // pred_fallthru
        _
    $region52: #{_lambda_.10} parent=5 // pred_fallthru
      _
  $region6: #{_lambda_.10} parent=0 // loop_footer
    %s14 = sadd.s32 1, %s10
  $region7: #{_lambda_.10} parent=0 // loop_footer_branch
    %9 = sbr.rel target = $region3
  $region8: #{_lambda_.10} parent=0 // loop_exit
    _

// kernel: _lambda_.11
$region0: #{_lambda_.11}
  #allocation0 [shape = 'u32[]', space=smem, size = 0x4, offset = 0x4, fixed_abs, tag = 'smem constant byte address 0x4 - core index']
  #allocation1 [shape = 'u32[144,128]{1,0:T(1,128)}', space=vmem, size = 0x12000, scoped, tag = 'internal scratch']
  #allocation2 [shape = 'f32[8,256]{1,0:T(8,128)}', space=vmem, size = 0x2000, scoped, tag = 'scratch operand']
  %s0 = inlined_call_operand.vmem [shape: bf16[8,128], index: 0, kind: input, shape index: {}]
  %s1 = inlined_call_operand.vmem [shape: bf16[128,256], index: 1, kind: input, shape index: {}]
  %s2 = inlined_call_operand.vmem [shape: f32[1,256], index: 2, kind: input, shape index: {}]
  %s3 = inlined_call_operand.vmem [shape: f32[1,256], index: 3, kind: input, shape index: {}]
  %s4 = inlined_call_operand.vmem [shape: f32[8,256], index: 4, kind: output, shape index: {}]
  %s5 = sld [smem:[#allocation0]]
  $region34: #{_lambda_.11} parent=0
    _
  %s7 = ssub.s32 1, %s5
  %s8 = scalar_select 0, %s7, %s5
  // Predicated region
  $region2: #{_lambda_.11} parent=0 // pred_check
    _
  $region3: #{_lambda_.11} parent=0 // pred_check_branch
    %10 = sbr.rel (0) target = $region5
  $region4: #{_lambda_.11} parent=0 // pred_region
    _
  $region5: #{_lambda_.11} parent=0 // pred_fallthru
    _
  // Predicated region
  $region6: #{_lambda_.11} parent=0 // pred_check
    _
  $region7: #{_lambda_.11} parent=0 // pred_check_branch
    %12 = sbr.rel (0) target = $region9
  $region8: #{_lambda_.11} parent=0 // pred_region
    _
  $region9: #{_lambda_.11} parent=0 // pred_fallthru
    _
  // Predicated region
  $region10: #{_lambda_.11} parent=0 // pred_check
    _
  $region11: #{_lambda_.11} parent=0 // pred_check_branch
    %14 = sbr.rel (0) target = $region13
  $region12: #{_lambda_.11} parent=0 // pred_region
    _
  $region13: #{_lambda_.11} parent=0 // pred_fallthru
    _
  // Predicated region
  $region14: #{_lambda_.11} parent=0 // pred_check
    _
  $region15: #{_lambda_.11} parent=0 // pred_check_branch
    %16 = sbr.rel (0) target = $region17
  $region16: #{_lambda_.11} parent=0 // pred_region
    _
  $region17: #{_lambda_.11} parent=0 // pred_fallthru
    _
  %p18 = scmp.eq.s32.totalorder 0, 0
  // Predicated region
  $region18: #{_lambda_.11} parent=0 // pred_check
    %p19 = pneg %p18
  $region19: #{_lambda_.11} parent=0 // pred_check_branch
    %21 = sbr.rel (%p19) target = $region21
  $region20: #{_lambda_.11} parent=0 // pred_region
    %22 = vst [vmem:[#allocation2] sm:$0xff] 0.0
    %23 = vst [vmem:[#allocation2 + $0x8] sm:$0xff] 0.0
  $region21: #{_lambda_.11} parent=0 // pred_fallthru
    _
  %v24 = vld [vmem:[#allocation2] sm:$0xff]
  %v25 = vld [vmem:[#allocation2 + $0x8] sm:$0xff]
  %v26 = vld [vmem:[%s0] sm:$0xf]
  %v27 = vld [vmem:[%s1] sm:$0xff]
  %v28 = vld [vmem:[%s1 + $0x8] sm:$0xff]
  %v29 = vld [vmem:[%s1 + $0x10] sm:$0xff]
  %v30 = vld [vmem:[%s1 + $0x18] sm:$0xff]
  %v31 = vld [vmem:[%s1 + $0x20] sm:$0xff]
  %v32 = vld [vmem:[%s1 + $0x28] sm:$0xff]
  %v33 = vld [vmem:[%s1 + $0x30] sm:$0xff]
  %v34 = vld [vmem:[%s1 + $0x38] sm:$0xff]
  %v35 = vld [vmem:[%s1 + $0x40] sm:$0xff]
  %v36 = vld [vmem:[%s1 + $0x48] sm:$0xff]
  %v37 = vld [vmem:[%s1 + $0x50] sm:$0xff]
  %v38 = vld [vmem:[%s1 + $0x58] sm:$0xff]
  %v39 = vld [vmem:[%s1 + $0x60] sm:$0xff]
  %v40 = vld [vmem:[%s1 + $0x68] sm:$0xff]
  %v41 = vld [vmem:[%s1 + $0x70] sm:$0xff]
  %v42 = vld [vmem:[%s1 + $0x78] sm:$0xff]
  %v59 = vunpack.c.l.b16 %v27
  %v60 = vunpack.c.h.b16 %v27
  %v61 = vunpack.c.l.b16 %v28
  %v62 = vunpack.c.h.b16 %v28
  %v63 = vunpack.c.l.b16 %v29
  %v64 = vunpack.c.h.b16 %v29
  %v65 = vunpack.c.l.b16 %v30
  %v66 = vunpack.c.h.b16 %v30
  %v67 = vunpack.c.l.b16 %v31
  %v68 = vunpack.c.h.b16 %v31
  %v69 = vunpack.c.l.b16 %v32
  %v70 = vunpack.c.h.b16 %v32
  %v71 = vunpack.c.l.b16 %v33
  %v72 = vunpack.c.h.b16 %v33
  %v73 = vunpack.c.l.b16 %v34
  %v74 = vunpack.c.h.b16 %v34
  %v75 = vunpack.c.l.b16 %v35
  %v76 = vunpack.c.h.b16 %v35
  %v77 = vunpack.c.l.b16 %v36
  %v78 = vunpack.c.h.b16 %v36
  %v79 = vunpack.c.l.b16 %v37
  %v80 = vunpack.c.h.b16 %v37
  %v81 = vunpack.c.l.b16 %v38
  %v82 = vunpack.c.h.b16 %v38
  %v83 = vunpack.c.l.b16 %v39
  %v84 = vunpack.c.h.b16 %v39
  %v85 = vunpack.c.l.b16 %v40
  %v86 = vunpack.c.h.b16 %v40
  %v87 = vunpack.c.l.b16 %v41
  %v88 = vunpack.c.h.b16 %v41
  %v89 = vunpack.c.l.b16 %v42
  %v90 = vunpack.c.h.b16 %v42
  %v91 = vpack.c.b16 %v61, %v59
  %v92 = vpack.c.b16 %v62, %v60
  %v93 = vpack.c.b16 %v65, %v63
  %v94 = vpack.c.b16 %v66, %v64
  %v95 = vpack.c.b16 %v69, %v67
  %v96 = vpack.c.b16 %v70, %v68
  %v97 = vpack.c.b16 %v73, %v71
  %v98 = vpack.c.b16 %v74, %v72
  %v99 = vpack.c.b16 %v77, %v75
  %v100 = vpack.c.b16 %v78, %v76
  %v101 = vpack.c.b16 %v81, %v79
  %v102 = vpack.c.b16 %v82, %v80
  %v103 = vpack.c.b16 %v85, %v83
  %v104 = vpack.c.b16 %v86, %v84
  %v105 = vpack.c.b16 %v89, %v87
  %v106 = vpack.c.b16 %v90, %v88
  %123 = vmatprep.subr.bf16.mxu0 %v106
  %124 = vmatpush1.bf16.msra.mxu0 %v105
  %125 = vmatprep.subr.bf16.mxu0 %v104
  %126 = vmatpush1.bf16.msra.mxu0 %v103
  %127 = vmatprep.subr.bf16.mxu0 %v102
  %128 = vmatpush1.bf16.msra.mxu0 %v101
  %129 = vmatprep.subr.bf16.mxu0 %v100
  %130 = vmatpush1.bf16.msra.mxu0 %v99
  %131 = vmatprep.subr.bf16.mxu0 %v98
  %132 = vmatpush1.bf16.msra.mxu0 %v97
  %133 = vmatprep.subr.bf16.mxu0 %v96
  %134 = vmatpush1.bf16.msra.mxu0 %v95
  %135 = vmatprep.subr.bf16.mxu0 %v94
  %136 = vmatpush1.bf16.msra.mxu0 %v93
  %137 = vmatprep.subr.bf16.mxu0 %v92
  %138 = vmatpush1.bf16.msra.mxu0 %v91
  %139 = vmatprep.subr.bf16.mxu0 0
  %140 = vmatpush2.bf16.msra.mxu0 0
  %141 = vmatprep.subr.bf16.mxu0 0
  %142 = vmatpush2.bf16.msra.mxu0 0
  %143 = vmatprep.subr.bf16.mxu0 0
  %144 = vmatpush2.bf16.msra.mxu0 0
  %145 = vmatprep.subr.bf16.mxu0 0
  %146 = vmatpush2.bf16.msra.mxu0 0
  %147 = vmatprep.subr.bf16.mxu0 0
  %148 = vmatpush2.bf16.msra.mxu0 0
  %149 = vmatprep.subr.bf16.mxu0 0
  %150 = vmatpush2.bf16.msra.mxu0 0
  %151 = vmatprep.subr.bf16.mxu0 0
  %152 = vmatpush2.bf16.msra.mxu0 0
  %153 = vmatprep.subr.bf16.mxu0 0
  %154 = vmatpush2.bf16.msra.mxu0 0
  %155 = vmatprep.mubr.bf16.mxu0 0
  %156 = vmatmul.mubr.bf16.gmra.mxu0 %v26
  %v157 = vpop.f32.mrf.mxu0
  %v158 = vadd.f32 0.0, %v157
  %v159 = vpop.f32.mrf.mxu0
  %v160 = vadd.f32 0.0, %v159
  %v161 = vpop.f32.mrf.mxu0
  %v162 = vpop.f32.mrf.mxu0
  %163 = vdwg.mxu0
  %v164 = vadd.f32 %v24, %v158
  %v165 = vadd.f32 %v25, %v160
  %166 = vst [vmem:[#allocation2] sm:$0xff] %v164
  %167 = vst [vmem:[#allocation2 + $0x8] sm:$0xff] %v165
  // Predicated region
  $region22: #{_lambda_.11} parent=0 // pred_check
    %p168 = pneg %p18
  $region23: #{_lambda_.11} parent=0 // pred_check_branch
    %170 = sbr.rel (%p168) target = $region25
  $region24: #{_lambda_.11} parent=0 // pred_region
    %v171 = vld [vmem:[#allocation2] sm:$0xff]
    %v172 = vld [vmem:[#allocation2 + $0x8] sm:$0xff]
    %v173 = vld [vmem:[%s2] sm:$0x3]
    %v175 = vlaneseq
    %v176 = vshrl.u32 %v175, 7
    %v177 = vsub.s32 0, %v176
    %v178 = vrot.slane %v173, %v177
    %v179 = vlaneseq
    %v180 = vshrl.u32 %v179, 7
    %v181 = vsub.s32 1, %v180
    %v182 = vrot.slane %v173, %v181
    %v185 = vmul.f32 %v171, %v178
    %v186 = vmul.f32 %v172, %v182
    %v187 = vld [vmem:[%s3] sm:$0x3]
    %v189 = vlaneseq
    %v190 = vshrl.u32 %v189, 7
    %v191 = vsub.s32 0, %v190
    %v192 = vrot.slane %v187, %v191
    %v193 = vlaneseq
    %v194 = vshrl.u32 %v193, 7
    %v195 = vsub.s32 1, %v194
    %v196 = vrot.slane %v187, %v195
    %v199 = vadd.f32 %v185, %v192
    %v200 = vadd.f32 %v186, %v196
    %v201 = vmul.f32 %v199, 0.01
    %v202 = vmul.f32 %v200, 0.01
    %v203 = vmax.f32 %v199, %v201
    %v204 = vmax.f32 %v200, %v202
    %205 = vst [vmem:[%s4] sm:$0xff] %v203
    %206 = vst [vmem:[%s4 + $0x8] sm:$0xff] %v204
  $region25: #{_lambda_.11} parent=0 // pred_fallthru
    _
  // Predicated region
  $region26: #{_lambda_.11} parent=0 // pred_check
    _
  $region27: #{_lambda_.11} parent=0 // pred_check_branch
    %208 = sbr.rel (0) target = $region29
  $region28: #{_lambda_.11} parent=0 // pred_region
    _
  $region29: #{_lambda_.11} parent=0 // pred_fallthru
    _
  // Predicated region
  $region30: #{_lambda_.11} parent=0 // pred_check
    _
  $region31: #{_lambda_.11} parent=0 // pred_check_branch
    %210 = sbr.rel (0) target = $region33
  $region32: #{_lambda_.11} parent=0 // pred_region
    _
  $region33: #{_lambda_.11} parent=0 // pred_fallthru
    _

</llo_original>
